<compile_context>
chip_gen: v5e
topology: v5e:2x2
jax: 0.10.0
libtpu: 0.0.40
codegen_flags: <defaults>
</compile_context>

<pallas_src>
import functools

import numpy as np
import jax
import jax.numpy as jnp
from jax.experimental import pallas as pl
from jax.experimental.pallas import tpu as pltpu

HIDDEN_TILE = 1024  # lane (tn) and contraction (tk) tile for the big hidden layers
OUT_TILE = 128      # lane tile for the small n_task output head
SUBLANE = 8


def _round_up(x, m):
    return ((x + m - 1) // m) * m


def _linear_act_kernel(x_ref, w_ref, b_ref, o_ref, acc_ref, *, activation):
    """One (tm, tn) output tile of act(x @ W + b); K reduced over grid axis 1."""
    k = pl.program_id(1)

    @pl.when(k == 0)
    def _():
        acc_ref[...] = jnp.zeros_like(acc_ref)

    acc_ref[...] += jnp.dot(
        x_ref[...], w_ref[...], preferred_element_type=jnp.float32
    )

    @pl.when(k == pl.num_programs(1) - 1)
    def _():
        r = acc_ref[...] + b_ref[...]          # f32 bias broadcast over rows
        if activation == "relu":
            r = jnp.maximum(r, 0.0)
        elif activation == "sigmoid":
            r = 1.0 / (1.0 + jnp.exp(-r))      # exp on EUP
        o_ref[...] = r.astype(o_ref.dtype)


def pallas_linear(x, w, b2, *, activation, out_dtype, tn=HIDDEN_TILE, tk=HIDDEN_TILE):
    """act(x @ w + b) with a tiled Pallas kernel.

    x : (M, K)  bfloat16 (padded: M % 8 == 0, K % tk == 0)
    w : (K, N)  bfloat16 (padded: N % tn == 0)
    b2: (1, N)  float32
    """
    M, K = x.shape
    Kw, N = w.shape
    assert K == Kw and b2.shape == (1, N)

    tm = M                       # whole batch resident -> weights streamed once
    tn = min(tn, N)
    tk = min(tk, K)
    assert M % SUBLANE == 0 and N % tn == 0 and K % tk == 0, (M, N, K, tn, tk)

    grid = (N // tn, K // tk)    # N "parallel" (megacore), K "arbitrary" (reduction)

    out_itemsize = np.dtype(out_dtype).itemsize
    vmem_bytes = (2 * tm * tk * x.dtype.itemsize      # double-buffered activations
                  + 2 * tk * tn * w.dtype.itemsize    # double-buffered weights
                  + 2 * tn * 4                        # bias
                  + 2 * tm * tn * out_itemsize        # double-buffered output
                  + tm * tn * 4)                      # f32 accumulator
    vmem_limit = int(min(max(int(1.5 * vmem_bytes), 16 * 1024 * 1024),
                         48 * 1024 * 1024))

    kernel = functools.partial(_linear_act_kernel, activation=activation)

    return pl.pallas_call(
        kernel,
        out_shape=jax.ShapeDtypeStruct((M, N), out_dtype),
        grid_spec=pltpu.PrefetchScalarGridSpec(
            num_scalar_prefetch=0,
            grid=grid,
            in_specs=[
                pl.BlockSpec((tm, tk), lambda j, k: (0, k)),   # activations
                pl.BlockSpec((tk, tn), lambda j, k: (k, j)),   # weights
                pl.BlockSpec((1, tn), lambda j, k: (0, j)),    # bias
            ],
            out_specs=pl.BlockSpec((tm, tn), lambda j, k: (0, j)),
            scratch_shapes=[pltpu.VMEM((tm, tn), jnp.float32)],
        ),
        compiler_params=pltpu.CompilerParams(
            dimension_semantics=("parallel", "arbitrary"),
            vmem_limit_bytes=vmem_limit,
        ),
    )(x, w, b2)


def init_params(key, dims):
    """torch.nn.Linear-style init U(-1/sqrt(fan_in), 1/sqrt(fan_in)); W stored (in, out)."""
    params = []
    for i in range(len(dims) - 1):
        fan_in, fan_out = dims[i], dims[i + 1]
        key, kw, kb = jax.random.split(key, 3)
        bound = 1.0 / jnp.sqrt(jnp.float32(fan_in))
        w = jax.random.uniform(kw, (fan_in, fan_out), jnp.float32, -bound, bound)
        b = jax.random.uniform(kb, (fan_out,), jnp.float32, -bound, bound)
        params.append((w, b))
    return params


def pad_params(params):
    """Zero-pad every (W, b) to tile-aligned shapes; W -> bf16, b -> (1, N_pad) f32.

    Hidden / input dims pad to HIDDEN_TILE multiples (8000->8192, 4000->4096,
    2000->2048), the final n_task dim pads to OUT_TILE. Zero padding keeps the
    padded activation columns exactly 0 through relu, so real outputs are
    unaffected.
    """
    n_layers = len(params)
    padded = []
    for i, (w, b) in enumerate(params):
        K, N = w.shape
        K_pad = _round_up(K, HIDDEN_TILE)
        N_pad = _round_up(N, OUT_TILE if i == n_layers - 1 else HIDDEN_TILE)
        w_p = jnp.zeros((K_pad, N_pad), jnp.float32).at[:K, :N].set(w)
        b_p = jnp.zeros((1, N_pad), jnp.float32).at[0, :N].set(b)
        padded.append((w_p.astype(jnp.bfloat16), b_p))
    return padded


def multitask_nn_classifier_forward(x, padded_params, n_task):
    """Inference forward: relu hidden layers, sigmoid multi-task output head."""
    # TODO(synk): nn.Dropout is training-only (istrain=True) and is omitted here.
    M, K = x.shape
    M_pad = _round_up(M, SUBLANE)
    K_pad = padded_params[0][0].shape[0]
    x_p = jnp.zeros((M_pad, K_pad), jnp.float32).at[:M, :K].set(x)
    h = x_p.astype(jnp.bfloat16)

    n_layers = len(padded_params)
    for i, (w, b) in enumerate(padded_params):
        last = i == n_layers - 1
        h = pallas_linear(
            h, w, b,
            activation="sigmoid" if last else "relu",
            out_dtype=jnp.float32 if last else jnp.bfloat16,
            tn=OUT_TILE if last else HIDDEN_TILE,
            tk=HIDDEN_TILE,
        )
    return h[:M, :n_task]


if __name__ == "__main__":
    # Scaled-down analog of set_architecture(n_dim, n_task) -> [n_dim, 8000, 4000, 2000, n_task],
    # with deliberately non-multiple-of-128 dims and a non-multiple-of-8 batch to
    # exercise the padding path the real architecture needs.
    n_dim, hidden, n_task = 500, [1000, 500, 250], 5
    batch = 12
    dims = [n_dim] + hidden + [n_task]

    key = jax.random.PRNGKey(0)
    key, kx = jax.random.split(key)
    x = jax.random.normal(kx, (batch, n_dim), dtype=jnp.float32)

    params = init_params(key, dims)
    padded = pad_params(params)

    y = multitask_nn_classifier_forward(x, padded, n_task)
    jax.block_until_ready(y)

    # Plain-JAX reference at the same (bf16 weights/activations, f32 accumulate) precision.
    h_ref = x
    for w, b in params[:-1]:
        h_ref = jnp.maximum(
            jnp.dot(h_ref.astype(jnp.bfloat16), w.astype(jnp.bfloat16),
                    preferred_element_type=jnp.float32) + b, 0.0)
    w, b = params[-1]
    logits = jnp.dot(h_ref.astype(jnp.bfloat16), w.astype(jnp.bfloat16),
                     preferred_element_type=jnp.float32) + b
    y_ref = jax.nn.sigmoid(logits)

    assert y.shape == (batch, n_task), y.shape
    assert jnp.allclose(y, y_ref, atol=2e-3, rtol=2e-3), float(jnp.max(jnp.abs(y - y_ref)))

    print("KERNEL_OK")
</pallas_src>

<mosaic_0001>
module attributes {stable_mosaic.version = 11 : i64} {
  func.func @_linear_act_kernel(%arg0: i32, %arg1: i32, %arg2: memref<16x1024xbf16, #tpu.memory_space<vmem>>, %arg3: memref<1024x1024xbf16, #tpu.memory_space<vmem>>, %arg4: memref<1x1024xf32, #tpu.memory_space<vmem>>, %arg5: memref<16x1024xbf16, #tpu.memory_space<vmem>>, %arg6: memref<16x1024xf32, #tpu.memory_space<vmem>>) attributes {dimension_semantics = [#tpu.dimension_semantics<parallel>, #tpu.dimension_semantics<arbitrary>], iteration_bounds = array<i64: 1, 1>, scalar_prefetch = 0 : i64, scratch_operands = 1 : i64, tpu.core_type = #tpu.core_type<tc>, window_params = [{transform_indices = @transform_0, window_bounds = array<i64: 16, 1024>}, {transform_indices = @transform_1, window_bounds = array<i64: 1024, 1024>}, {transform_indices = @transform_2, window_bounds = array<i64: 1, 1024>}, {transform_indices = @transform_3, window_bounds = array<i64: 16, 1024>}]} {
    %c0_i32 = arith.constant 0 : i32
    %0 = arith.cmpi eq, %arg1, %c0_i32 : i32
    %1 = arith.extui %0 : i1 to i32
    %c0_i32_0 = arith.constant 0 : i32
    %2 = arith.cmpi ne, %1, %c0_i32_0 : i32
    scf.if %2 {
      %cst_10 = arith.constant 0.000000e+00 : f32
      %12 = vector.broadcast %cst_10 : f32 to vector<16x1024xf32>
      %c0_11 = arith.constant 0 : index
      %c0_12 = arith.constant 0 : index
      %13 = vector.load %arg6[%c0_11, %c0_12] : memref<16x1024xf32, #tpu.memory_space<vmem>>, vector<16x1024xf32>
      tpu.vector_store %arg6[%c0_11, %c0_12], %12 {strides = array<i32>} : memref<16x1024xf32, #tpu.memory_space<vmem>>, vector<16x1024xf32>,
    } else {
    }
    %c0 = arith.constant 0 : index
    %c0_1 = arith.constant 0 : index
    %3 = vector.load %arg6[%c0, %c0_1] : memref<16x1024xf32, #tpu.memory_space<vmem>>, vector<16x1024xf32>
    %c0_2 = arith.constant 0 : index
    %c0_3 = arith.constant 0 : index
    %4 = vector.load %arg2[%c0_2, %c0_3] : memref<16x1024xbf16, #tpu.memory_space<vmem>>, vector<16x1024xbf16>
    %c0_4 = arith.constant 0 : index
    %c0_5 = arith.constant 0 : index
    %5 = vector.load %arg3[%c0_4, %c0_5] : memref<1024x1024xbf16, #tpu.memory_space<vmem>>, vector<1024x1024xbf16>
    %cst = arith.constant dense<0.000000e+00> : vector<16x1024xf32>
    %6 = tpu.matmul %4, %5, %cst {dimension_numbers = #tpu.dot_dimension_numbers<[1], [0], [0], [1], [0, 0, 1, 1], [], []>} : vector<16x1024xbf16>, vector<1024x1024xbf16>, vector<16x1024xf32> -> vector<16x1024xf32>
    %7 = arith.addf %3, %6 : vector<16x1024xf32>
    %c0_6 = arith.constant 0 : index
    %c0_7 = arith.constant 0 : index
    %8 = vector.load %arg6[%c0_6, %c0_7] : memref<16x1024xf32, #tpu.memory_space<vmem>>, vector<16x1024xf32>
    tpu.vector_store %arg6[%c0_6, %c0_7], %7 {strides = array<i32>} : memref<16x1024xf32, #tpu.memory_space<vmem>>, vector<16x1024xf32>,
    %c0_i32_8 = arith.constant 0 : i32
    %9 = arith.cmpi eq, %arg1, %c0_i32_8 : i32
    %10 = arith.extui %9 : i1 to i32
    %c0_i32_9 = arith.constant 0 : i32
    %11 = arith.cmpi ne, %10, %c0_i32_9 : i32
    scf.if %11 {
      %c0_10 = arith.constant 0 : index
      %c0_11 = arith.constant 0 : index
      %12 = vector.load %arg6[%c0_10, %c0_11] : memref<16x1024xf32, #tpu.memory_space<vmem>>, vector<16x1024xf32>
      %c0_12 = arith.constant 0 : index
      %c0_13 = arith.constant 0 : index
      %13 = vector.load %arg4[%c0_12, %c0_13] : memref<1x1024xf32, #tpu.memory_space<vmem>>, vector<1x1024xf32>
      %14 = vector.broadcast %13 : vector<1x1024xf32> to vector<16x1024xf32>
      %15 = arith.addf %12, %14 : vector<16x1024xf32>
      %cst_14 = arith.constant 0.000000e+00 : f32
      %16 = vector.broadcast %cst_14 : f32 to vector<16x1024xf32>
      %17 = arith.maximumf %15, %16 : vector<16x1024xf32>
      %18 = arith.truncf %17 : vector<16x1024xf32> to vector<16x1024xbf16>
      %c0_15 = arith.constant 0 : index
      %c0_16 = arith.constant 0 : index
      %19 = vector.load %arg5[%c0_15, %c0_16] : memref<16x1024xbf16, #tpu.memory_space<vmem>>, vector<16x1024xbf16>
      tpu.vector_store %arg5[%c0_15, %c0_16], %18 {strides = array<i32>} : memref<16x1024xbf16, #tpu.memory_space<vmem>>, vector<16x1024xbf16>,
    } else {
    }
    return
  }
  func.func @transform_0(%arg0: i32, %arg1: i32) -> (i32, i32) {
    %c0_i32 = arith.constant 0 : i32
    %c0_i32_0 = arith.constant 0 : i32
    return %c0_i32, %arg1 : i32, i32
  }
  func.func @transform_1(%arg0: i32, %arg1: i32) -> (i32, i32) {
    %c0_i32 = arith.constant 0 : i32
    return %arg1, %arg0 : i32, i32
  }
  func.func @transform_2(%arg0: i32, %arg1: i32) -> (i32, i32) {
    %c0_i32 = arith.constant 0 : i32
    %c0_i32_0 = arith.constant 0 : i32
    return %c0_i32, %arg0 : i32, i32
  }
  func.func @transform_3(%arg0: i32, %arg1: i32) -> (i32, i32) {
    %c0_i32 = arith.constant 0 : i32
    %c0_i32_0 = arith.constant 0 : i32
    return %c0_i32, %arg0 : i32, i32
  }
}

</mosaic_0001>

<llo_original>
// kernel: tpu_custom_call.1
$region0: #{tpu_custom_call.1}
  #allocation0 [shape = 'u32[]', space=smem, size = 0x4, offset = 0x4, fixed_abs, tag = 'smem constant byte address 0x4 - core index']
  #allocation1 [shape = 'u32[72,128]{1,0:T(1,128)}', space=vmem, size = 0x9000, scoped, tag = 'internal scratch']
  #allocation2 [shape = 'f32[16,1024]{1,0:T(8,128)}', space=vmem, size = 0x10000, scoped, tag = 'scratch operand']
  %s0 = inlined_call_operand.hbm [shape: bf16[16,1024], index: 0, kind: input, shape index: {}]
  %s1 = inlined_call_operand.hbm [shape: bf16[1024,1024], index: 1, kind: input, shape index: {}]
  %s2 = inlined_call_operand.hbm [shape: f32[1,1024], index: 2, kind: input, shape index: {}]
  %s3 = inlined_call_operand.hbm [shape: bf16[16,1024], index: 3, kind: output, shape index: {}]
  %s4 = sld [smem:[#allocation0]]
  $region42: #{tpu_custom_call.1} parent=0
    _
  %s6 = ssub.s32 1, %s4
  %s7 = scalar_select 0, %s6, %s4
  $region1: #{tpu_custom_call.1} parent=0
    #allocation3 [shape = 'u8[32768]{0}', space=vmem, size = 0x8000, scoped, tag = 'input window, operand 0, single buffered']
    #allocation4 [shape = 's32[1]{0}', space=sflag, size = 0x4, scoped, tag = 'scoped memory for tpu_custom_call.1']
    #allocation5 [shape = 's32[1]{0}', space=sflag, size = 0x4, scoped, tag = 'scoped memory for tpu_custom_call.1']
    #allocation6 [shape = 'u8[2097152]{0}', space=vmem, size = 0x200000, scoped, tag = 'input window, operand 1, single buffered']
    #allocation7 [shape = 's32[1]{0}', space=sflag, size = 0x4, scoped, tag = 'scoped memory for tpu_custom_call.1']
    #allocation8 [shape = 'u8[4096]{0}', space=vmem, size = 0x1000, scoped, tag = 'input window, operand 2, single buffered']
    #allocation9 [shape = 'u8[32768]{0}', space=vmem, size = 0x8000, scoped, tag = 'output window, operand 0, single buffered']
    %8 = vsyncpa [#allocation4], 0
    %9 = vsyncpa [#allocation7], 0
    %10 = vsyncpa [#allocation5], 0
    // Predicated region
    $region2: #{tpu_custom_call.1} parent=1 // pred_check
      _
    $region3: #{tpu_custom_call.1} parent=1 // pred_check_branch
      %12 = sbr.rel (0) target = $region5
    $region4: #{tpu_custom_call.1} parent=1 // pred_region
      %14 = vsyncadd [#allocation4], 0
      %s15 = sshll.u32 %s0, 4
      %s16 = int_to_ptr.hbm [resolvable:$true] %s15
      %s17 = sshll.u32 [#allocation3], 4
      %s18 = int_to_ptr.vmem [resolvable:$true] %s17
      %23 = dma.hbm_to_vmem [thread:$0]  %s16, 1024, %s18, [#allocation4], 512, 512, 32
    $region5: #{tpu_custom_call.1} parent=1 // pred_fallthru
      _
    // Predicated region
    $region6: #{tpu_custom_call.1} parent=1 // pred_check
      _
    $region7: #{tpu_custom_call.1} parent=1 // pred_check_branch
      %25 = sbr.rel (0) target = $region9
    $region8: #{tpu_custom_call.1} parent=1 // pred_region
      %27 = vsyncadd [#allocation7], 0
      %s28 = sshll.u32 %s1, 4
      %s29 = int_to_ptr.hbm [resolvable:$true] %s28
      %s30 = sshll.u32 [#allocation6], 4
      %s31 = int_to_ptr.vmem [resolvable:$true] %s30
      %36 = dma.hbm_to_vmem [thread:$0]  %s29, 65536, %s31, [#allocation7], 512, 512, 32
    $region9: #{tpu_custom_call.1} parent=1 // pred_fallthru
      _
    // Predicated region
    $region10: #{tpu_custom_call.1} parent=1 // pred_check
      _
    $region11: #{tpu_custom_call.1} parent=1 // pred_check_branch
      %38 = sbr.rel (0) target = $region13
    $region12: #{tpu_custom_call.1} parent=1 // pred_region
      %40 = vsyncadd [#allocation7], 0
      %s42 = sshll.u32 %s2, 4
      %s43 = int_to_ptr.hbm [resolvable:$true] %s42
      %s44 = sshll.u32 [#allocation8], 4
      %s45 = int_to_ptr.vmem [resolvable:$true] %s44
      %47 = dma.hbm_to_vmem [thread:$0]  %s43, 128, %s45, [#allocation7]
    $region13: #{tpu_custom_call.1} parent=1 // pred_fallthru
      _
    // Predicated region
    $region14: #{tpu_custom_call.1} parent=1 // pred_check
      _
    $region15: #{tpu_custom_call.1} parent=1 // pred_check_branch
      %49 = sbr.rel (0) target = $region17
    $region16: #{tpu_custom_call.1} parent=1 // pred_region
      %51 = dma.done [#allocation4], 1024
    $region17: #{tpu_custom_call.1} parent=1 // pred_fallthru
      _
    // Predicated region
    $region18: #{tpu_custom_call.1} parent=1 // pred_check
      _
    $region19: #{tpu_custom_call.1} parent=1 // pred_check_branch
      %53 = sbr.rel (0) target = $region21
    $region20: #{tpu_custom_call.1} parent=1 // pred_region
      %55 = dma.done [#allocation7], 65536
    $region21: #{tpu_custom_call.1} parent=1 // pred_fallthru
      _
    // Predicated region
    $region22: #{tpu_custom_call.1} parent=1 // pred_check
      _
    $region23: #{tpu_custom_call.1} parent=1 // pred_check_branch
      %57 = sbr.rel (0) target = $region25
    $region24: #{tpu_custom_call.1} parent=1 // pred_region
      %59 = dma.done [#allocation7], 128
    $region25: #{tpu_custom_call.1} parent=1 // pred_fallthru
      _
    %p60 = scmp.eq.s32.totalorder 0, 0
    // Predicated region
    $region26: #{tpu_custom_call.1} parent=1 // pred_check
      %p61 = pneg %p60
    $region27: #{tpu_custom_call.1} parent=1 // pred_check_branch
      %63 = sbr.rel (%p61) target = $region29
    $region28: #{tpu_custom_call.1} parent=1 // pred_region
      %64 = vst [vmem:[#allocation2] sm:$0xff] 0.0
      %65 = vst [vmem:[#allocation2 + $0x8] sm:$0xff] 0.0
      %66 = vst [vmem:[#allocation2 + $0x10] sm:$0xff] 0.0
      %67 = vst [vmem:[#allocation2 + $0x18] sm:$0xff] 0.0
      %68 = vst [vmem:[#allocation2 + $0x20] sm:$0xff] 0.0
      %69 = vst [vmem:[#allocation2 + $0x28] sm:$0xff] 0.0
      %70 = vst [vmem:[#allocation2 + $0x30] sm:$0xff] 0.0
      %71 = vst [vmem:[#allocation2 + $0x38] sm:$0xff] 0.0
      %72 = vst [vmem:[#allocation2 + $0x40] sm:$0xff] 0.0
      %73 = vst [vmem:[#allocation2 + $0x48] sm:$0xff] 0.0
      %74 = vst [vmem:[#allocation2 + $0x50] sm:$0xff] 0.0
      %75 = vst [vmem:[#allocation2 + $0x58] sm:$0xff] 0.0
      %76 = vst [vmem:[#allocation2 + $0x60] sm:$0xff] 0.0
      %77 = vst [vmem:[#allocation2 + $0x68] sm:$0xff] 0.0
      %78 = vst [vmem:[#allocation2 + $0x70] sm:$0xff] 0.0
      %79 = vst [vmem:[#allocation2 + $0x78] sm:$0xff] 0.0
    $region29: #{tpu_custom_call.1} parent=1 // pred_fallthru
      _
    %v80 = vld [vmem:[#allocation2] sm:$0xff]
    %v81 = vld [vmem:[#allocation2 + $0x8] sm:$0xff]
    %v82 = vld [vmem:[#allocation2 + $0x10] sm:$0xff]
    %v83 = vld [vmem:[#allocation2 + $0x18] sm:$0xff]
    %v84 = vld [vmem:[#allocation2 + $0x20] sm:$0xff]
    %v85 = vld [vmem:[#allocation2 + $0x28] sm:$0xff]
    %v86 = vld [vmem:[#allocation2 + $0x30] sm:$0xff]
    %v87 = vld [vmem:[#allocation2 + $0x38] sm:$0xff]
    %v88 = vld [vmem:[#allocation2 + $0x40] sm:$0xff]
    %v89 = vld [vmem:[#allocation2 + $0x48] sm:$0xff]
    %v90 = vld [vmem:[#allocation2 + $0x50] sm:$0xff]
    %v91 = vld [vmem:[#allocation2 + $0x58] sm:$0xff]
    %v92 = vld [vmem:[#allocation2 + $0x60] sm:$0xff]
    %v93 = vld [vmem:[#allocation2 + $0x68] sm:$0xff]
    %v94 = vld [vmem:[#allocation2 + $0x70] sm:$0xff]
    %v95 = vld [vmem:[#allocation2 + $0x78] sm:$0xff]
    %v96 = vld [vmem:[#allocation3] sm:$0xff]
    %v97 = vld [vmem:[#allocation3 + $0x8] sm:$0xff]
    %v98 = vld [vmem:[#allocation3 + $0x10] sm:$0xff]
    %v99 = vld [vmem:[#allocation3 + $0x18] sm:$0xff]
    %v100 = vld [vmem:[#allocation3 + $0x20] sm:$0xff]
    %v101 = vld [vmem:[#allocation3 + $0x28] sm:$0xff]
    %v102 = vld [vmem:[#allocation3 + $0x30] sm:$0xff]
    %v103 = vld [vmem:[#allocation3 + $0x38] sm:$0xff]
    %v104 = vld [vmem:[#allocation6] sm:$0xff]
    %v105 = vld [vmem:[#allocation6 + $0x8] sm:$0xff]
    %v106 = vld [vmem:[#allocation6 + $0x10] sm:$0xff]
    %v107 = vld [vmem:[#allocation6 + $0x18] sm:$0xff]
    %v108 = vld [vmem:[#allocation6 + $0x20] sm:$0xff]
    %v109 = vld [vmem:[#allocation6 + $0x28] sm:$0xff]
    %v110 = vld [vmem:[#allocation6 + $0x30] sm:$0xff]
    %v111 = vld [vmem:[#allocation6 + $0x38] sm:$0xff]
    %v112 = vld [vmem:[#allocation6 + $0x40] sm:$0xff]
    %v113 = vld [vmem:[#allocation6 + $0x48] sm:$0xff]
    %v114 = vld [vmem:[#allocation6 + $0x50] sm:$0xff]
    %v115 = vld [vmem:[#allocation6 + $0x58] sm:$0xff]
    %v116 = vld [vmem:[#allocation6 + $0x60] sm:$0xff]
    %v117 = vld [vmem:[#allocation6 + $0x68] sm:$0xff]
    %v118 = vld [vmem:[#allocation6 + $0x70] sm:$0xff]
    %v119 = vld [vmem:[#allocation6 + $0x78] sm:$0xff]
    %v120 = vld [vmem:[#allocation6 + $0x80] sm:$0xff]
    %v121 = vld [vmem:[#allocation6 + $0x88] sm:$0xff]
    %v122 = vld [vmem:[#allocation6 + $0x90] sm:$0xff]
    %v123 = vld [vmem:[#allocation6 + $0x98] sm:$0xff]
    %v124 = vld [vmem:[#allocation6 + $0xa0] sm:$0xff]
    %v125 = vld [vmem:[#allocation6 + $0xa8] sm:$0xff]
    %v126 = vld [vmem:[#allocation6 + $0xb0] sm:$0xff]
    %v127 = vld [vmem:[#allocation6 + $0xb8] sm:$0xff]
    %v128 = vld [vmem:[#allocation6 + $0xc0] sm:$0xff]
    %v129 = vld [vmem:[#allocation6 + $0xc8] sm:$0xff]
    %v130 = vld [vmem:[#allocation6 + $0xd0] sm:$0xff]
    %v131 = vld [vmem:[#allocation6 + $0xd8] sm:$0xff]
    %v132 = vld [vmem:[#allocation6 + $0xe0] sm:$0xff]
    %v133 = vld [vmem:[#allocation6 + $0xe8] sm:$0xff]
    %v134 = vld [vmem:[#allocation6 + $0xf0] sm:$0xff]
    %v135 = vld [vmem:[#allocation6 + $0xf8] sm:$0xff]
    %v136 = vld [vmem:[#allocation6 + $0x100] sm:$0xff]
    %v137 = vld [vmem:[#allocation6 + $0x108] sm:$0xff]
    %v138 = vld [vmem:[#allocation6 + $0x110] sm:$0xff]
    %v139 = vld [vmem:[#allocation6 + $0x118] sm:$0xff]
    %v140 = vld [vmem:[#allocation6 + $0x120] sm:$0xff]
    %v141 = vld [vmem:[#allocation6 + $0x128] sm:$0xff]
    %v142 = vld [vmem:[#allocation6 + $0x130] sm:$0xff]
    %v143 = vld [vmem:[#allocation6 + $0x138] sm:$0xff]
    %v144 = vld [vmem:[#allocation6 + $0x140] sm:$0xff]
    %v145 = vld [vmem:[#allocation6 + $0x148] sm:$0xff]
    %v146 = vld [vmem:[#allocation6 + $0x150] sm:$0xff]
    %v147 = vld [vmem:[#allocation6 + $0x158] sm:$0xff]
    %v148 = vld [vmem:[#allocation6 + $0x160] sm:$0xff]
    %v149 = vld [vmem:[#allocation6 + $0x168] sm:$0xff]
    %v150 = vld [vmem:[#allocation6 + $0x170] sm:$0xff]
    %v151 = vld [vmem:[#allocation6 + $0x178] sm:$0xff]
    %v152 = vld [vmem:[#allocation6 + $0x180] sm:$0xff]
    %v153 = vld [vmem:[#allocation6 + $0x188] sm:$0xff]
    %v154 = vld [vmem:[#allocation6 + $0x190] sm:$0xff]
    %v155 = vld [vmem:[#allocation6 + $0x198] sm:$0xff]
    %v156 = vld [vmem:[#allocation6 + $0x1a0] sm:$0xff]
    %v157 = vld [vmem:[#allocation6 + $0x1a8] sm:$0xff]
    %v158 = vld [vmem:[#allocation6 + $0x1b0] sm:$0xff]
    %v159 = vld [vmem:[#allocation6 + $0x1b8] sm:$0xff]
    %v160 = vld [vmem:[#allocation6 + $0x1c0] sm:$0xff]
    %v161 = vld [vmem:[#allocation6 + $0x1c8] sm:$0xff]
    %v162 = vld [vmem:[#allocation6 + $0x1d0] sm:$0xff]
    %v163 = vld [vmem:[#allocation6 + $0x1d8] sm:$0xff]
    %v164 = vld [vmem:[#allocation6 + $0x1e0] sm:$0xff]
    %v165 = vld [vmem:[#allocation6 + $0x1e8] sm:$0xff]
    %v166 = vld [vmem:[#allocation6 + $0x1f0] sm:$0xff]
    %v167 = vld [vmem:[#allocation6 + $0x1f8] sm:$0xff]
    %v168 = vld [vmem:[#allocation6 + $0x200] sm:$0xff]
    %v169 = vld [vmem:[#allocation6 + $0x208] sm:$0xff]
    %v170 = vld [vmem:[#allocation6 + $0x210] sm:$0xff]
    %v171 = vld [vmem:[#allocation6 + $0x218] sm:$0xff]
    %v172 = vld [vmem:[#allocation6 + $0x220] sm:$0xff]
    %v173 = vld [vmem:[#allocation6 + $0x228] sm:$0xff]
    %v174 = vld [vmem:[#allocation6 + $0x230] sm:$0xff]
    %v175 = vld [vmem:[#allocation6 + $0x238] sm:$0xff]
    %v176 = vld [vmem:[#allocation6 + $0x240] sm:$0xff]
    %v177 = vld [vmem:[#allocation6 + $0x248] sm:$0xff]
    %v178 = vld [vmem:[#allocation6 + $0x250] sm:$0xff]
    %v179 = vld [vmem:[#allocation6 + $0x258] sm:$0xff]
    %v180 = vld [vmem:[#allocation6 + $0x260] sm:$0xff]
    %v181 = vld [vmem:[#allocation6 + $0x268] sm:$0xff]
    %v182 = vld [vmem:[#allocation6 + $0x270] sm:$0xff]
    %v183 = vld [vmem:[#allocation6 + $0x278] sm:$0xff]
    %v184 = vld [vmem:[#allocation6 + $0x280] sm:$0xff]
    %v185 = vld [vmem:[#allocation6 + $0x288] sm:$0xff]
    %v186 = vld [vmem:[#allocation6 + $0x290] sm:$0xff]
    %v187 = vld [vmem:[#allocation6 + $0x298] sm:$0xff]
    %v188 = vld [vmem:[#allocation6 + $0x2a0] sm:$0xff]
    %v189 = vld [vmem:[#allocation6 + $0x2a8] sm:$0xff]
    %v190 = vld [vmem:[#allocation6 + $0x2b0] sm:$0xff]
    %v191 = vld [vmem:[#allocation6 + $0x2b8] sm:$0xff]
    %v192 = vld [vmem:[#allocation6 + $0x2c0] sm:$0xff]
    %v193 = vld [vmem:[#allocation6 + $0x2c8] sm:$0xff]
    %v194 = vld [vmem:[#allocation6 + $0x2d0] sm:$0xff]
    %v195 = vld [vmem:[#allocation6 + $0x2d8] sm:$0xff]
    %v196 = vld [vmem:[#allocation6 + $0x2e0] sm:$0xff]
    %v197 = vld [vmem:[#allocation6 + $0x2e8] sm:$0xff]
    %v198 = vld [vmem:[#allocation6 + $0x2f0] sm:$0xff]
    %v199 = vld [vmem:[#allocation6 + $0x2f8] sm:$0xff]
    %v200 = vld [vmem:[#allocation6 + $0x300] sm:$0xff]
    %v201 = vld [vmem:[#allocation6 + $0x308] sm:$0xff]
    %v202 = vld [vmem:[#allocation6 + $0x310] sm:$0xff]
    %v203 = vld [vmem:[#allocation6 + $0x318] sm:$0xff]
    %v204 = vld [vmem:[#allocation6 + $0x320] sm:$0xff]
    %v205 = vld [vmem:[#allocation6 + $0x328] sm:$0xff]
    %v206 = vld [vmem:[#allocation6 + $0x330] sm:$0xff]
    %v207 = vld [vmem:[#allocation6 + $0x338] sm:$0xff]
    %v208 = vld [vmem:[#allocation6 + $0x340] sm:$0xff]
    %v209 = vld [vmem:[#allocation6 + $0x348] sm:$0xff]
    %v210 = vld [vmem:[#allocation6 + $0x350] sm:$0xff]
    %v211 = vld [vmem:[#allocation6 + $0x358] sm:$0xff]
    %v212 = vld [vmem:[#allocation6 + $0x360] sm:$0xff]
    %v213 = vld [vmem:[#allocation6 + $0x368] sm:$0xff]
    %v214 = vld [vmem:[#allocation6 + $0x370] sm:$0xff]
    %v215 = vld [vmem:[#allocation6 + $0x378] sm:$0xff]
    %v216 = vld [vmem:[#allocation6 + $0x380] sm:$0xff]
    %v217 = vld [vmem:[#allocation6 + $0x388] sm:$0xff]
    %v218 = vld [vmem:[#allocation6 + $0x390] sm:$0xff]
    %v219 = vld [vmem:[#allocation6 + $0x398] sm:$0xff]
    %v220 = vld [vmem:[#allocation6 + $0x3a0] sm:$0xff]
    %v221 = vld [vmem:[#allocation6 + $0x3a8] sm:$0xff]
    %v222 = vld [vmem:[#allocation6 + $0x3b0] sm:$0xff]
    %v223 = vld [vmem:[#allocation6 + $0x3b8] sm:$0xff]
    %v224 = vld [vmem:[#allocation6 + $0x3c0] sm:$0xff]
    %v225 = vld [vmem:[#allocation6 + $0x3c8] sm:$0xff]
    %v226 = vld [vmem:[#allocation6 + $0x3d0] sm:$0xff]
    %v227 = vld [vmem:[#allocation6 + $0x3d8] sm:$0xff]
    %v228 = vld [vmem:[#allocation6 + $0x3e0] sm:$0xff]
    %v229 = vld [vmem:[#allocation6 + $0x3e8] sm:$0xff]
    %v230 = vld [vmem:[#allocation6 + $0x3f0] sm:$0xff]
    %v231 = vld [vmem:[#allocation6 + $0x3f8] sm:$0xff]
    %v232 = vld [vmem:[#allocation6 + $0x400] sm:$0xff]
    %v233 = vld [vmem:[#allocation6 + $0x408] sm:$0xff]
    %v234 = vld [vmem:[#allocation6 + $0x410] sm:$0xff]
    %v235 = vld [vmem:[#allocation6 + $0x418] sm:$0xff]
    %v236 = vld [vmem:[#allocation6 + $0x420] sm:$0xff]
    %v237 = vld [vmem:[#allocation6 + $0x428] sm:$0xff]
    %v238 = vld [vmem:[#allocation6 + $0x430] sm:$0xff]
    %v239 = vld [vmem:[#allocation6 + $0x438] sm:$0xff]
    %v240 = vld [vmem:[#allocation6 + $0x440] sm:$0xff]
    %v241 = vld [vmem:[#allocation6 + $0x448] sm:$0xff]
    %v242 = vld [vmem:[#allocation6 + $0x450] sm:$0xff]
    %v243 = vld [vmem:[#allocation6 + $0x458] sm:$0xff]
    %v244 = vld [vmem:[#allocation6 + $0x460] sm:$0xff]
    %v245 = vld [vmem:[#allocation6 + $0x468] sm:$0xff]
    %v246 = vld [vmem:[#allocation6 + $0x470] sm:$0xff]
    %v247 = vld [vmem:[#allocation6 + $0x478] sm:$0xff]
    %v248 = vld [vmem:[#allocation6 + $0x480] sm:$0xff]
    %v249 = vld [vmem:[#allocation6 + $0x488] sm:$0xff]
    %v250 = vld [vmem:[#allocation6 + $0x490] sm:$0xff]
    %v251 = vld [vmem:[#allocation6 + $0x498] sm:$0xff]
    %v252 = vld [vmem:[#allocation6 + $0x4a0] sm:$0xff]
    %v253 = vld [vmem:[#allocation6 + $0x4a8] sm:$0xff]
    %v254 = vld [vmem:[#allocation6 + $0x4b0] sm:$0xff]
    %v255 = vld [vmem:[#allocation6 + $0x4b8] sm:$0xff]
    %v256 = vld [vmem:[#allocation6 + $0x4c0] sm:$0xff]
    %v257 = vld [vmem:[#allocation6 + $0x4c8] sm:$0xff]
    %v258 = vld [vmem:[#allocation6 + $0x4d0] sm:$0xff]
    %v259 = vld [vmem:[#allocation6 + $0x4d8] sm:$0xff]
    %v260 = vld [vmem:[#allocation6 + $0x4e0] sm:$0xff]
    %v261 = vld [vmem:[#allocation6 + $0x4e8] sm:$0xff]
    %v262 = vld [vmem:[#allocation6 + $0x4f0] sm:$0xff]
    %v263 = vld [vmem:[#allocation6 + $0x4f8] sm:$0xff]
    %v264 = vld [vmem:[#allocation6 + $0x500] sm:$0xff]
    %v265 = vld [vmem:[#allocation6 + $0x508] sm:$0xff]
    %v266 = vld [vmem:[#allocation6 + $0x510] sm:$0xff]
    %v267 = vld [vmem:[#allocation6 + $0x518] sm:$0xff]
    %v268 = vld [vmem:[#allocation6 + $0x520] sm:$0xff]
    %v269 = vld [vmem:[#allocation6 + $0x528] sm:$0xff]
    %v270 = vld [vmem:[#allocation6 + $0x530] sm:$0xff]
    %v271 = vld [vmem:[#allocation6 + $0x538] sm:$0xff]
    %v272 = vld [vmem:[#allocation6 + $0x540] sm:$0xff]
    %v273 = vld [vmem:[#allocation6 + $0x548] sm:$0xff]
    %v274 = vld [vmem:[#allocation6 + $0x550] sm:$0xff]
    %v275 = vld [vmem:[#allocation6 + $0x558] sm:$0xff]
    %v276 = vld [vmem:[#allocation6 + $0x560] sm:$0xff]
    %v277 = vld [vmem:[#allocation6 + $0x568] sm:$0xff]
    %v278 = vld [vmem:[#allocation6 + $0x570] sm:$0xff]
    %v279 = vld [vmem:[#allocation6 + $0x578] sm:$0xff]
    %v280 = vld [vmem:[#allocation6 + $0x580] sm:$0xff]
    %v281 = vld [vmem:[#allocation6 + $0x588] sm:$0xff]
    %v282 = vld [vmem:[#allocation6 + $0x590] sm:$0xff]
    %v283 = vld [vmem:[#allocation6 + $0x598] sm:$0xff]
    %v284 = vld [vmem:[#allocation6 + $0x5a0] sm:$0xff]
    %v285 = vld [vmem:[#allocation6 + $0x5a8] sm:$0xff]
    %v286 = vld [vmem:[#allocation6 + $0x5b0] sm:$0xff]
    %v287 = vld [vmem:[#allocation6 + $0x5b8] sm:$0xff]
    %v288 = vld [vmem:[#allocation6 + $0x5c0] sm:$0xff]
    %v289 = vld [vmem:[#allocation6 + $0x5c8] sm:$0xff]
    %v290 = vld [vmem:[#allocation6 + $0x5d0] sm:$0xff]
    %v291 = vld [vmem:[#allocation6 + $0x5d8] sm:$0xff]
    %v292 = vld [vmem:[#allocation6 + $0x5e0] sm:$0xff]
    %v293 = vld [vmem:[#allocation6 + $0x5e8] sm:$0xff]
    %v294 = vld [vmem:[#allocation6 + $0x5f0] sm:$0xff]
    %v295 = vld [vmem:[#allocation6 + $0x5f8] sm:$0xff]
    %v296 = vld [vmem:[#allocation6 + $0x600] sm:$0xff]
    %v297 = vld [vmem:[#allocation6 + $0x608] sm:$0xff]
    %v298 = vld [vmem:[#allocation6 + $0x610] sm:$0xff]
    %v299 = vld [vmem:[#allocation6 + $0x618] sm:$0xff]
    %v300 = vld [vmem:[#allocation6 + $0x620] sm:$0xff]
    %v301 = vld [vmem:[#allocation6 + $0x628] sm:$0xff]
    %v302 = vld [vmem:[#allocation6 + $0x630] sm:$0xff]
    %v303 = vld [vmem:[#allocation6 + $0x638] sm:$0xff]
    %v304 = vld [vmem:[#allocation6 + $0x640] sm:$0xff]
    %v305 = vld [vmem:[#allocation6 + $0x648] sm:$0xff]
    %v306 = vld [vmem:[#allocation6 + $0x650] sm:$0xff]
    %v307 = vld [vmem:[#allocation6 + $0x658] sm:$0xff]
    %v308 = vld [vmem:[#allocation6 + $0x660] sm:$0xff]
    %v309 = vld [vmem:[#allocation6 + $0x668] sm:$0xff]
    %v310 = vld [vmem:[#allocation6 + $0x670] sm:$0xff]
    %v311 = vld [vmem:[#allocation6 + $0x678] sm:$0xff]
    %v312 = vld [vmem:[#allocation6 + $0x680] sm:$0xff]
    %v313 = vld [vmem:[#allocation6 + $0x688] sm:$0xff]
    %v314 = vld [vmem:[#allocation6 + $0x690] sm:$0xff]
    %v315 = vld [vmem:[#allocation6 + $0x698] sm:$0xff]
    %v316 = vld [vmem:[#allocation6 + $0x6a0] sm:$0xff]
    %v317 = vld [vmem:[#allocation6 + $0x6a8] sm:$0xff]
    %v318 = vld [vmem:[#allocation6 + $0x6b0] sm:$0xff]
    %v319 = vld [vmem:[#allocation6 + $0x6b8] sm:$0xff]
    %v320 = vld [vmem:[#allocation6 + $0x6c0] sm:$0xff]
    %v321 = vld [vmem:[#allocation6 + $0x6c8] sm:$0xff]
    %v322 = vld [vmem:[#allocation6 + $0x6d0] sm:$0xff]
    %v323 = vld [vmem:[#allocation6 + $0x6d8] sm:$0xff]
    %v324 = vld [vmem:[#allocation6 + $0x6e0] sm:$0xff]
    %v325 = vld [vmem:[#allocation6 + $0x6e8] sm:$0xff]
    %v326 = vld [vmem:[#allocation6 + $0x6f0] sm:$0xff]
    %v327 = vld [vmem:[#allocation6 + $0x6f8] sm:$0xff]
    %v328 = vld [vmem:[#allocation6 + $0x700] sm:$0xff]
    %v329 = vld [vmem:[#allocation6 + $0x708] sm:$0xff]
    %v330 = vld [vmem:[#allocation6 + $0x710] sm:$0xff]
    %v331 = vld [vmem:[#allocation6 + $0x718] sm:$0xff]
    %v332 = vld [vmem:[#allocation6 + $0x720] sm:$0xff]
    %v333 = vld [vmem:[#allocation6 + $0x728] sm:$0xff]
    %v334 = vld [vmem:[#allocation6 + $0x730] sm:$0xff]
    %v335 = vld [vmem:[#allocation6 + $0x738] sm:$0xff]
    %v336 = vld [vmem:[#allocation6 + $0x740] sm:$0xff]
    %v337 = vld [vmem:[#allocation6 + $0x748] sm:$0xff]
    %v338 = vld [vmem:[#allocation6 + $0x750] sm:$0xff]
    %v339 = vld [vmem:[#allocation6 + $0x758] sm:$0xff]
    %v340 = vld [vmem:[#allocation6 + $0x760] sm:$0xff]
    %v341 = vld [vmem:[#allocation6 + $0x768] sm:$0xff]
    %v342 = vld [vmem:[#allocation6 + $0x770] sm:$0xff]
    %v343 = vld [vmem:[#allocation6 + $0x778] sm:$0xff]
    %v344 = vld [vmem:[#allocation6 + $0x780] sm:$0xff]
    %v345 = vld [vmem:[#allocation6 + $0x788] sm:$0xff]
    %v346 = vld [vmem:[#allocation6 + $0x790] sm:$0xff]
    %v347 = vld [vmem:[#allocation6 + $0x798] sm:$0xff]
    %v348 = vld [vmem:[#allocation6 + $0x7a0] sm:$0xff]
    %v349 = vld [vmem:[#allocation6 + $0x7a8] sm:$0xff]
    %v350 = vld [vmem:[#allocation6 + $0x7b0] sm:$0xff]
    %v351 = vld [vmem:[#allocation6 + $0x7b8] sm:$0xff]
    %v352 = vld [vmem:[#allocation6 + $0x7c0] sm:$0xff]
    %v353 = vld [vmem:[#allocation6 + $0x7c8] sm:$0xff]
    %v354 = vld [vmem:[#allocation6 + $0x7d0] sm:$0xff]
    %v355 = vld [vmem:[#allocation6 + $0x7d8] sm:$0xff]
    %v356 = vld [vmem:[#allocation6 + $0x7e0] sm:$0xff]
    %v357 = vld [vmem:[#allocation6 + $0x7e8] sm:$0xff]
    %v358 = vld [vmem:[#allocation6 + $0x7f0] sm:$0xff]
    %v359 = vld [vmem:[#allocation6 + $0x7f8] sm:$0xff]
    %v360 = vld [vmem:[#allocation6 + $0x800] sm:$0xff]
    %v361 = vld [vmem:[#allocation6 + $0x808] sm:$0xff]
    %v362 = vld [vmem:[#allocation6 + $0x810] sm:$0xff]
    %v363 = vld [vmem:[#allocation6 + $0x818] sm:$0xff]
    %v364 = vld [vmem:[#allocation6 + $0x820] sm:$0xff]
    %v365 = vld [vmem:[#allocation6 + $0x828] sm:$0xff]
    %v366 = vld [vmem:[#allocation6 + $0x830] sm:$0xff]
    %v367 = vld [vmem:[#allocation6 + $0x838] sm:$0xff]
    %v368 = vld [vmem:[#allocation6 + $0x840] sm:$0xff]
    %v369 = vld [vmem:[#allocation6 + $0x848] sm:$0xff]
    %v370 = vld [vmem:[#allocation6 + $0x850] sm:$0xff]
    %v371 = vld [vmem:[#allocation6 + $0x858] sm:$0xff]
    %v372 = vld [vmem:[#allocation6 + $0x860] sm:$0xff]
    %v373 = vld [vmem:[#allocation6 + $0x868] sm:$0xff]
    %v374 = vld [vmem:[#allocation6 + $0x870] sm:$0xff]
    %v375 = vld [vmem:[#allocation6 + $0x878] sm:$0xff]
    %v376 = vld [vmem:[#allocation6 + $0x880] sm:$0xff]
    %v377 = vld [vmem:[#allocation6 + $0x888] sm:$0xff]
    %v378 = vld [vmem:[#allocation6 + $0x890] sm:$0xff]
    %v379 = vld [vmem:[#allocation6 + $0x898] sm:$0xff]
    %v380 = vld [vmem:[#allocation6 + $0x8a0] sm:$0xff]
    %v381 = vld [vmem:[#allocation6 + $0x8a8] sm:$0xff]
    %v382 = vld [vmem:[#allocation6 + $0x8b0] sm:$0xff]
    %v383 = vld [vmem:[#allocation6 + $0x8b8] sm:$0xff]
    %v384 = vld [vmem:[#allocation6 + $0x8c0] sm:$0xff]
    %v385 = vld [vmem:[#allocation6 + $0x8c8] sm:$0xff]
    %v386 = vld [vmem:[#allocation6 + $0x8d0] sm:$0xff]
    %v387 = vld [vmem:[#allocation6 + $0x8d8] sm:$0xff]
    %v388 = vld [vmem:[#allocation6 + $0x8e0] sm:$0xff]
    %v389 = vld [vmem:[#allocation6 + $0x8e8] sm:$0xff]
    %v390 = vld [vmem:[#allocation6 + $0x8f0] sm:$0xff]
    %v391 = vld [vmem:[#allocation6 + $0x8f8] sm:$0xff]
    %v392 = vld [vmem:[#allocation6 + $0x900] sm:$0xff]
    %v393 = vld [vmem:[#allocation6 + $0x908] sm:$0xff]
    %v394 = vld [vmem:[#allocation6 + $0x910] sm:$0xff]
    %v395 = vld [vmem:[#allocation6 + $0x918] sm:$0xff]
    %v396 = vld [vmem:[#allocation6 + $0x920] sm:$0xff]
    %v397 = vld [vmem:[#allocation6 + $0x928] sm:$0xff]
    %v398 = vld [vmem:[#allocation6 + $0x930] sm:$0xff]
    %v399 = vld [vmem:[#allocation6 + $0x938] sm:$0xff]
    %v400 = vld [vmem:[#allocation6 + $0x940] sm:$0xff]
    %v401 = vld [vmem:[#allocation6 + $0x948] sm:$0xff]
    %v402 = vld [vmem:[#allocation6 + $0x950] sm:$0xff]
    %v403 = vld [vmem:[#allocation6 + $0x958] sm:$0xff]
    %v404 = vld [vmem:[#allocation6 + $0x960] sm:$0xff]
    %v405 = vld [vmem:[#allocation6 + $0x968] sm:$0xff]
    %v406 = vld [vmem:[#allocation6 + $0x970] sm:$0xff]
    %v407 = vld [vmem:[#allocation6 + $0x978] sm:$0xff]
    %v408 = vld [vmem:[#allocation6 + $0x980] sm:$0xff]
    %v409 = vld [vmem:[#allocation6 + $0x988] sm:$0xff]
    %v410 = vld [vmem:[#allocation6 + $0x990] sm:$0xff]
    %v411 = vld [vmem:[#allocation6 + $0x998] sm:$0xff]
    %v412 = vld [vmem:[#allocation6 + $0x9a0] sm:$0xff]
    %v413 = vld [vmem:[#allocation6 + $0x9a8] sm:$0xff]
    %v414 = vld [vmem:[#allocation6 + $0x9b0] sm:$0xff]
    %v415 = vld [vmem:[#allocation6 + $0x9b8] sm:$0xff]
    %v416 = vld [vmem:[#allocation6 + $0x9c0] sm:$0xff]
    %v417 = vld [vmem:[#allocation6 + $0x9c8] sm:$0xff]
    %v418 = vld [vmem:[#allocation6 + $0x9d0] sm:$0xff]
    %v419 = vld [vmem:[#allocation6 + $0x9d8] sm:$0xff]
    %v420 = vld [vmem:[#allocation6 + $0x9e0] sm:$0xff]
    %v421 = vld [vmem:[#allocation6 + $0x9e8] sm:$0xff]
    %v422 = vld [vmem:[#allocation6 + $0x9f0] sm:$0xff]
    %v423 = vld [vmem:[#allocation6 + $0x9f8] sm:$0xff]
    %v424 = vld [vmem:[#allocation6 + $0xa00] sm:$0xff]
    %v425 = vld [vmem:[#allocation6 + $0xa08] sm:$0xff]
    %v426 = vld [vmem:[#allocation6 + $0xa10] sm:$0xff]
    %v427 = vld [vmem:[#allocation6 + $0xa18] sm:$0xff]
    %v428 = vld [vmem:[#allocation6 + $0xa20] sm:$0xff]
    %v429 = vld [vmem:[#allocation6 + $0xa28] sm:$0xff]
    %v430 = vld [vmem:[#allocation6 + $0xa30] sm:$0xff]
    %v431 = vld [vmem:[#allocation6 + $0xa38] sm:$0xff]
    %v432 = vld [vmem:[#allocation6 + $0xa40] sm:$0xff]
    %v433 = vld [vmem:[#allocation6 + $0xa48] sm:$0xff]
    %v434 = vld [vmem:[#allocation6 + $0xa50] sm:$0xff]
    %v435 = vld [vmem:[#allocation6 + $0xa58] sm:$0xff]
    %v436 = vld [vmem:[#allocation6 + $0xa60] sm:$0xff]
    %v437 = vld [vmem:[#allocation6 + $0xa68] sm:$0xff]
    %v438 = vld [vmem:[#allocation6 + $0xa70] sm:$0xff]
    %v439 = vld [vmem:[#allocation6 + $0xa78] sm:$0xff]
    %v440 = vld [vmem:[#allocation6 + $0xa80] sm:$0xff]
    %v441 = vld [vmem:[#allocation6 + $0xa88] sm:$0xff]
    %v442 = vld [vmem:[#allocation6 + $0xa90] sm:$0xff]
    %v443 = vld [vmem:[#allocation6 + $0xa98] sm:$0xff]
    %v444 = vld [vmem:[#allocation6 + $0xaa0] sm:$0xff]
    %v445 = vld [vmem:[#allocation6 + $0xaa8] sm:$0xff]
    %v446 = vld [vmem:[#allocation6 + $0xab0] sm:$0xff]
    %v447 = vld [vmem:[#allocation6 + $0xab8] sm:$0xff]
    %v448 = vld [vmem:[#allocation6 + $0xac0] sm:$0xff]
    %v449 = vld [vmem:[#allocation6 + $0xac8] sm:$0xff]
    %v450 = vld [vmem:[#allocation6 + $0xad0] sm:$0xff]
    %v451 = vld [vmem:[#allocation6 + $0xad8] sm:$0xff]
    %v452 = vld [vmem:[#allocation6 + $0xae0] sm:$0xff]
    %v453 = vld [vmem:[#allocation6 + $0xae8] sm:$0xff]
    %v454 = vld [vmem:[#allocation6 + $0xaf0] sm:$0xff]
    %v455 = vld [vmem:[#allocation6 + $0xaf8] sm:$0xff]
    %v456 = vld [vmem:[#allocation6 + $0xb00] sm:$0xff]
    %v457 = vld [vmem:[#allocation6 + $0xb08] sm:$0xff]
    %v458 = vld [vmem:[#allocation6 + $0xb10] sm:$0xff]
    %v459 = vld [vmem:[#allocation6 + $0xb18] sm:$0xff]
    %v460 = vld [vmem:[#allocation6 + $0xb20] sm:$0xff]
    %v461 = vld [vmem:[#allocation6 + $0xb28] sm:$0xff]
    %v462 = vld [vmem:[#allocation6 + $0xb30] sm:$0xff]
    %v463 = vld [vmem:[#allocation6 + $0xb38] sm:$0xff]
    %v464 = vld [vmem:[#allocation6 + $0xb40] sm:$0xff]
    %v465 = vld [vmem:[#allocation6 + $0xb48] sm:$0xff]
    %v466 = vld [vmem:[#allocation6 + $0xb50] sm:$0xff]
    %v467 = vld [vmem:[#allocation6 + $0xb58] sm:$0xff]
    %v468 = vld [vmem:[#allocation6 + $0xb60] sm:$0xff]
    %v469 = vld [vmem:[#allocation6 + $0xb68] sm:$0xff]
    %v470 = vld [vmem:[#allocation6 + $0xb70] sm:$0xff]
    %v471 = vld [vmem:[#allocation6 + $0xb78] sm:$0xff]
    %v472 = vld [vmem:[#allocation6 + $0xb80] sm:$0xff]
    %v473 = vld [vmem:[#allocation6 + $0xb88] sm:$0xff]
    %v474 = vld [vmem:[#allocation6 + $0xb90] sm:$0xff]
    %v475 = vld [vmem:[#allocation6 + $0xb98] sm:$0xff]
    %v476 = vld [vmem:[#allocation6 + $0xba0] sm:$0xff]
    %v477 = vld [vmem:[#allocation6 + $0xba8] sm:$0xff]
    %v478 = vld [vmem:[#allocation6 + $0xbb0] sm:$0xff]
    %v479 = vld [vmem:[#allocation6 + $0xbb8] sm:$0xff]
    %v480 = vld [vmem:[#allocation6 + $0xbc0] sm:$0xff]
    %v481 = vld [vmem:[#allocation6 + $0xbc8] sm:$0xff]
    %v482 = vld [vmem:[#allocation6 + $0xbd0] sm:$0xff]
    %v483 = vld [vmem:[#allocation6 + $0xbd8] sm:$0xff]
    %v484 = vld [vmem:[#allocation6 + $0xbe0] sm:$0xff]
    %v485 = vld [vmem:[#allocation6 + $0xbe8] sm:$0xff]
    %v486 = vld [vmem:[#allocation6 + $0xbf0] sm:$0xff]
    %v487 = vld [vmem:[#allocation6 + $0xbf8] sm:$0xff]
    %v488 = vld [vmem:[#allocation6 + $0xc00] sm:$0xff]
    %v489 = vld [vmem:[#allocation6 + $0xc08] sm:$0xff]
    %v490 = vld [vmem:[#allocation6 + $0xc10] sm:$0xff]
    %v491 = vld [vmem:[#allocation6 + $0xc18] sm:$0xff]
    %v492 = vld [vmem:[#allocation6 + $0xc20] sm:$0xff]
    %v493 = vld [vmem:[#allocation6 + $0xc28] sm:$0xff]
    %v494 = vld [vmem:[#allocation6 + $0xc30] sm:$0xff]
    %v495 = vld [vmem:[#allocation6 + $0xc38] sm:$0xff]
    %v496 = vld [vmem:[#allocation6 + $0xc40] sm:$0xff]
    %v497 = vld [vmem:[#allocation6 + $0xc48] sm:$0xff]
    %v498 = vld [vmem:[#allocation6 + $0xc50] sm:$0xff]
    %v499 = vld [vmem:[#allocation6 + $0xc58] sm:$0xff]
    %v500 = vld [vmem:[#allocation6 + $0xc60] sm:$0xff]
    %v501 = vld [vmem:[#allocation6 + $0xc68] sm:$0xff]
    %v502 = vld [vmem:[#allocation6 + $0xc70] sm:$0xff]
    %v503 = vld [vmem:[#allocation6 + $0xc78] sm:$0xff]
    %v504 = vld [vmem:[#allocation6 + $0xc80] sm:$0xff]
    %v505 = vld [vmem:[#allocation6 + $0xc88] sm:$0xff]
    %v506 = vld [vmem:[#allocation6 + $0xc90] sm:$0xff]
    %v507 = vld [vmem:[#allocation6 + $0xc98] sm:$0xff]
    %v508 = vld [vmem:[#allocation6 + $0xca0] sm:$0xff]
    %v509 = vld [vmem:[#allocation6 + $0xca8] sm:$0xff]
    %v510 = vld [vmem:[#allocation6 + $0xcb0] sm:$0xff]
    %v511 = vld [vmem:[#allocation6 + $0xcb8] sm:$0xff]
    %v512 = vld [vmem:[#allocation6 + $0xcc0] sm:$0xff]
    %v513 = vld [vmem:[#allocation6 + $0xcc8] sm:$0xff]
    %v514 = vld [vmem:[#allocation6 + $0xcd0] sm:$0xff]
    %v515 = vld [vmem:[#allocation6 + $0xcd8] sm:$0xff]
    %v516 = vld [vmem:[#allocation6 + $0xce0] sm:$0xff]
    %v517 = vld [vmem:[#allocation6 + $0xce8] sm:$0xff]
    %v518 = vld [vmem:[#allocation6 + $0xcf0] sm:$0xff]
    %v519 = vld [vmem:[#allocation6 + $0xcf8] sm:$0xff]
    %v520 = vld [vmem:[#allocation6 + $0xd00] sm:$0xff]
    %v521 = vld [vmem:[#allocation6 + $0xd08] sm:$0xff]
    %v522 = vld [vmem:[#allocation6 + $0xd10] sm:$0xff]
    %v523 = vld [vmem:[#allocation6 + $0xd18] sm:$0xff]
    %v524 = vld [vmem:[#allocation6 + $0xd20] sm:$0xff]
    %v525 = vld [vmem:[#allocation6 + $0xd28] sm:$0xff]
    %v526 = vld [vmem:[#allocation6 + $0xd30] sm:$0xff]
    %v527 = vld [vmem:[#allocation6 + $0xd38] sm:$0xff]
    %v528 = vld [vmem:[#allocation6 + $0xd40] sm:$0xff]
    %v529 = vld [vmem:[#allocation6 + $0xd48] sm:$0xff]
    %v530 = vld [vmem:[#allocation6 + $0xd50] sm:$0xff]
    %v531 = vld [vmem:[#allocation6 + $0xd58] sm:$0xff]
    %v532 = vld [vmem:[#allocation6 + $0xd60] sm:$0xff]
    %v533 = vld [vmem:[#allocation6 + $0xd68] sm:$0xff]
    %v534 = vld [vmem:[#allocation6 + $0xd70] sm:$0xff]
    %v535 = vld [vmem:[#allocation6 + $0xd78] sm:$0xff]
    %v536 = vld [vmem:[#allocation6 + $0xd80] sm:$0xff]
    %v537 = vld [vmem:[#allocation6 + $0xd88] sm:$0xff]
    %v538 = vld [vmem:[#allocation6 + $0xd90] sm:$0xff]
    %v539 = vld [vmem:[#allocation6 + $0xd98] sm:$0xff]
    %v540 = vld [vmem:[#allocation6 + $0xda0] sm:$0xff]
    %v541 = vld [vmem:[#allocation6 + $0xda8] sm:$0xff]
    %v542 = vld [vmem:[#allocation6 + $0xdb0] sm:$0xff]
    %v543 = vld [vmem:[#allocation6 + $0xdb8] sm:$0xff]
    %v544 = vld [vmem:[#allocation6 + $0xdc0] sm:$0xff]
    %v545 = vld [vmem:[#allocation6 + $0xdc8] sm:$0xff]
    %v546 = vld [vmem:[#allocation6 + $0xdd0] sm:$0xff]
    %v547 = vld [vmem:[#allocation6 + $0xdd8] sm:$0xff]
    %v548 = vld [vmem:[#allocation6 + $0xde0] sm:$0xff]
    %v549 = vld [vmem:[#allocation6 + $0xde8] sm:$0xff]
    %v550 = vld [vmem:[#allocation6 + $0xdf0] sm:$0xff]
    %v551 = vld [vmem:[#allocation6 + $0xdf8] sm:$0xff]
    %v552 = vld [vmem:[#allocation6 + $0xe00] sm:$0xff]
    %v553 = vld [vmem:[#allocation6 + $0xe08] sm:$0xff]
    %v554 = vld [vmem:[#allocation6 + $0xe10] sm:$0xff]
    %v555 = vld [vmem:[#allocation6 + $0xe18] sm:$0xff]
    %v556 = vld [vmem:[#allocation6 + $0xe20] sm:$0xff]
    %v557 = vld [vmem:[#allocation6 + $0xe28] sm:$0xff]
    %v558 = vld [vmem:[#allocation6 + $0xe30] sm:$0xff]
    %v559 = vld [vmem:[#allocation6 + $0xe38] sm:$0xff]
    %v560 = vld [vmem:[#allocation6 + $0xe40] sm:$0xff]
    %v561 = vld [vmem:[#allocation6 + $0xe48] sm:$0xff]
    %v562 = vld [vmem:[#allocation6 + $0xe50] sm:$0xff]
    %v563 = vld [vmem:[#allocation6 + $0xe58] sm:$0xff]
    %v564 = vld [vmem:[#allocation6 + $0xe60] sm:$0xff]
    %v565 = vld [vmem:[#allocation6 + $0xe68] sm:$0xff]
    %v566 = vld [vmem:[#allocation6 + $0xe70] sm:$0xff]
    %v567 = vld [vmem:[#allocation6 + $0xe78] sm:$0xff]
    %v568 = vld [vmem:[#allocation6 + $0xe80] sm:$0xff]
    %v569 = vld [vmem:[#allocation6 + $0xe88] sm:$0xff]
    %v570 = vld [vmem:[#allocation6 + $0xe90] sm:$0xff]
    %v571 = vld [vmem:[#allocation6 + $0xe98] sm:$0xff]
    %v572 = vld [vmem:[#allocation6 + $0xea0] sm:$0xff]
    %v573 = vld [vmem:[#allocation6 + $0xea8] sm:$0xff]
    %v574 = vld [vmem:[#allocation6 + $0xeb0] sm:$0xff]
    %v575 = vld [vmem:[#allocation6 + $0xeb8] sm:$0xff]
    %v576 = vld [vmem:[#allocation6 + $0xec0] sm:$0xff]
    %v577 = vld [vmem:[#allocation6 + $0xec8] sm:$0xff]
    %v578 = vld [vmem:[#allocation6 + $0xed0] sm:$0xff]
    %v579 = vld [vmem:[#allocation6 + $0xed8] sm:$0xff]
    %v580 = vld [vmem:[#allocation6 + $0xee0] sm:$0xff]
    %v581 = vld [vmem:[#allocation6 + $0xee8] sm:$0xff]
    %v582 = vld [vmem:[#allocation6 + $0xef0] sm:$0xff]
    %v583 = vld [vmem:[#allocation6 + $0xef8] sm:$0xff]
    %v584 = vld [vmem:[#allocation6 + $0xf00] sm:$0xff]
    %v585 = vld [vmem:[#allocation6 + $0xf08] sm:$0xff]
    %v586 = vld [vmem:[#allocation6 + $0xf10] sm:$0xff]
    %v587 = vld [vmem:[#allocation6 + $0xf18] sm:$0xff]
    %v588 = vld [vmem:[#allocation6 + $0xf20] sm:$0xff]
    %v589 = vld [vmem:[#allocation6 + $0xf28] sm:$0xff]
    %v590 = vld [vmem:[#allocation6 + $0xf30] sm:$0xff]
    %v591 = vld [vmem:[#allocation6 + $0xf38] sm:$0xff]
    %v592 = vld [vmem:[#allocation6 + $0xf40] sm:$0xff]
    %v593 = vld [vmem:[#allocation6 + $0xf48] sm:$0xff]
    %v594 = vld [vmem:[#allocation6 + $0xf50] sm:$0xff]
    %v595 = vld [vmem:[#allocation6 + $0xf58] sm:$0xff]
    %v596 = vld [vmem:[#allocation6 + $0xf60] sm:$0xff]
    %v597 = vld [vmem:[#allocation6 + $0xf68] sm:$0xff]
    %v598 = vld [vmem:[#allocation6 + $0xf70] sm:$0xff]
    %v599 = vld [vmem:[#allocation6 + $0xf78] sm:$0xff]
    %v600 = vld [vmem:[#allocation6 + $0xf80] sm:$0xff]
    %v601 = vld [vmem:[#allocation6 + $0xf88] sm:$0xff]
    %v602 = vld [vmem:[#allocation6 + $0xf90] sm:$0xff]
    %v603 = vld [vmem:[#allocation6 + $0xf98] sm:$0xff]
    %v604 = vld [vmem:[#allocation6 + $0xfa0] sm:$0xff]
    %v605 = vld [vmem:[#allocation6 + $0xfa8] sm:$0xff]
    %v606 = vld [vmem:[#allocation6 + $0xfb0] sm:$0xff]
    %v607 = vld [vmem:[#allocation6 + $0xfb8] sm:$0xff]
    %v608 = vld [vmem:[#allocation6 + $0xfc0] sm:$0xff]
    %v609 = vld [vmem:[#allocation6 + $0xfc8] sm:$0xff]
    %v610 = vld [vmem:[#allocation6 + $0xfd0] sm:$0xff]
    %v611 = vld [vmem:[#allocation6 + $0xfd8] sm:$0xff]
    %v612 = vld [vmem:[#allocation6 + $0xfe0] sm:$0xff]
    %v613 = vld [vmem:[#allocation6 + $0xfe8] sm:$0xff]
    %v614 = vld [vmem:[#allocation6 + $0xff0] sm:$0xff]
    %v615 = vld [vmem:[#allocation6 + $0xff8] sm:$0xff]
    %v624 = vunpack.c.l.b16 %v96
    %v625 = vunpack.c.h.b16 %v96
    %v626 = vunpack.c.l.b16 %v97
    %v627 = vunpack.c.h.b16 %v97
    %v628 = vunpack.c.l.b16 %v98
    %v629 = vunpack.c.h.b16 %v98
    %v630 = vunpack.c.l.b16 %v99
    %v631 = vunpack.c.h.b16 %v99
    %v632 = vunpack.c.l.b16 %v100
    %v633 = vunpack.c.h.b16 %v100
    %v634 = vunpack.c.l.b16 %v101
    %v635 = vunpack.c.h.b16 %v101
    %v636 = vunpack.c.l.b16 %v102
    %v637 = vunpack.c.h.b16 %v102
    %v638 = vunpack.c.l.b16 %v103
    %v639 = vunpack.c.h.b16 %v103
    %v640 = vpack.c.b16 %v632, %v624
    %v641 = vpack.c.b16 %v633, %v625
    %v642 = vpack.c.b16 %v634, %v626
    %v643 = vpack.c.b16 %v635, %v627
    %v644 = vpack.c.b16 %v636, %v628
    %v645 = vpack.c.b16 %v637, %v629
    %v646 = vpack.c.b16 %v638, %v630
    %v647 = vpack.c.b16 %v639, %v631
    %v1168 = vunpack.c.l.b16 %v104
    %v1169 = vunpack.c.h.b16 %v104
    %v1170 = vunpack.c.l.b16 %v105
    %v1171 = vunpack.c.h.b16 %v105
    %v1172 = vunpack.c.l.b16 %v106
    %v1173 = vunpack.c.h.b16 %v106
    %v1174 = vunpack.c.l.b16 %v107
    %v1175 = vunpack.c.h.b16 %v107
    %v1176 = vunpack.c.l.b16 %v108
    %v1177 = vunpack.c.h.b16 %v108
    %v1178 = vunpack.c.l.b16 %v109
    %v1179 = vunpack.c.h.b16 %v109
    %v1180 = vunpack.c.l.b16 %v110
    %v1181 = vunpack.c.h.b16 %v110
    %v1182 = vunpack.c.l.b16 %v111
    %v1183 = vunpack.c.h.b16 %v111
    %v1184 = vunpack.c.l.b16 %v112
    %v1185 = vunpack.c.h.b16 %v112
    %v1186 = vunpack.c.l.b16 %v113
    %v1187 = vunpack.c.h.b16 %v113
    %v1188 = vunpack.c.l.b16 %v114
    %v1189 = vunpack.c.h.b16 %v114
    %v1190 = vunpack.c.l.b16 %v115
    %v1191 = vunpack.c.h.b16 %v115
    %v1192 = vunpack.c.l.b16 %v116
    %v1193 = vunpack.c.h.b16 %v116
    %v1194 = vunpack.c.l.b16 %v117
    %v1195 = vunpack.c.h.b16 %v117
    %v1196 = vunpack.c.l.b16 %v118
    %v1197 = vunpack.c.h.b16 %v118
    %v1198 = vunpack.c.l.b16 %v119
    %v1199 = vunpack.c.h.b16 %v119
    %v1200 = vunpack.c.l.b16 %v120
    %v1201 = vunpack.c.h.b16 %v120
    %v1202 = vunpack.c.l.b16 %v121
    %v1203 = vunpack.c.h.b16 %v121
    %v1204 = vunpack.c.l.b16 %v122
    %v1205 = vunpack.c.h.b16 %v122
    %v1206 = vunpack.c.l.b16 %v123
    %v1207 = vunpack.c.h.b16 %v123
    %v1208 = vunpack.c.l.b16 %v124
    %v1209 = vunpack.c.h.b16 %v124
    %v1210 = vunpack.c.l.b16 %v125
    %v1211 = vunpack.c.h.b16 %v125
    %v1212 = vunpack.c.l.b16 %v126
    %v1213 = vunpack.c.h.b16 %v126
    %v1214 = vunpack.c.l.b16 %v127
    %v1215 = vunpack.c.h.b16 %v127
    %v1216 = vunpack.c.l.b16 %v128
    %v1217 = vunpack.c.h.b16 %v128
    %v1218 = vunpack.c.l.b16 %v129
    %v1219 = vunpack.c.h.b16 %v129
    %v1220 = vunpack.c.l.b16 %v130
    %v1221 = vunpack.c.h.b16 %v130
    %v1222 = vunpack.c.l.b16 %v131
    %v1223 = vunpack.c.h.b16 %v131
    %v1224 = vunpack.c.l.b16 %v132
    %v1225 = vunpack.c.h.b16 %v132
    %v1226 = vunpack.c.l.b16 %v133
    %v1227 = vunpack.c.h.b16 %v133
    %v1228 = vunpack.c.l.b16 %v134
    %v1229 = vunpack.c.h.b16 %v134
    %v1230 = vunpack.c.l.b16 %v135
    %v1231 = vunpack.c.h.b16 %v135
    %v1232 = vunpack.c.l.b16 %v136
    %v1233 = vunpack.c.h.b16 %v136
    %v1234 = vunpack.c.l.b16 %v137
    %v1235 = vunpack.c.h.b16 %v137
    %v1236 = vunpack.c.l.b16 %v138
    %v1237 = vunpack.c.h.b16 %v138
    %v1238 = vunpack.c.l.b16 %v139
    %v1239 = vunpack.c.h.b16 %v139
    %v1240 = vunpack.c.l.b16 %v140
    %v1241 = vunpack.c.h.b16 %v140
    %v1242 = vunpack.c.l.b16 %v141
    %v1243 = vunpack.c.h.b16 %v141
    %v1244 = vunpack.c.l.b16 %v142
    %v1245 = vunpack.c.h.b16 %v142
    %v1246 = vunpack.c.l.b16 %v143
    %v1247 = vunpack.c.h.b16 %v143
    %v1248 = vunpack.c.l.b16 %v144
    %v1249 = vunpack.c.h.b16 %v144
    %v1250 = vunpack.c.l.b16 %v145
    %v1251 = vunpack.c.h.b16 %v145
    %v1252 = vunpack.c.l.b16 %v146
    %v1253 = vunpack.c.h.b16 %v146
    %v1254 = vunpack.c.l.b16 %v147
    %v1255 = vunpack.c.h.b16 %v147
    %v1256 = vunpack.c.l.b16 %v148
    %v1257 = vunpack.c.h.b16 %v148
    %v1258 = vunpack.c.l.b16 %v149
    %v1259 = vunpack.c.h.b16 %v149
    %v1260 = vunpack.c.l.b16 %v150
    %v1261 = vunpack.c.h.b16 %v150
    %v1262 = vunpack.c.l.b16 %v151
    %v1263 = vunpack.c.h.b16 %v151
    %v1264 = vunpack.c.l.b16 %v152
    %v1265 = vunpack.c.h.b16 %v152
    %v1266 = vunpack.c.l.b16 %v153
    %v1267 = vunpack.c.h.b16 %v153
    %v1268 = vunpack.c.l.b16 %v154
    %v1269 = vunpack.c.h.b16 %v154
    %v1270 = vunpack.c.l.b16 %v155
    %v1271 = vunpack.c.h.b16 %v155
    %v1272 = vunpack.c.l.b16 %v156
    %v1273 = vunpack.c.h.b16 %v156
    %v1274 = vunpack.c.l.b16 %v157
    %v1275 = vunpack.c.h.b16 %v157
    %v1276 = vunpack.c.l.b16 %v158
    %v1277 = vunpack.c.h.b16 %v158
    %v1278 = vunpack.c.l.b16 %v159
    %v1279 = vunpack.c.h.b16 %v159
    %v1280 = vunpack.c.l.b16 %v160
    %v1281 = vunpack.c.h.b16 %v160
    %v1282 = vunpack.c.l.b16 %v161
    %v1283 = vunpack.c.h.b16 %v161
    %v1284 = vunpack.c.l.b16 %v162
    %v1285 = vunpack.c.h.b16 %v162
    %v1286 = vunpack.c.l.b16 %v163
    %v1287 = vunpack.c.h.b16 %v163
    %v1288 = vunpack.c.l.b16 %v164
    %v1289 = vunpack.c.h.b16 %v164
    %v1290 = vunpack.c.l.b16 %v165
    %v1291 = vunpack.c.h.b16 %v165
    %v1292 = vunpack.c.l.b16 %v166
    %v1293 = vunpack.c.h.b16 %v166
    %v1294 = vunpack.c.l.b16 %v167
    %v1295 = vunpack.c.h.b16 %v167
    %v1296 = vunpack.c.l.b16 %v168
    %v1297 = vunpack.c.h.b16 %v168
    %v1298 = vunpack.c.l.b16 %v169
    %v1299 = vunpack.c.h.b16 %v169
    %v1300 = vunpack.c.l.b16 %v170
    %v1301 = vunpack.c.h.b16 %v170
    %v1302 = vunpack.c.l.b16 %v171
    %v1303 = vunpack.c.h.b16 %v171
    %v1304 = vunpack.c.l.b16 %v172
    %v1305 = vunpack.c.h.b16 %v172
    %v1306 = vunpack.c.l.b16 %v173
    %v1307 = vunpack.c.h.b16 %v173
    %v1308 = vunpack.c.l.b16 %v174
    %v1309 = vunpack.c.h.b16 %v174
    %v1310 = vunpack.c.l.b16 %v175
    %v1311 = vunpack.c.h.b16 %v175
    %v1312 = vunpack.c.l.b16 %v176
    %v1313 = vunpack.c.h.b16 %v176
    %v1314 = vunpack.c.l.b16 %v177
    %v1315 = vunpack.c.h.b16 %v177
    %v1316 = vunpack.c.l.b16 %v178
    %v1317 = vunpack.c.h.b16 %v178
    %v1318 = vunpack.c.l.b16 %v179
    %v1319 = vunpack.c.h.b16 %v179
    %v1320 = vunpack.c.l.b16 %v180
    %v1321 = vunpack.c.h.b16 %v180
    %v1322 = vunpack.c.l.b16 %v181
    %v1323 = vunpack.c.h.b16 %v181
    %v1324 = vunpack.c.l.b16 %v182
    %v1325 = vunpack.c.h.b16 %v182
    %v1326 = vunpack.c.l.b16 %v183
    %v1327 = vunpack.c.h.b16 %v183
    %v1328 = vunpack.c.l.b16 %v184
    %v1329 = vunpack.c.h.b16 %v184
    %v1330 = vunpack.c.l.b16 %v185
    %v1331 = vunpack.c.h.b16 %v185
    %v1332 = vunpack.c.l.b16 %v186
    %v1333 = vunpack.c.h.b16 %v186
    %v1334 = vunpack.c.l.b16 %v187
    %v1335 = vunpack.c.h.b16 %v187
    %v1336 = vunpack.c.l.b16 %v188
    %v1337 = vunpack.c.h.b16 %v188
    %v1338 = vunpack.c.l.b16 %v189
    %v1339 = vunpack.c.h.b16 %v189
    %v1340 = vunpack.c.l.b16 %v190
    %v1341 = vunpack.c.h.b16 %v190
    %v1342 = vunpack.c.l.b16 %v191
    %v1343 = vunpack.c.h.b16 %v191
    %v1344 = vunpack.c.l.b16 %v192
    %v1345 = vunpack.c.h.b16 %v192
    %v1346 = vunpack.c.l.b16 %v193
    %v1347 = vunpack.c.h.b16 %v193
    %v1348 = vunpack.c.l.b16 %v194
    %v1349 = vunpack.c.h.b16 %v194
    %v1350 = vunpack.c.l.b16 %v195
    %v1351 = vunpack.c.h.b16 %v195
    %v1352 = vunpack.c.l.b16 %v196
    %v1353 = vunpack.c.h.b16 %v196
    %v1354 = vunpack.c.l.b16 %v197
    %v1355 = vunpack.c.h.b16 %v197
    %v1356 = vunpack.c.l.b16 %v198
    %v1357 = vunpack.c.h.b16 %v198
    %v1358 = vunpack.c.l.b16 %v199
    %v1359 = vunpack.c.h.b16 %v199
    %v1360 = vunpack.c.l.b16 %v200
    %v1361 = vunpack.c.h.b16 %v200
    %v1362 = vunpack.c.l.b16 %v201
    %v1363 = vunpack.c.h.b16 %v201
    %v1364 = vunpack.c.l.b16 %v202
    %v1365 = vunpack.c.h.b16 %v202
    %v1366 = vunpack.c.l.b16 %v203
    %v1367 = vunpack.c.h.b16 %v203
    %v1368 = vunpack.c.l.b16 %v204
    %v1369 = vunpack.c.h.b16 %v204
    %v1370 = vunpack.c.l.b16 %v205
    %v1371 = vunpack.c.h.b16 %v205
    %v1372 = vunpack.c.l.b16 %v206
    %v1373 = vunpack.c.h.b16 %v206
    %v1374 = vunpack.c.l.b16 %v207
    %v1375 = vunpack.c.h.b16 %v207
    %v1376 = vunpack.c.l.b16 %v208
    %v1377 = vunpack.c.h.b16 %v208
    %v1378 = vunpack.c.l.b16 %v209
    %v1379 = vunpack.c.h.b16 %v209
    %v1380 = vunpack.c.l.b16 %v210
    %v1381 = vunpack.c.h.b16 %v210
    %v1382 = vunpack.c.l.b16 %v211
    %v1383 = vunpack.c.h.b16 %v211
    %v1384 = vunpack.c.l.b16 %v212
    %v1385 = vunpack.c.h.b16 %v212
    %v1386 = vunpack.c.l.b16 %v213
    %v1387 = vunpack.c.h.b16 %v213
    %v1388 = vunpack.c.l.b16 %v214
    %v1389 = vunpack.c.h.b16 %v214
    %v1390 = vunpack.c.l.b16 %v215
    %v1391 = vunpack.c.h.b16 %v215
    %v1392 = vunpack.c.l.b16 %v216
    %v1393 = vunpack.c.h.b16 %v216
    %v1394 = vunpack.c.l.b16 %v217
    %v1395 = vunpack.c.h.b16 %v217
    %v1396 = vunpack.c.l.b16 %v218
    %v1397 = vunpack.c.h.b16 %v218
    %v1398 = vunpack.c.l.b16 %v219
    %v1399 = vunpack.c.h.b16 %v219
    %v1400 = vunpack.c.l.b16 %v220
    %v1401 = vunpack.c.h.b16 %v220
    %v1402 = vunpack.c.l.b16 %v221
    %v1403 = vunpack.c.h.b16 %v221
    %v1404 = vunpack.c.l.b16 %v222
    %v1405 = vunpack.c.h.b16 %v222
    %v1406 = vunpack.c.l.b16 %v223
    %v1407 = vunpack.c.h.b16 %v223
    %v1408 = vunpack.c.l.b16 %v224
    %v1409 = vunpack.c.h.b16 %v224
    %v1410 = vunpack.c.l.b16 %v225
    %v1411 = vunpack.c.h.b16 %v225
    %v1412 = vunpack.c.l.b16 %v226
    %v1413 = vunpack.c.h.b16 %v226
    %v1414 = vunpack.c.l.b16 %v227
    %v1415 = vunpack.c.h.b16 %v227
    %v1416 = vunpack.c.l.b16 %v228
    %v1417 = vunpack.c.h.b16 %v228
    %v1418 = vunpack.c.l.b16 %v229
    %v1419 = vunpack.c.h.b16 %v229
    %v1420 = vunpack.c.l.b16 %v230
    %v1421 = vunpack.c.h.b16 %v230
    %v1422 = vunpack.c.l.b16 %v231
    %v1423 = vunpack.c.h.b16 %v231
    %v1424 = vunpack.c.l.b16 %v232
    %v1425 = vunpack.c.h.b16 %v232
    %v1426 = vunpack.c.l.b16 %v233
    %v1427 = vunpack.c.h.b16 %v233
    %v1428 = vunpack.c.l.b16 %v234
    %v1429 = vunpack.c.h.b16 %v234
    %v1430 = vunpack.c.l.b16 %v235
    %v1431 = vunpack.c.h.b16 %v235
    %v1432 = vunpack.c.l.b16 %v236
    %v1433 = vunpack.c.h.b16 %v236
    %v1434 = vunpack.c.l.b16 %v237
    %v1435 = vunpack.c.h.b16 %v237
    %v1436 = vunpack.c.l.b16 %v238
    %v1437 = vunpack.c.h.b16 %v238
    %v1438 = vunpack.c.l.b16 %v239
    %v1439 = vunpack.c.h.b16 %v239
    %v1440 = vunpack.c.l.b16 %v240
    %v1441 = vunpack.c.h.b16 %v240
    %v1442 = vunpack.c.l.b16 %v241
    %v1443 = vunpack.c.h.b16 %v241
    %v1444 = vunpack.c.l.b16 %v242
    %v1445 = vunpack.c.h.b16 %v242
    %v1446 = vunpack.c.l.b16 %v243
    %v1447 = vunpack.c.h.b16 %v243
    %v1448 = vunpack.c.l.b16 %v244
    %v1449 = vunpack.c.h.b16 %v244
    %v1450 = vunpack.c.l.b16 %v245
    %v1451 = vunpack.c.h.b16 %v245
    %v1452 = vunpack.c.l.b16 %v246
    %v1453 = vunpack.c.h.b16 %v246
    %v1454 = vunpack.c.l.b16 %v247
    %v1455 = vunpack.c.h.b16 %v247
    %v1456 = vunpack.c.l.b16 %v248
    %v1457 = vunpack.c.h.b16 %v248
    %v1458 = vunpack.c.l.b16 %v249
    %v1459 = vunpack.c.h.b16 %v249
    %v1460 = vunpack.c.l.b16 %v250
    %v1461 = vunpack.c.h.b16 %v250
    %v1462 = vunpack.c.l.b16 %v251
    %v1463 = vunpack.c.h.b16 %v251
    %v1464 = vunpack.c.l.b16 %v252
    %v1465 = vunpack.c.h.b16 %v252
    %v1466 = vunpack.c.l.b16 %v253
    %v1467 = vunpack.c.h.b16 %v253
    %v1468 = vunpack.c.l.b16 %v254
    %v1469 = vunpack.c.h.b16 %v254
    %v1470 = vunpack.c.l.b16 %v255
    %v1471 = vunpack.c.h.b16 %v255
    %v1472 = vunpack.c.l.b16 %v256
    %v1473 = vunpack.c.h.b16 %v256
    %v1474 = vunpack.c.l.b16 %v257
    %v1475 = vunpack.c.h.b16 %v257
    %v1476 = vunpack.c.l.b16 %v258
    %v1477 = vunpack.c.h.b16 %v258
    %v1478 = vunpack.c.l.b16 %v259
    %v1479 = vunpack.c.h.b16 %v259
    %v1480 = vunpack.c.l.b16 %v260
    %v1481 = vunpack.c.h.b16 %v260
    %v1482 = vunpack.c.l.b16 %v261
    %v1483 = vunpack.c.h.b16 %v261
    %v1484 = vunpack.c.l.b16 %v262
    %v1485 = vunpack.c.h.b16 %v262
    %v1486 = vunpack.c.l.b16 %v263
    %v1487 = vunpack.c.h.b16 %v263
    %v1488 = vunpack.c.l.b16 %v264
    %v1489 = vunpack.c.h.b16 %v264
    %v1490 = vunpack.c.l.b16 %v265
    %v1491 = vunpack.c.h.b16 %v265
    %v1492 = vunpack.c.l.b16 %v266
    %v1493 = vunpack.c.h.b16 %v266
    %v1494 = vunpack.c.l.b16 %v267
    %v1495 = vunpack.c.h.b16 %v267
    %v1496 = vunpack.c.l.b16 %v268
    %v1497 = vunpack.c.h.b16 %v268
    %v1498 = vunpack.c.l.b16 %v269
    %v1499 = vunpack.c.h.b16 %v269
    %v1500 = vunpack.c.l.b16 %v270
    %v1501 = vunpack.c.h.b16 %v270
    %v1502 = vunpack.c.l.b16 %v271
    %v1503 = vunpack.c.h.b16 %v271
    %v1504 = vunpack.c.l.b16 %v272
    %v1505 = vunpack.c.h.b16 %v272
    %v1506 = vunpack.c.l.b16 %v273
    %v1507 = vunpack.c.h.b16 %v273
    %v1508 = vunpack.c.l.b16 %v274
    %v1509 = vunpack.c.h.b16 %v274
    %v1510 = vunpack.c.l.b16 %v275
    %v1511 = vunpack.c.h.b16 %v275
    %v1512 = vunpack.c.l.b16 %v276
    %v1513 = vunpack.c.h.b16 %v276
    %v1514 = vunpack.c.l.b16 %v277
    %v1515 = vunpack.c.h.b16 %v277
    %v1516 = vunpack.c.l.b16 %v278
    %v1517 = vunpack.c.h.b16 %v278
    %v1518 = vunpack.c.l.b16 %v279
    %v1519 = vunpack.c.h.b16 %v279
    %v1520 = vunpack.c.l.b16 %v280
    %v1521 = vunpack.c.h.b16 %v280
    %v1522 = vunpack.c.l.b16 %v281
    %v1523 = vunpack.c.h.b16 %v281
    %v1524 = vunpack.c.l.b16 %v282
    %v1525 = vunpack.c.h.b16 %v282
    %v1526 = vunpack.c.l.b16 %v283
    %v1527 = vunpack.c.h.b16 %v283
    %v1528 = vunpack.c.l.b16 %v284
    %v1529 = vunpack.c.h.b16 %v284
    %v1530 = vunpack.c.l.b16 %v285
    %v1531 = vunpack.c.h.b16 %v285
    %v1532 = vunpack.c.l.b16 %v286
    %v1533 = vunpack.c.h.b16 %v286
    %v1534 = vunpack.c.l.b16 %v287
    %v1535 = vunpack.c.h.b16 %v287
    %v1536 = vunpack.c.l.b16 %v288
    %v1537 = vunpack.c.h.b16 %v288
    %v1538 = vunpack.c.l.b16 %v289
    %v1539 = vunpack.c.h.b16 %v289
    %v1540 = vunpack.c.l.b16 %v290
    %v1541 = vunpack.c.h.b16 %v290
    %v1542 = vunpack.c.l.b16 %v291
    %v1543 = vunpack.c.h.b16 %v291
    %v1544 = vunpack.c.l.b16 %v292
    %v1545 = vunpack.c.h.b16 %v292
    %v1546 = vunpack.c.l.b16 %v293
    %v1547 = vunpack.c.h.b16 %v293
    %v1548 = vunpack.c.l.b16 %v294
    %v1549 = vunpack.c.h.b16 %v294
    %v1550 = vunpack.c.l.b16 %v295
    %v1551 = vunpack.c.h.b16 %v295
    %v1552 = vunpack.c.l.b16 %v296
    %v1553 = vunpack.c.h.b16 %v296
    %v1554 = vunpack.c.l.b16 %v297
    %v1555 = vunpack.c.h.b16 %v297
    %v1556 = vunpack.c.l.b16 %v298
    %v1557 = vunpack.c.h.b16 %v298
    %v1558 = vunpack.c.l.b16 %v299
    %v1559 = vunpack.c.h.b16 %v299
    %v1560 = vunpack.c.l.b16 %v300
    %v1561 = vunpack.c.h.b16 %v300
    %v1562 = vunpack.c.l.b16 %v301
    %v1563 = vunpack.c.h.b16 %v301
    %v1564 = vunpack.c.l.b16 %v302
    %v1565 = vunpack.c.h.b16 %v302
    %v1566 = vunpack.c.l.b16 %v303
    %v1567 = vunpack.c.h.b16 %v303
    %v1568 = vunpack.c.l.b16 %v304
    %v1569 = vunpack.c.h.b16 %v304
    %v1570 = vunpack.c.l.b16 %v305
    %v1571 = vunpack.c.h.b16 %v305
    %v1572 = vunpack.c.l.b16 %v306
    %v1573 = vunpack.c.h.b16 %v306
    %v1574 = vunpack.c.l.b16 %v307
    %v1575 = vunpack.c.h.b16 %v307
    %v1576 = vunpack.c.l.b16 %v308
    %v1577 = vunpack.c.h.b16 %v308
    %v1578 = vunpack.c.l.b16 %v309
    %v1579 = vunpack.c.h.b16 %v309
    %v1580 = vunpack.c.l.b16 %v310
    %v1581 = vunpack.c.h.b16 %v310
    %v1582 = vunpack.c.l.b16 %v311
    %v1583 = vunpack.c.h.b16 %v311
    %v1584 = vunpack.c.l.b16 %v312
    %v1585 = vunpack.c.h.b16 %v312
    %v1586 = vunpack.c.l.b16 %v313
    %v1587 = vunpack.c.h.b16 %v313
    %v1588 = vunpack.c.l.b16 %v314
    %v1589 = vunpack.c.h.b16 %v314
    %v1590 = vunpack.c.l.b16 %v315
    %v1591 = vunpack.c.h.b16 %v315
    %v1592 = vunpack.c.l.b16 %v316
    %v1593 = vunpack.c.h.b16 %v316
    %v1594 = vunpack.c.l.b16 %v317
    %v1595 = vunpack.c.h.b16 %v317
    %v1596 = vunpack.c.l.b16 %v318
    %v1597 = vunpack.c.h.b16 %v318
    %v1598 = vunpack.c.l.b16 %v319
    %v1599 = vunpack.c.h.b16 %v319
    %v1600 = vunpack.c.l.b16 %v320
    %v1601 = vunpack.c.h.b16 %v320
    %v1602 = vunpack.c.l.b16 %v321
    %v1603 = vunpack.c.h.b16 %v321
    %v1604 = vunpack.c.l.b16 %v322
    %v1605 = vunpack.c.h.b16 %v322
    %v1606 = vunpack.c.l.b16 %v323
    %v1607 = vunpack.c.h.b16 %v323
    %v1608 = vunpack.c.l.b16 %v324
    %v1609 = vunpack.c.h.b16 %v324
    %v1610 = vunpack.c.l.b16 %v325
    %v1611 = vunpack.c.h.b16 %v325
    %v1612 = vunpack.c.l.b16 %v326
    %v1613 = vunpack.c.h.b16 %v326
    %v1614 = vunpack.c.l.b16 %v327
    %v1615 = vunpack.c.h.b16 %v327
    %v1616 = vunpack.c.l.b16 %v328
    %v1617 = vunpack.c.h.b16 %v328
    %v1618 = vunpack.c.l.b16 %v329
    %v1619 = vunpack.c.h.b16 %v329
    %v1620 = vunpack.c.l.b16 %v330
    %v1621 = vunpack.c.h.b16 %v330
    %v1622 = vunpack.c.l.b16 %v331
    %v1623 = vunpack.c.h.b16 %v331
    %v1624 = vunpack.c.l.b16 %v332
    %v1625 = vunpack.c.h.b16 %v332
    %v1626 = vunpack.c.l.b16 %v333
    %v1627 = vunpack.c.h.b16 %v333
    %v1628 = vunpack.c.l.b16 %v334
    %v1629 = vunpack.c.h.b16 %v334
    %v1630 = vunpack.c.l.b16 %v335
    %v1631 = vunpack.c.h.b16 %v335
    %v1632 = vunpack.c.l.b16 %v336
    %v1633 = vunpack.c.h.b16 %v336
    %v1634 = vunpack.c.l.b16 %v337
    %v1635 = vunpack.c.h.b16 %v337
    %v1636 = vunpack.c.l.b16 %v338
    %v1637 = vunpack.c.h.b16 %v338
    %v1638 = vunpack.c.l.b16 %v339
    %v1639 = vunpack.c.h.b16 %v339
    %v1640 = vunpack.c.l.b16 %v340
    %v1641 = vunpack.c.h.b16 %v340
    %v1642 = vunpack.c.l.b16 %v341
    %v1643 = vunpack.c.h.b16 %v341
    %v1644 = vunpack.c.l.b16 %v342
    %v1645 = vunpack.c.h.b16 %v342
    %v1646 = vunpack.c.l.b16 %v343
    %v1647 = vunpack.c.h.b16 %v343
    %v1648 = vunpack.c.l.b16 %v344
    %v1649 = vunpack.c.h.b16 %v344
    %v1650 = vunpack.c.l.b16 %v345
    %v1651 = vunpack.c.h.b16 %v345
    %v1652 = vunpack.c.l.b16 %v346
    %v1653 = vunpack.c.h.b16 %v346
    %v1654 = vunpack.c.l.b16 %v347
    %v1655 = vunpack.c.h.b16 %v347
    %v1656 = vunpack.c.l.b16 %v348
    %v1657 = vunpack.c.h.b16 %v348
    %v1658 = vunpack.c.l.b16 %v349
    %v1659 = vunpack.c.h.b16 %v349
    %v1660 = vunpack.c.l.b16 %v350
    %v1661 = vunpack.c.h.b16 %v350
    %v1662 = vunpack.c.l.b16 %v351
    %v1663 = vunpack.c.h.b16 %v351
    %v1664 = vunpack.c.l.b16 %v352
    %v1665 = vunpack.c.h.b16 %v352
    %v1666 = vunpack.c.l.b16 %v353
    %v1667 = vunpack.c.h.b16 %v353
    %v1668 = vunpack.c.l.b16 %v354
    %v1669 = vunpack.c.h.b16 %v354
    %v1670 = vunpack.c.l.b16 %v355
    %v1671 = vunpack.c.h.b16 %v355
    %v1672 = vunpack.c.l.b16 %v356
    %v1673 = vunpack.c.h.b16 %v356
    %v1674 = vunpack.c.l.b16 %v357
    %v1675 = vunpack.c.h.b16 %v357
    %v1676 = vunpack.c.l.b16 %v358
    %v1677 = vunpack.c.h.b16 %v358
    %v1678 = vunpack.c.l.b16 %v359
    %v1679 = vunpack.c.h.b16 %v359
    %v1680 = vunpack.c.l.b16 %v360
    %v1681 = vunpack.c.h.b16 %v360
    %v1682 = vunpack.c.l.b16 %v361
    %v1683 = vunpack.c.h.b16 %v361
    %v1684 = vunpack.c.l.b16 %v362
    %v1685 = vunpack.c.h.b16 %v362
    %v1686 = vunpack.c.l.b16 %v363
    %v1687 = vunpack.c.h.b16 %v363
    %v1688 = vunpack.c.l.b16 %v364
    %v1689 = vunpack.c.h.b16 %v364
    %v1690 = vunpack.c.l.b16 %v365
    %v1691 = vunpack.c.h.b16 %v365
    %v1692 = vunpack.c.l.b16 %v366
    %v1693 = vunpack.c.h.b16 %v366
    %v1694 = vunpack.c.l.b16 %v367
    %v1695 = vunpack.c.h.b16 %v367
    %v1696 = vunpack.c.l.b16 %v368
    %v1697 = vunpack.c.h.b16 %v368
    %v1698 = vunpack.c.l.b16 %v369
    %v1699 = vunpack.c.h.b16 %v369
    %v1700 = vunpack.c.l.b16 %v370
    %v1701 = vunpack.c.h.b16 %v370
    %v1702 = vunpack.c.l.b16 %v371
    %v1703 = vunpack.c.h.b16 %v371
    %v1704 = vunpack.c.l.b16 %v372
    %v1705 = vunpack.c.h.b16 %v372
    %v1706 = vunpack.c.l.b16 %v373
    %v1707 = vunpack.c.h.b16 %v373
    %v1708 = vunpack.c.l.b16 %v374
    %v1709 = vunpack.c.h.b16 %v374
    %v1710 = vunpack.c.l.b16 %v375
    %v1711 = vunpack.c.h.b16 %v375
    %v1712 = vunpack.c.l.b16 %v376
    %v1713 = vunpack.c.h.b16 %v376
    %v1714 = vunpack.c.l.b16 %v377
    %v1715 = vunpack.c.h.b16 %v377
    %v1716 = vunpack.c.l.b16 %v378
    %v1717 = vunpack.c.h.b16 %v378
    %v1718 = vunpack.c.l.b16 %v379
    %v1719 = vunpack.c.h.b16 %v379
    %v1720 = vunpack.c.l.b16 %v380
    %v1721 = vunpack.c.h.b16 %v380
    %v1722 = vunpack.c.l.b16 %v381
    %v1723 = vunpack.c.h.b16 %v381
    %v1724 = vunpack.c.l.b16 %v382
    %v1725 = vunpack.c.h.b16 %v382
    %v1726 = vunpack.c.l.b16 %v383
    %v1727 = vunpack.c.h.b16 %v383
    %v1728 = vunpack.c.l.b16 %v384
    %v1729 = vunpack.c.h.b16 %v384
    %v1730 = vunpack.c.l.b16 %v385
    %v1731 = vunpack.c.h.b16 %v385
    %v1732 = vunpack.c.l.b16 %v386
    %v1733 = vunpack.c.h.b16 %v386
    %v1734 = vunpack.c.l.b16 %v387
    %v1735 = vunpack.c.h.b16 %v387
    %v1736 = vunpack.c.l.b16 %v388
    %v1737 = vunpack.c.h.b16 %v388
    %v1738 = vunpack.c.l.b16 %v389
    %v1739 = vunpack.c.h.b16 %v389
    %v1740 = vunpack.c.l.b16 %v390
    %v1741 = vunpack.c.h.b16 %v390
    %v1742 = vunpack.c.l.b16 %v391
    %v1743 = vunpack.c.h.b16 %v391
    %v1744 = vunpack.c.l.b16 %v392
    %v1745 = vunpack.c.h.b16 %v392
    %v1746 = vunpack.c.l.b16 %v393
    %v1747 = vunpack.c.h.b16 %v393
    %v1748 = vunpack.c.l.b16 %v394
    %v1749 = vunpack.c.h.b16 %v394
    %v1750 = vunpack.c.l.b16 %v395
    %v1751 = vunpack.c.h.b16 %v395
    %v1752 = vunpack.c.l.b16 %v396
    %v1753 = vunpack.c.h.b16 %v396
    %v1754 = vunpack.c.l.b16 %v397
    %v1755 = vunpack.c.h.b16 %v397
    %v1756 = vunpack.c.l.b16 %v398
    %v1757 = vunpack.c.h.b16 %v398
    %v1758 = vunpack.c.l.b16 %v399
    %v1759 = vunpack.c.h.b16 %v399
    %v1760 = vunpack.c.l.b16 %v400
    %v1761 = vunpack.c.h.b16 %v400
    %v1762 = vunpack.c.l.b16 %v401
    %v1763 = vunpack.c.h.b16 %v401
    %v1764 = vunpack.c.l.b16 %v402
    %v1765 = vunpack.c.h.b16 %v402
    %v1766 = vunpack.c.l.b16 %v403
    %v1767 = vunpack.c.h.b16 %v403
    %v1768 = vunpack.c.l.b16 %v404
    %v1769 = vunpack.c.h.b16 %v404
    %v1770 = vunpack.c.l.b16 %v405
    %v1771 = vunpack.c.h.b16 %v405
    %v1772 = vunpack.c.l.b16 %v406
    %v1773 = vunpack.c.h.b16 %v406
    %v1774 = vunpack.c.l.b16 %v407
    %v1775 = vunpack.c.h.b16 %v407
    %v1776 = vunpack.c.l.b16 %v408
    %v1777 = vunpack.c.h.b16 %v408
    %v1778 = vunpack.c.l.b16 %v409
    %v1779 = vunpack.c.h.b16 %v409
    %v1780 = vunpack.c.l.b16 %v410
    %v1781 = vunpack.c.h.b16 %v410
    %v1782 = vunpack.c.l.b16 %v411
    %v1783 = vunpack.c.h.b16 %v411
    %v1784 = vunpack.c.l.b16 %v412
    %v1785 = vunpack.c.h.b16 %v412
    %v1786 = vunpack.c.l.b16 %v413
    %v1787 = vunpack.c.h.b16 %v413
    %v1788 = vunpack.c.l.b16 %v414
    %v1789 = vunpack.c.h.b16 %v414
    %v1790 = vunpack.c.l.b16 %v415
    %v1791 = vunpack.c.h.b16 %v415
    %v1792 = vunpack.c.l.b16 %v416
    %v1793 = vunpack.c.h.b16 %v416
    %v1794 = vunpack.c.l.b16 %v417
    %v1795 = vunpack.c.h.b16 %v417
    %v1796 = vunpack.c.l.b16 %v418
    %v1797 = vunpack.c.h.b16 %v418
    %v1798 = vunpack.c.l.b16 %v419
    %v1799 = vunpack.c.h.b16 %v419
    %v1800 = vunpack.c.l.b16 %v420
    %v1801 = vunpack.c.h.b16 %v420
    %v1802 = vunpack.c.l.b16 %v421
    %v1803 = vunpack.c.h.b16 %v421
    %v1804 = vunpack.c.l.b16 %v422
    %v1805 = vunpack.c.h.b16 %v422
    %v1806 = vunpack.c.l.b16 %v423
    %v1807 = vunpack.c.h.b16 %v423
    %v1808 = vunpack.c.l.b16 %v424
    %v1809 = vunpack.c.h.b16 %v424
    %v1810 = vunpack.c.l.b16 %v425
    %v1811 = vunpack.c.h.b16 %v425
    %v1812 = vunpack.c.l.b16 %v426
    %v1813 = vunpack.c.h.b16 %v426
    %v1814 = vunpack.c.l.b16 %v427
    %v1815 = vunpack.c.h.b16 %v427
    %v1816 = vunpack.c.l.b16 %v428
    %v1817 = vunpack.c.h.b16 %v428
    %v1818 = vunpack.c.l.b16 %v429
    %v1819 = vunpack.c.h.b16 %v429
    %v1820 = vunpack.c.l.b16 %v430
    %v1821 = vunpack.c.h.b16 %v430
    %v1822 = vunpack.c.l.b16 %v431
    %v1823 = vunpack.c.h.b16 %v431
    %v1824 = vunpack.c.l.b16 %v432
    %v1825 = vunpack.c.h.b16 %v432
    %v1826 = vunpack.c.l.b16 %v433
    %v1827 = vunpack.c.h.b16 %v433
    %v1828 = vunpack.c.l.b16 %v434
    %v1829 = vunpack.c.h.b16 %v434
    %v1830 = vunpack.c.l.b16 %v435
    %v1831 = vunpack.c.h.b16 %v435
    %v1832 = vunpack.c.l.b16 %v436
    %v1833 = vunpack.c.h.b16 %v436
    %v1834 = vunpack.c.l.b16 %v437
    %v1835 = vunpack.c.h.b16 %v437
    %v1836 = vunpack.c.l.b16 %v438
    %v1837 = vunpack.c.h.b16 %v438
    %v1838 = vunpack.c.l.b16 %v439
    %v1839 = vunpack.c.h.b16 %v439
    %v1840 = vunpack.c.l.b16 %v440
    %v1841 = vunpack.c.h.b16 %v440
    %v1842 = vunpack.c.l.b16 %v441
    %v1843 = vunpack.c.h.b16 %v441
    %v1844 = vunpack.c.l.b16 %v442
    %v1845 = vunpack.c.h.b16 %v442
    %v1846 = vunpack.c.l.b16 %v443
    %v1847 = vunpack.c.h.b16 %v443
    %v1848 = vunpack.c.l.b16 %v444
    %v1849 = vunpack.c.h.b16 %v444
    %v1850 = vunpack.c.l.b16 %v445
    %v1851 = vunpack.c.h.b16 %v445
    %v1852 = vunpack.c.l.b16 %v446
    %v1853 = vunpack.c.h.b16 %v446
    %v1854 = vunpack.c.l.b16 %v447
    %v1855 = vunpack.c.h.b16 %v447
    %v1856 = vunpack.c.l.b16 %v448
    %v1857 = vunpack.c.h.b16 %v448
    %v1858 = vunpack.c.l.b16 %v449
    %v1859 = vunpack.c.h.b16 %v449
    %v1860 = vunpack.c.l.b16 %v450
    %v1861 = vunpack.c.h.b16 %v450
    %v1862 = vunpack.c.l.b16 %v451
    %v1863 = vunpack.c.h.b16 %v451
    %v1864 = vunpack.c.l.b16 %v452
    %v1865 = vunpack.c.h.b16 %v452
    %v1866 = vunpack.c.l.b16 %v453
    %v1867 = vunpack.c.h.b16 %v453
    %v1868 = vunpack.c.l.b16 %v454
    %v1869 = vunpack.c.h.b16 %v454
    %v1870 = vunpack.c.l.b16 %v455
    %v1871 = vunpack.c.h.b16 %v455
    %v1872 = vunpack.c.l.b16 %v456
    %v1873 = vunpack.c.h.b16 %v456
    %v1874 = vunpack.c.l.b16 %v457
    %v1875 = vunpack.c.h.b16 %v457
    %v1876 = vunpack.c.l.b16 %v458
    %v1877 = vunpack.c.h.b16 %v458
    %v1878 = vunpack.c.l.b16 %v459
    %v1879 = vunpack.c.h.b16 %v459
    %v1880 = vunpack.c.l.b16 %v460
    %v1881 = vunpack.c.h.b16 %v460
    %v1882 = vunpack.c.l.b16 %v461
    %v1883 = vunpack.c.h.b16 %v461
    %v1884 = vunpack.c.l.b16 %v462
    %v1885 = vunpack.c.h.b16 %v462
    %v1886 = vunpack.c.l.b16 %v463
    %v1887 = vunpack.c.h.b16 %v463
    %v1888 = vunpack.c.l.b16 %v464
    %v1889 = vunpack.c.h.b16 %v464
    %v1890 = vunpack.c.l.b16 %v465
    %v1891 = vunpack.c.h.b16 %v465
    %v1892 = vunpack.c.l.b16 %v466
    %v1893 = vunpack.c.h.b16 %v466
    %v1894 = vunpack.c.l.b16 %v467
    %v1895 = vunpack.c.h.b16 %v467
    %v1896 = vunpack.c.l.b16 %v468
    %v1897 = vunpack.c.h.b16 %v468
    %v1898 = vunpack.c.l.b16 %v469
    %v1899 = vunpack.c.h.b16 %v469
    %v1900 = vunpack.c.l.b16 %v470
    %v1901 = vunpack.c.h.b16 %v470
    %v1902 = vunpack.c.l.b16 %v471
    %v1903 = vunpack.c.h.b16 %v471
    %v1904 = vunpack.c.l.b16 %v472
    %v1905 = vunpack.c.h.b16 %v472
    %v1906 = vunpack.c.l.b16 %v473
    %v1907 = vunpack.c.h.b16 %v473
    %v1908 = vunpack.c.l.b16 %v474
    %v1909 = vunpack.c.h.b16 %v474
    %v1910 = vunpack.c.l.b16 %v475
    %v1911 = vunpack.c.h.b16 %v475
    %v1912 = vunpack.c.l.b16 %v476
    %v1913 = vunpack.c.h.b16 %v476
    %v1914 = vunpack.c.l.b16 %v477
    %v1915 = vunpack.c.h.b16 %v477
    %v1916 = vunpack.c.l.b16 %v478
    %v1917 = vunpack.c.h.b16 %v478
    %v1918 = vunpack.c.l.b16 %v479
    %v1919 = vunpack.c.h.b16 %v479
    %v1920 = vunpack.c.l.b16 %v480
    %v1921 = vunpack.c.h.b16 %v480
    %v1922 = vunpack.c.l.b16 %v481
    %v1923 = vunpack.c.h.b16 %v481
    %v1924 = vunpack.c.l.b16 %v482
    %v1925 = vunpack.c.h.b16 %v482
    %v1926 = vunpack.c.l.b16 %v483
    %v1927 = vunpack.c.h.b16 %v483
    %v1928 = vunpack.c.l.b16 %v484
    %v1929 = vunpack.c.h.b16 %v484
    %v1930 = vunpack.c.l.b16 %v485
    %v1931 = vunpack.c.h.b16 %v485
    %v1932 = vunpack.c.l.b16 %v486
    %v1933 = vunpack.c.h.b16 %v486
    %v1934 = vunpack.c.l.b16 %v487
    %v1935 = vunpack.c.h.b16 %v487
    %v1936 = vunpack.c.l.b16 %v488
    %v1937 = vunpack.c.h.b16 %v488
    %v1938 = vunpack.c.l.b16 %v489
    %v1939 = vunpack.c.h.b16 %v489
    %v1940 = vunpack.c.l.b16 %v490
    %v1941 = vunpack.c.h.b16 %v490
    %v1942 = vunpack.c.l.b16 %v491
    %v1943 = vunpack.c.h.b16 %v491
    %v1944 = vunpack.c.l.b16 %v492
    %v1945 = vunpack.c.h.b16 %v492
    %v1946 = vunpack.c.l.b16 %v493
    %v1947 = vunpack.c.h.b16 %v493
    %v1948 = vunpack.c.l.b16 %v494
    %v1949 = vunpack.c.h.b16 %v494
    %v1950 = vunpack.c.l.b16 %v495
    %v1951 = vunpack.c.h.b16 %v495
    %v1952 = vunpack.c.l.b16 %v496
    %v1953 = vunpack.c.h.b16 %v496
    %v1954 = vunpack.c.l.b16 %v497
    %v1955 = vunpack.c.h.b16 %v497
    %v1956 = vunpack.c.l.b16 %v498
    %v1957 = vunpack.c.h.b16 %v498
    %v1958 = vunpack.c.l.b16 %v499
    %v1959 = vunpack.c.h.b16 %v499
    %v1960 = vunpack.c.l.b16 %v500
    %v1961 = vunpack.c.h.b16 %v500
    %v1962 = vunpack.c.l.b16 %v501
    %v1963 = vunpack.c.h.b16 %v501
    %v1964 = vunpack.c.l.b16 %v502
    %v1965 = vunpack.c.h.b16 %v502
    %v1966 = vunpack.c.l.b16 %v503
    %v1967 = vunpack.c.h.b16 %v503
    %v1968 = vunpack.c.l.b16 %v504
    %v1969 = vunpack.c.h.b16 %v504
    %v1970 = vunpack.c.l.b16 %v505
    %v1971 = vunpack.c.h.b16 %v505
    %v1972 = vunpack.c.l.b16 %v506
    %v1973 = vunpack.c.h.b16 %v506
    %v1974 = vunpack.c.l.b16 %v507
    %v1975 = vunpack.c.h.b16 %v507
    %v1976 = vunpack.c.l.b16 %v508
    %v1977 = vunpack.c.h.b16 %v508
    %v1978 = vunpack.c.l.b16 %v509
    %v1979 = vunpack.c.h.b16 %v509
    %v1980 = vunpack.c.l.b16 %v510
    %v1981 = vunpack.c.h.b16 %v510
    %v1982 = vunpack.c.l.b16 %v511
    %v1983 = vunpack.c.h.b16 %v511
    %v1984 = vunpack.c.l.b16 %v512
    %v1985 = vunpack.c.h.b16 %v512
    %v1986 = vunpack.c.l.b16 %v513
    %v1987 = vunpack.c.h.b16 %v513
    %v1988 = vunpack.c.l.b16 %v514
    %v1989 = vunpack.c.h.b16 %v514
    %v1990 = vunpack.c.l.b16 %v515
    %v1991 = vunpack.c.h.b16 %v515
    %v1992 = vunpack.c.l.b16 %v516
    %v1993 = vunpack.c.h.b16 %v516
    %v1994 = vunpack.c.l.b16 %v517
    %v1995 = vunpack.c.h.b16 %v517
    %v1996 = vunpack.c.l.b16 %v518
    %v1997 = vunpack.c.h.b16 %v518
    %v1998 = vunpack.c.l.b16 %v519
    %v1999 = vunpack.c.h.b16 %v519
    %v2000 = vunpack.c.l.b16 %v520
    %v2001 = vunpack.c.h.b16 %v520
    %v2002 = vunpack.c.l.b16 %v521
    %v2003 = vunpack.c.h.b16 %v521
    %v2004 = vunpack.c.l.b16 %v522
    %v2005 = vunpack.c.h.b16 %v522
    %v2006 = vunpack.c.l.b16 %v523
    %v2007 = vunpack.c.h.b16 %v523
    %v2008 = vunpack.c.l.b16 %v524
    %v2009 = vunpack.c.h.b16 %v524
    %v2010 = vunpack.c.l.b16 %v525
    %v2011 = vunpack.c.h.b16 %v525
    %v2012 = vunpack.c.l.b16 %v526
    %v2013 = vunpack.c.h.b16 %v526
    %v2014 = vunpack.c.l.b16 %v527
    %v2015 = vunpack.c.h.b16 %v527
    %v2016 = vunpack.c.l.b16 %v528
    %v2017 = vunpack.c.h.b16 %v528
    %v2018 = vunpack.c.l.b16 %v529
    %v2019 = vunpack.c.h.b16 %v529
    %v2020 = vunpack.c.l.b16 %v530
    %v2021 = vunpack.c.h.b16 %v530
    %v2022 = vunpack.c.l.b16 %v531
    %v2023 = vunpack.c.h.b16 %v531
    %v2024 = vunpack.c.l.b16 %v532
    %v2025 = vunpack.c.h.b16 %v532
    %v2026 = vunpack.c.l.b16 %v533
    %v2027 = vunpack.c.h.b16 %v533
    %v2028 = vunpack.c.l.b16 %v534
    %v2029 = vunpack.c.h.b16 %v534
    %v2030 = vunpack.c.l.b16 %v535
    %v2031 = vunpack.c.h.b16 %v535
    %v2032 = vunpack.c.l.b16 %v536
    %v2033 = vunpack.c.h.b16 %v536
    %v2034 = vunpack.c.l.b16 %v537
    %v2035 = vunpack.c.h.b16 %v537
    %v2036 = vunpack.c.l.b16 %v538
    %v2037 = vunpack.c.h.b16 %v538
    %v2038 = vunpack.c.l.b16 %v539
    %v2039 = vunpack.c.h.b16 %v539
    %v2040 = vunpack.c.l.b16 %v540
    %v2041 = vunpack.c.h.b16 %v540
    %v2042 = vunpack.c.l.b16 %v541
    %v2043 = vunpack.c.h.b16 %v541
    %v2044 = vunpack.c.l.b16 %v542
    %v2045 = vunpack.c.h.b16 %v542
    %v2046 = vunpack.c.l.b16 %v543
    %v2047 = vunpack.c.h.b16 %v543
    %v2048 = vunpack.c.l.b16 %v544
    %v2049 = vunpack.c.h.b16 %v544
    %v2050 = vunpack.c.l.b16 %v545
    %v2051 = vunpack.c.h.b16 %v545
    %v2052 = vunpack.c.l.b16 %v546
    %v2053 = vunpack.c.h.b16 %v546
    %v2054 = vunpack.c.l.b16 %v547
    %v2055 = vunpack.c.h.b16 %v547
    %v2056 = vunpack.c.l.b16 %v548
    %v2057 = vunpack.c.h.b16 %v548
    %v2058 = vunpack.c.l.b16 %v549
    %v2059 = vunpack.c.h.b16 %v549
    %v2060 = vunpack.c.l.b16 %v550
    %v2061 = vunpack.c.h.b16 %v550
    %v2062 = vunpack.c.l.b16 %v551
    %v2063 = vunpack.c.h.b16 %v551
    %v2064 = vunpack.c.l.b16 %v552
    %v2065 = vunpack.c.h.b16 %v552
    %v2066 = vunpack.c.l.b16 %v553
    %v2067 = vunpack.c.h.b16 %v553
    %v2068 = vunpack.c.l.b16 %v554
    %v2069 = vunpack.c.h.b16 %v554
    %v2070 = vunpack.c.l.b16 %v555
    %v2071 = vunpack.c.h.b16 %v555
    %v2072 = vunpack.c.l.b16 %v556
    %v2073 = vunpack.c.h.b16 %v556
    %v2074 = vunpack.c.l.b16 %v557
    %v2075 = vunpack.c.h.b16 %v557
    %v2076 = vunpack.c.l.b16 %v558
    %v2077 = vunpack.c.h.b16 %v558
    %v2078 = vunpack.c.l.b16 %v559
    %v2079 = vunpack.c.h.b16 %v559
    %v2080 = vunpack.c.l.b16 %v560
    %v2081 = vunpack.c.h.b16 %v560
    %v2082 = vunpack.c.l.b16 %v561
    %v2083 = vunpack.c.h.b16 %v561
    %v2084 = vunpack.c.l.b16 %v562
    %v2085 = vunpack.c.h.b16 %v562
    %v2086 = vunpack.c.l.b16 %v563
    %v2087 = vunpack.c.h.b16 %v563
    %v2088 = vunpack.c.l.b16 %v564
    %v2089 = vunpack.c.h.b16 %v564
    %v2090 = vunpack.c.l.b16 %v565
    %v2091 = vunpack.c.h.b16 %v565
    %v2092 = vunpack.c.l.b16 %v566
    %v2093 = vunpack.c.h.b16 %v566
    %v2094 = vunpack.c.l.b16 %v567
    %v2095 = vunpack.c.h.b16 %v567
    %v2096 = vunpack.c.l.b16 %v568
    %v2097 = vunpack.c.h.b16 %v568
    %v2098 = vunpack.c.l.b16 %v569
    %v2099 = vunpack.c.h.b16 %v569
    %v2100 = vunpack.c.l.b16 %v570
    %v2101 = vunpack.c.h.b16 %v570
    %v2102 = vunpack.c.l.b16 %v571
    %v2103 = vunpack.c.h.b16 %v571
    %v2104 = vunpack.c.l.b16 %v572
    %v2105 = vunpack.c.h.b16 %v572
    %v2106 = vunpack.c.l.b16 %v573
    %v2107 = vunpack.c.h.b16 %v573
    %v2108 = vunpack.c.l.b16 %v574
    %v2109 = vunpack.c.h.b16 %v574
    %v2110 = vunpack.c.l.b16 %v575
    %v2111 = vunpack.c.h.b16 %v575
    %v2112 = vunpack.c.l.b16 %v576
    %v2113 = vunpack.c.h.b16 %v576
    %v2114 = vunpack.c.l.b16 %v577
    %v2115 = vunpack.c.h.b16 %v577
    %v2116 = vunpack.c.l.b16 %v578
    %v2117 = vunpack.c.h.b16 %v578
    %v2118 = vunpack.c.l.b16 %v579
    %v2119 = vunpack.c.h.b16 %v579
    %v2120 = vunpack.c.l.b16 %v580
    %v2121 = vunpack.c.h.b16 %v580
    %v2122 = vunpack.c.l.b16 %v581
    %v2123 = vunpack.c.h.b16 %v581
    %v2124 = vunpack.c.l.b16 %v582
    %v2125 = vunpack.c.h.b16 %v582
    %v2126 = vunpack.c.l.b16 %v583
    %v2127 = vunpack.c.h.b16 %v583
    %v2128 = vunpack.c.l.b16 %v584
    %v2129 = vunpack.c.h.b16 %v584
    %v2130 = vunpack.c.l.b16 %v585
    %v2131 = vunpack.c.h.b16 %v585
    %v2132 = vunpack.c.l.b16 %v586
    %v2133 = vunpack.c.h.b16 %v586
    %v2134 = vunpack.c.l.b16 %v587
    %v2135 = vunpack.c.h.b16 %v587
    %v2136 = vunpack.c.l.b16 %v588
    %v2137 = vunpack.c.h.b16 %v588
    %v2138 = vunpack.c.l.b16 %v589
    %v2139 = vunpack.c.h.b16 %v589
    %v2140 = vunpack.c.l.b16 %v590
    %v2141 = vunpack.c.h.b16 %v590
    %v2142 = vunpack.c.l.b16 %v591
    %v2143 = vunpack.c.h.b16 %v591
    %v2144 = vunpack.c.l.b16 %v592
    %v2145 = vunpack.c.h.b16 %v592
    %v2146 = vunpack.c.l.b16 %v593
    %v2147 = vunpack.c.h.b16 %v593
    %v2148 = vunpack.c.l.b16 %v594
    %v2149 = vunpack.c.h.b16 %v594
    %v2150 = vunpack.c.l.b16 %v595
    %v2151 = vunpack.c.h.b16 %v595
    %v2152 = vunpack.c.l.b16 %v596
    %v2153 = vunpack.c.h.b16 %v596
    %v2154 = vunpack.c.l.b16 %v597
    %v2155 = vunpack.c.h.b16 %v597
    %v2156 = vunpack.c.l.b16 %v598
    %v2157 = vunpack.c.h.b16 %v598
    %v2158 = vunpack.c.l.b16 %v599
    %v2159 = vunpack.c.h.b16 %v599
    %v2160 = vunpack.c.l.b16 %v600
    %v2161 = vunpack.c.h.b16 %v600
    %v2162 = vunpack.c.l.b16 %v601
    %v2163 = vunpack.c.h.b16 %v601
    %v2164 = vunpack.c.l.b16 %v602
    %v2165 = vunpack.c.h.b16 %v602
    %v2166 = vunpack.c.l.b16 %v603
    %v2167 = vunpack.c.h.b16 %v603
    %v2168 = vunpack.c.l.b16 %v604
    %v2169 = vunpack.c.h.b16 %v604
    %v2170 = vunpack.c.l.b16 %v605
    %v2171 = vunpack.c.h.b16 %v605
    %v2172 = vunpack.c.l.b16 %v606
    %v2173 = vunpack.c.h.b16 %v606
    %v2174 = vunpack.c.l.b16 %v607
    %v2175 = vunpack.c.h.b16 %v607
    %v2176 = vunpack.c.l.b16 %v608
    %v2177 = vunpack.c.h.b16 %v608
    %v2178 = vunpack.c.l.b16 %v609
    %v2179 = vunpack.c.h.b16 %v609
    %v2180 = vunpack.c.l.b16 %v610
    %v2181 = vunpack.c.h.b16 %v610
    %v2182 = vunpack.c.l.b16 %v611
    %v2183 = vunpack.c.h.b16 %v611
    %v2184 = vunpack.c.l.b16 %v612
    %v2185 = vunpack.c.h.b16 %v612
    %v2186 = vunpack.c.l.b16 %v613
    %v2187 = vunpack.c.h.b16 %v613
    %v2188 = vunpack.c.l.b16 %v614
    %v2189 = vunpack.c.h.b16 %v614
    %v2190 = vunpack.c.l.b16 %v615
    %v2191 = vunpack.c.h.b16 %v615
    %v2192 = vpack.c.b16 %v1176, %v1168
    %v2193 = vpack.c.b16 %v1177, %v1169
    %v2194 = vpack.c.b16 %v1178, %v1170
    %v2195 = vpack.c.b16 %v1179, %v1171
    %v2196 = vpack.c.b16 %v1180, %v1172
    %v2197 = vpack.c.b16 %v1181, %v1173
    %v2198 = vpack.c.b16 %v1182, %v1174
    %v2199 = vpack.c.b16 %v1183, %v1175
    %v2200 = vpack.c.b16 %v1192, %v1184
    %v2201 = vpack.c.b16 %v1193, %v1185
    %v2202 = vpack.c.b16 %v1194, %v1186
    %v2203 = vpack.c.b16 %v1195, %v1187
    %v2204 = vpack.c.b16 %v1196, %v1188
    %v2205 = vpack.c.b16 %v1197, %v1189
    %v2206 = vpack.c.b16 %v1198, %v1190
    %v2207 = vpack.c.b16 %v1199, %v1191
    %v2208 = vpack.c.b16 %v1208, %v1200
    %v2209 = vpack.c.b16 %v1209, %v1201
    %v2210 = vpack.c.b16 %v1210, %v1202
    %v2211 = vpack.c.b16 %v1211, %v1203
    %v2212 = vpack.c.b16 %v1212, %v1204
    %v2213 = vpack.c.b16 %v1213, %v1205
    %v2214 = vpack.c.b16 %v1214, %v1206
    %v2215 = vpack.c.b16 %v1215, %v1207
    %v2216 = vpack.c.b16 %v1224, %v1216
    %v2217 = vpack.c.b16 %v1225, %v1217
    %v2218 = vpack.c.b16 %v1226, %v1218
    %v2219 = vpack.c.b16 %v1227, %v1219
    %v2220 = vpack.c.b16 %v1228, %v1220
    %v2221 = vpack.c.b16 %v1229, %v1221
    %v2222 = vpack.c.b16 %v1230, %v1222
    %v2223 = vpack.c.b16 %v1231, %v1223
    %v2224 = vpack.c.b16 %v1240, %v1232
    %v2225 = vpack.c.b16 %v1241, %v1233
    %v2226 = vpack.c.b16 %v1242, %v1234
    %v2227 = vpack.c.b16 %v1243, %v1235
    %v2228 = vpack.c.b16 %v1244, %v1236
    %v2229 = vpack.c.b16 %v1245, %v1237
    %v2230 = vpack.c.b16 %v1246, %v1238
    %v2231 = vpack.c.b16 %v1247, %v1239
    %v2232 = vpack.c.b16 %v1256, %v1248
    %v2233 = vpack.c.b16 %v1257, %v1249
    %v2234 = vpack.c.b16 %v1258, %v1250
    %v2235 = vpack.c.b16 %v1259, %v1251
    %v2236 = vpack.c.b16 %v1260, %v1252
    %v2237 = vpack.c.b16 %v1261, %v1253
    %v2238 = vpack.c.b16 %v1262, %v1254
    %v2239 = vpack.c.b16 %v1263, %v1255
    %v2240 = vpack.c.b16 %v1272, %v1264
    %v2241 = vpack.c.b16 %v1273, %v1265
    %v2242 = vpack.c.b16 %v1274, %v1266
    %v2243 = vpack.c.b16 %v1275, %v1267
    %v2244 = vpack.c.b16 %v1276, %v1268
    %v2245 = vpack.c.b16 %v1277, %v1269
    %v2246 = vpack.c.b16 %v1278, %v1270
    %v2247 = vpack.c.b16 %v1279, %v1271
    %v2248 = vpack.c.b16 %v1288, %v1280
    %v2249 = vpack.c.b16 %v1289, %v1281
    %v2250 = vpack.c.b16 %v1290, %v1282
    %v2251 = vpack.c.b16 %v1291, %v1283
    %v2252 = vpack.c.b16 %v1292, %v1284
    %v2253 = vpack.c.b16 %v1293, %v1285
    %v2254 = vpack.c.b16 %v1294, %v1286
    %v2255 = vpack.c.b16 %v1295, %v1287
    %v2256 = vpack.c.b16 %v1304, %v1296
    %v2257 = vpack.c.b16 %v1305, %v1297
    %v2258 = vpack.c.b16 %v1306, %v1298
    %v2259 = vpack.c.b16 %v1307, %v1299
    %v2260 = vpack.c.b16 %v1308, %v1300
    %v2261 = vpack.c.b16 %v1309, %v1301
    %v2262 = vpack.c.b16 %v1310, %v1302
    %v2263 = vpack.c.b16 %v1311, %v1303
    %v2264 = vpack.c.b16 %v1320, %v1312
    %v2265 = vpack.c.b16 %v1321, %v1313
    %v2266 = vpack.c.b16 %v1322, %v1314
    %v2267 = vpack.c.b16 %v1323, %v1315
    %v2268 = vpack.c.b16 %v1324, %v1316
    %v2269 = vpack.c.b16 %v1325, %v1317
    %v2270 = vpack.c.b16 %v1326, %v1318
    %v2271 = vpack.c.b16 %v1327, %v1319
    %v2272 = vpack.c.b16 %v1336, %v1328
    %v2273 = vpack.c.b16 %v1337, %v1329
    %v2274 = vpack.c.b16 %v1338, %v1330
    %v2275 = vpack.c.b16 %v1339, %v1331
    %v2276 = vpack.c.b16 %v1340, %v1332
    %v2277 = vpack.c.b16 %v1341, %v1333
    %v2278 = vpack.c.b16 %v1342, %v1334
    %v2279 = vpack.c.b16 %v1343, %v1335
    %v2280 = vpack.c.b16 %v1352, %v1344
    %v2281 = vpack.c.b16 %v1353, %v1345
    %v2282 = vpack.c.b16 %v1354, %v1346
    %v2283 = vpack.c.b16 %v1355, %v1347
    %v2284 = vpack.c.b16 %v1356, %v1348
    %v2285 = vpack.c.b16 %v1357, %v1349
    %v2286 = vpack.c.b16 %v1358, %v1350
    %v2287 = vpack.c.b16 %v1359, %v1351
    %v2288 = vpack.c.b16 %v1368, %v1360
    %v2289 = vpack.c.b16 %v1369, %v1361
    %v2290 = vpack.c.b16 %v1370, %v1362
    %v2291 = vpack.c.b16 %v1371, %v1363
    %v2292 = vpack.c.b16 %v1372, %v1364
    %v2293 = vpack.c.b16 %v1373, %v1365
    %v2294 = vpack.c.b16 %v1374, %v1366
    %v2295 = vpack.c.b16 %v1375, %v1367
    %v2296 = vpack.c.b16 %v1384, %v1376
    %v2297 = vpack.c.b16 %v1385, %v1377
    %v2298 = vpack.c.b16 %v1386, %v1378
    %v2299 = vpack.c.b16 %v1387, %v1379
    %v2300 = vpack.c.b16 %v1388, %v1380
    %v2301 = vpack.c.b16 %v1389, %v1381
    %v2302 = vpack.c.b16 %v1390, %v1382
    %v2303 = vpack.c.b16 %v1391, %v1383
    %v2304 = vpack.c.b16 %v1400, %v1392
    %v2305 = vpack.c.b16 %v1401, %v1393
    %v2306 = vpack.c.b16 %v1402, %v1394
    %v2307 = vpack.c.b16 %v1403, %v1395
    %v2308 = vpack.c.b16 %v1404, %v1396
    %v2309 = vpack.c.b16 %v1405, %v1397
    %v2310 = vpack.c.b16 %v1406, %v1398
    %v2311 = vpack.c.b16 %v1407, %v1399
    %v2312 = vpack.c.b16 %v1416, %v1408
    %v2313 = vpack.c.b16 %v1417, %v1409
    %v2314 = vpack.c.b16 %v1418, %v1410
    %v2315 = vpack.c.b16 %v1419, %v1411
    %v2316 = vpack.c.b16 %v1420, %v1412
    %v2317 = vpack.c.b16 %v1421, %v1413
    %v2318 = vpack.c.b16 %v1422, %v1414
    %v2319 = vpack.c.b16 %v1423, %v1415
    %v2320 = vpack.c.b16 %v1432, %v1424
    %v2321 = vpack.c.b16 %v1433, %v1425
    %v2322 = vpack.c.b16 %v1434, %v1426
    %v2323 = vpack.c.b16 %v1435, %v1427
    %v2324 = vpack.c.b16 %v1436, %v1428
    %v2325 = vpack.c.b16 %v1437, %v1429
    %v2326 = vpack.c.b16 %v1438, %v1430
    %v2327 = vpack.c.b16 %v1439, %v1431
    %v2328 = vpack.c.b16 %v1448, %v1440
    %v2329 = vpack.c.b16 %v1449, %v1441
    %v2330 = vpack.c.b16 %v1450, %v1442
    %v2331 = vpack.c.b16 %v1451, %v1443
    %v2332 = vpack.c.b16 %v1452, %v1444
    %v2333 = vpack.c.b16 %v1453, %v1445
    %v2334 = vpack.c.b16 %v1454, %v1446
    %v2335 = vpack.c.b16 %v1455, %v1447
    %v2336 = vpack.c.b16 %v1464, %v1456
    %v2337 = vpack.c.b16 %v1465, %v1457
    %v2338 = vpack.c.b16 %v1466, %v1458
    %v2339 = vpack.c.b16 %v1467, %v1459
    %v2340 = vpack.c.b16 %v1468, %v1460
    %v2341 = vpack.c.b16 %v1469, %v1461
    %v2342 = vpack.c.b16 %v1470, %v1462
    %v2343 = vpack.c.b16 %v1471, %v1463
    %v2344 = vpack.c.b16 %v1480, %v1472
    %v2345 = vpack.c.b16 %v1481, %v1473
    %v2346 = vpack.c.b16 %v1482, %v1474
    %v2347 = vpack.c.b16 %v1483, %v1475
    %v2348 = vpack.c.b16 %v1484, %v1476
    %v2349 = vpack.c.b16 %v1485, %v1477
    %v2350 = vpack.c.b16 %v1486, %v1478
    %v2351 = vpack.c.b16 %v1487, %v1479
    %v2352 = vpack.c.b16 %v1496, %v1488
    %v2353 = vpack.c.b16 %v1497, %v1489
    %v2354 = vpack.c.b16 %v1498, %v1490
    %v2355 = vpack.c.b16 %v1499, %v1491
    %v2356 = vpack.c.b16 %v1500, %v1492
    %v2357 = vpack.c.b16 %v1501, %v1493
    %v2358 = vpack.c.b16 %v1502, %v1494
    %v2359 = vpack.c.b16 %v1503, %v1495
    %v2360 = vpack.c.b16 %v1512, %v1504
    %v2361 = vpack.c.b16 %v1513, %v1505
    %v2362 = vpack.c.b16 %v1514, %v1506
    %v2363 = vpack.c.b16 %v1515, %v1507
    %v2364 = vpack.c.b16 %v1516, %v1508
    %v2365 = vpack.c.b16 %v1517, %v1509
    %v2366 = vpack.c.b16 %v1518, %v1510
    %v2367 = vpack.c.b16 %v1519, %v1511
    %v2368 = vpack.c.b16 %v1528, %v1520
    %v2369 = vpack.c.b16 %v1529, %v1521
    %v2370 = vpack.c.b16 %v1530, %v1522
    %v2371 = vpack.c.b16 %v1531, %v1523
    %v2372 = vpack.c.b16 %v1532, %v1524
    %v2373 = vpack.c.b16 %v1533, %v1525
    %v2374 = vpack.c.b16 %v1534, %v1526
    %v2375 = vpack.c.b16 %v1535, %v1527
    %v2376 = vpack.c.b16 %v1544, %v1536
    %v2377 = vpack.c.b16 %v1545, %v1537
    %v2378 = vpack.c.b16 %v1546, %v1538
    %v2379 = vpack.c.b16 %v1547, %v1539
    %v2380 = vpack.c.b16 %v1548, %v1540
    %v2381 = vpack.c.b16 %v1549, %v1541
    %v2382 = vpack.c.b16 %v1550, %v1542
    %v2383 = vpack.c.b16 %v1551, %v1543
    %v2384 = vpack.c.b16 %v1560, %v1552
    %v2385 = vpack.c.b16 %v1561, %v1553
    %v2386 = vpack.c.b16 %v1562, %v1554
    %v2387 = vpack.c.b16 %v1563, %v1555
    %v2388 = vpack.c.b16 %v1564, %v1556
    %v2389 = vpack.c.b16 %v1565, %v1557
    %v2390 = vpack.c.b16 %v1566, %v1558
    %v2391 = vpack.c.b16 %v1567, %v1559
    %v2392 = vpack.c.b16 %v1576, %v1568
    %v2393 = vpack.c.b16 %v1577, %v1569
    %v2394 = vpack.c.b16 %v1578, %v1570
    %v2395 = vpack.c.b16 %v1579, %v1571
    %v2396 = vpack.c.b16 %v1580, %v1572
    %v2397 = vpack.c.b16 %v1581, %v1573
    %v2398 = vpack.c.b16 %v1582, %v1574
    %v2399 = vpack.c.b16 %v1583, %v1575
    %v2400 = vpack.c.b16 %v1592, %v1584
    %v2401 = vpack.c.b16 %v1593, %v1585
    %v2402 = vpack.c.b16 %v1594, %v1586
    %v2403 = vpack.c.b16 %v1595, %v1587
    %v2404 = vpack.c.b16 %v1596, %v1588
    %v2405 = vpack.c.b16 %v1597, %v1589
    %v2406 = vpack.c.b16 %v1598, %v1590
    %v2407 = vpack.c.b16 %v1599, %v1591
    %v2408 = vpack.c.b16 %v1608, %v1600
    %v2409 = vpack.c.b16 %v1609, %v1601
    %v2410 = vpack.c.b16 %v1610, %v1602
    %v2411 = vpack.c.b16 %v1611, %v1603
    %v2412 = vpack.c.b16 %v1612, %v1604
    %v2413 = vpack.c.b16 %v1613, %v1605
    %v2414 = vpack.c.b16 %v1614, %v1606
    %v2415 = vpack.c.b16 %v1615, %v1607
    %v2416 = vpack.c.b16 %v1624, %v1616
    %v2417 = vpack.c.b16 %v1625, %v1617
    %v2418 = vpack.c.b16 %v1626, %v1618
    %v2419 = vpack.c.b16 %v1627, %v1619
    %v2420 = vpack.c.b16 %v1628, %v1620
    %v2421 = vpack.c.b16 %v1629, %v1621
    %v2422 = vpack.c.b16 %v1630, %v1622
    %v2423 = vpack.c.b16 %v1631, %v1623
    %v2424 = vpack.c.b16 %v1640, %v1632
    %v2425 = vpack.c.b16 %v1641, %v1633
    %v2426 = vpack.c.b16 %v1642, %v1634
    %v2427 = vpack.c.b16 %v1643, %v1635
    %v2428 = vpack.c.b16 %v1644, %v1636
    %v2429 = vpack.c.b16 %v1645, %v1637
    %v2430 = vpack.c.b16 %v1646, %v1638
    %v2431 = vpack.c.b16 %v1647, %v1639
    %v2432 = vpack.c.b16 %v1656, %v1648
    %v2433 = vpack.c.b16 %v1657, %v1649
    %v2434 = vpack.c.b16 %v1658, %v1650
    %v2435 = vpack.c.b16 %v1659, %v1651
    %v2436 = vpack.c.b16 %v1660, %v1652
    %v2437 = vpack.c.b16 %v1661, %v1653
    %v2438 = vpack.c.b16 %v1662, %v1654
    %v2439 = vpack.c.b16 %v1663, %v1655
    %v2440 = vpack.c.b16 %v1672, %v1664
    %v2441 = vpack.c.b16 %v1673, %v1665
    %v2442 = vpack.c.b16 %v1674, %v1666
    %v2443 = vpack.c.b16 %v1675, %v1667
    %v2444 = vpack.c.b16 %v1676, %v1668
    %v2445 = vpack.c.b16 %v1677, %v1669
    %v2446 = vpack.c.b16 %v1678, %v1670
    %v2447 = vpack.c.b16 %v1679, %v1671
    %v2448 = vpack.c.b16 %v1688, %v1680
    %v2449 = vpack.c.b16 %v1689, %v1681
    %v2450 = vpack.c.b16 %v1690, %v1682
    %v2451 = vpack.c.b16 %v1691, %v1683
    %v2452 = vpack.c.b16 %v1692, %v1684
    %v2453 = vpack.c.b16 %v1693, %v1685
    %v2454 = vpack.c.b16 %v1694, %v1686
    %v2455 = vpack.c.b16 %v1695, %v1687
    %v2456 = vpack.c.b16 %v1704, %v1696
    %v2457 = vpack.c.b16 %v1705, %v1697
    %v2458 = vpack.c.b16 %v1706, %v1698
    %v2459 = vpack.c.b16 %v1707, %v1699
    %v2460 = vpack.c.b16 %v1708, %v1700
    %v2461 = vpack.c.b16 %v1709, %v1701
    %v2462 = vpack.c.b16 %v1710, %v1702
    %v2463 = vpack.c.b16 %v1711, %v1703
    %v2464 = vpack.c.b16 %v1720, %v1712
    %v2465 = vpack.c.b16 %v1721, %v1713
    %v2466 = vpack.c.b16 %v1722, %v1714
    %v2467 = vpack.c.b16 %v1723, %v1715
    %v2468 = vpack.c.b16 %v1724, %v1716
    %v2469 = vpack.c.b16 %v1725, %v1717
    %v2470 = vpack.c.b16 %v1726, %v1718
    %v2471 = vpack.c.b16 %v1727, %v1719
    %v2472 = vpack.c.b16 %v1736, %v1728
    %v2473 = vpack.c.b16 %v1737, %v1729
    %v2474 = vpack.c.b16 %v1738, %v1730
    %v2475 = vpack.c.b16 %v1739, %v1731
    %v2476 = vpack.c.b16 %v1740, %v1732
    %v2477 = vpack.c.b16 %v1741, %v1733
    %v2478 = vpack.c.b16 %v1742, %v1734
    %v2479 = vpack.c.b16 %v1743, %v1735
    %v2480 = vpack.c.b16 %v1752, %v1744
    %v2481 = vpack.c.b16 %v1753, %v1745
    %v2482 = vpack.c.b16 %v1754, %v1746
    %v2483 = vpack.c.b16 %v1755, %v1747
    %v2484 = vpack.c.b16 %v1756, %v1748
    %v2485 = vpack.c.b16 %v1757, %v1749
    %v2486 = vpack.c.b16 %v1758, %v1750
    %v2487 = vpack.c.b16 %v1759, %v1751
    %v2488 = vpack.c.b16 %v1768, %v1760
    %v2489 = vpack.c.b16 %v1769, %v1761
    %v2490 = vpack.c.b16 %v1770, %v1762
    %v2491 = vpack.c.b16 %v1771, %v1763
    %v2492 = vpack.c.b16 %v1772, %v1764
    %v2493 = vpack.c.b16 %v1773, %v1765
    %v2494 = vpack.c.b16 %v1774, %v1766
    %v2495 = vpack.c.b16 %v1775, %v1767
    %v2496 = vpack.c.b16 %v1784, %v1776
    %v2497 = vpack.c.b16 %v1785, %v1777
    %v2498 = vpack.c.b16 %v1786, %v1778
    %v2499 = vpack.c.b16 %v1787, %v1779
    %v2500 = vpack.c.b16 %v1788, %v1780
    %v2501 = vpack.c.b16 %v1789, %v1781
    %v2502 = vpack.c.b16 %v1790, %v1782
    %v2503 = vpack.c.b16 %v1791, %v1783
    %v2504 = vpack.c.b16 %v1800, %v1792
    %v2505 = vpack.c.b16 %v1801, %v1793
    %v2506 = vpack.c.b16 %v1802, %v1794
    %v2507 = vpack.c.b16 %v1803, %v1795
    %v2508 = vpack.c.b16 %v1804, %v1796
    %v2509 = vpack.c.b16 %v1805, %v1797
    %v2510 = vpack.c.b16 %v1806, %v1798
    %v2511 = vpack.c.b16 %v1807, %v1799
    %v2512 = vpack.c.b16 %v1816, %v1808
    %v2513 = vpack.c.b16 %v1817, %v1809
    %v2514 = vpack.c.b16 %v1818, %v1810
    %v2515 = vpack.c.b16 %v1819, %v1811
    %v2516 = vpack.c.b16 %v1820, %v1812
    %v2517 = vpack.c.b16 %v1821, %v1813
    %v2518 = vpack.c.b16 %v1822, %v1814
    %v2519 = vpack.c.b16 %v1823, %v1815
    %v2520 = vpack.c.b16 %v1832, %v1824
    %v2521 = vpack.c.b16 %v1833, %v1825
    %v2522 = vpack.c.b16 %v1834, %v1826
    %v2523 = vpack.c.b16 %v1835, %v1827
    %v2524 = vpack.c.b16 %v1836, %v1828
    %v2525 = vpack.c.b16 %v1837, %v1829
    %v2526 = vpack.c.b16 %v1838, %v1830
    %v2527 = vpack.c.b16 %v1839, %v1831
    %v2528 = vpack.c.b16 %v1848, %v1840
    %v2529 = vpack.c.b16 %v1849, %v1841
    %v2530 = vpack.c.b16 %v1850, %v1842
    %v2531 = vpack.c.b16 %v1851, %v1843
    %v2532 = vpack.c.b16 %v1852, %v1844
    %v2533 = vpack.c.b16 %v1853, %v1845
    %v2534 = vpack.c.b16 %v1854, %v1846
    %v2535 = vpack.c.b16 %v1855, %v1847
    %v2536 = vpack.c.b16 %v1864, %v1856
    %v2537 = vpack.c.b16 %v1865, %v1857
    %v2538 = vpack.c.b16 %v1866, %v1858
    %v2539 = vpack.c.b16 %v1867, %v1859
    %v2540 = vpack.c.b16 %v1868, %v1860
    %v2541 = vpack.c.b16 %v1869, %v1861
    %v2542 = vpack.c.b16 %v1870, %v1862
    %v2543 = vpack.c.b16 %v1871, %v1863
    %v2544 = vpack.c.b16 %v1880, %v1872
    %v2545 = vpack.c.b16 %v1881, %v1873
    %v2546 = vpack.c.b16 %v1882, %v1874
    %v2547 = vpack.c.b16 %v1883, %v1875
    %v2548 = vpack.c.b16 %v1884, %v1876
    %v2549 = vpack.c.b16 %v1885, %v1877
    %v2550 = vpack.c.b16 %v1886, %v1878
    %v2551 = vpack.c.b16 %v1887, %v1879
    %v2552 = vpack.c.b16 %v1896, %v1888
    %v2553 = vpack.c.b16 %v1897, %v1889
    %v2554 = vpack.c.b16 %v1898, %v1890
    %v2555 = vpack.c.b16 %v1899, %v1891
    %v2556 = vpack.c.b16 %v1900, %v1892
    %v2557 = vpack.c.b16 %v1901, %v1893
    %v2558 = vpack.c.b16 %v1902, %v1894
    %v2559 = vpack.c.b16 %v1903, %v1895
    %v2560 = vpack.c.b16 %v1912, %v1904
    %v2561 = vpack.c.b16 %v1913, %v1905
    %v2562 = vpack.c.b16 %v1914, %v1906
    %v2563 = vpack.c.b16 %v1915, %v1907
    %v2564 = vpack.c.b16 %v1916, %v1908
    %v2565 = vpack.c.b16 %v1917, %v1909
    %v2566 = vpack.c.b16 %v1918, %v1910
    %v2567 = vpack.c.b16 %v1919, %v1911
    %v2568 = vpack.c.b16 %v1928, %v1920
    %v2569 = vpack.c.b16 %v1929, %v1921
    %v2570 = vpack.c.b16 %v1930, %v1922
    %v2571 = vpack.c.b16 %v1931, %v1923
    %v2572 = vpack.c.b16 %v1932, %v1924
    %v2573 = vpack.c.b16 %v1933, %v1925
    %v2574 = vpack.c.b16 %v1934, %v1926
    %v2575 = vpack.c.b16 %v1935, %v1927
    %v2576 = vpack.c.b16 %v1944, %v1936
    %v2577 = vpack.c.b16 %v1945, %v1937
    %v2578 = vpack.c.b16 %v1946, %v1938
    %v2579 = vpack.c.b16 %v1947, %v1939
    %v2580 = vpack.c.b16 %v1948, %v1940
    %v2581 = vpack.c.b16 %v1949, %v1941
    %v2582 = vpack.c.b16 %v1950, %v1942
    %v2583 = vpack.c.b16 %v1951, %v1943
    %v2584 = vpack.c.b16 %v1960, %v1952
    %v2585 = vpack.c.b16 %v1961, %v1953
    %v2586 = vpack.c.b16 %v1962, %v1954
    %v2587 = vpack.c.b16 %v1963, %v1955
    %v2588 = vpack.c.b16 %v1964, %v1956
    %v2589 = vpack.c.b16 %v1965, %v1957
    %v2590 = vpack.c.b16 %v1966, %v1958
    %v2591 = vpack.c.b16 %v1967, %v1959
    %v2592 = vpack.c.b16 %v1976, %v1968
    %v2593 = vpack.c.b16 %v1977, %v1969
    %v2594 = vpack.c.b16 %v1978, %v1970
    %v2595 = vpack.c.b16 %v1979, %v1971
    %v2596 = vpack.c.b16 %v1980, %v1972
    %v2597 = vpack.c.b16 %v1981, %v1973
    %v2598 = vpack.c.b16 %v1982, %v1974
    %v2599 = vpack.c.b16 %v1983, %v1975
    %v2600 = vpack.c.b16 %v1992, %v1984
    %v2601 = vpack.c.b16 %v1993, %v1985
    %v2602 = vpack.c.b16 %v1994, %v1986
    %v2603 = vpack.c.b16 %v1995, %v1987
    %v2604 = vpack.c.b16 %v1996, %v1988
    %v2605 = vpack.c.b16 %v1997, %v1989
    %v2606 = vpack.c.b16 %v1998, %v1990
    %v2607 = vpack.c.b16 %v1999, %v1991
    %v2608 = vpack.c.b16 %v2008, %v2000
    %v2609 = vpack.c.b16 %v2009, %v2001
    %v2610 = vpack.c.b16 %v2010, %v2002
    %v2611 = vpack.c.b16 %v2011, %v2003
    %v2612 = vpack.c.b16 %v2012, %v2004
    %v2613 = vpack.c.b16 %v2013, %v2005
    %v2614 = vpack.c.b16 %v2014, %v2006
    %v2615 = vpack.c.b16 %v2015, %v2007
    %v2616 = vpack.c.b16 %v2024, %v2016
    %v2617 = vpack.c.b16 %v2025, %v2017
    %v2618 = vpack.c.b16 %v2026, %v2018
    %v2619 = vpack.c.b16 %v2027, %v2019
    %v2620 = vpack.c.b16 %v2028, %v2020
    %v2621 = vpack.c.b16 %v2029, %v2021
    %v2622 = vpack.c.b16 %v2030, %v2022
    %v2623 = vpack.c.b16 %v2031, %v2023
    %v2624 = vpack.c.b16 %v2040, %v2032
    %v2625 = vpack.c.b16 %v2041, %v2033
    %v2626 = vpack.c.b16 %v2042, %v2034
    %v2627 = vpack.c.b16 %v2043, %v2035
    %v2628 = vpack.c.b16 %v2044, %v2036
    %v2629 = vpack.c.b16 %v2045, %v2037
    %v2630 = vpack.c.b16 %v2046, %v2038
    %v2631 = vpack.c.b16 %v2047, %v2039
    %v2632 = vpack.c.b16 %v2056, %v2048
    %v2633 = vpack.c.b16 %v2057, %v2049
    %v2634 = vpack.c.b16 %v2058, %v2050
    %v2635 = vpack.c.b16 %v2059, %v2051
    %v2636 = vpack.c.b16 %v2060, %v2052
    %v2637 = vpack.c.b16 %v2061, %v2053
    %v2638 = vpack.c.b16 %v2062, %v2054
    %v2639 = vpack.c.b16 %v2063, %v2055
    %v2640 = vpack.c.b16 %v2072, %v2064
    %v2641 = vpack.c.b16 %v2073, %v2065
    %v2642 = vpack.c.b16 %v2074, %v2066
    %v2643 = vpack.c.b16 %v2075, %v2067
    %v2644 = vpack.c.b16 %v2076, %v2068
    %v2645 = vpack.c.b16 %v2077, %v2069
    %v2646 = vpack.c.b16 %v2078, %v2070
    %v2647 = vpack.c.b16 %v2079, %v2071
    %v2648 = vpack.c.b16 %v2088, %v2080
    %v2649 = vpack.c.b16 %v2089, %v2081
    %v2650 = vpack.c.b16 %v2090, %v2082
    %v2651 = vpack.c.b16 %v2091, %v2083
    %v2652 = vpack.c.b16 %v2092, %v2084
    %v2653 = vpack.c.b16 %v2093, %v2085
    %v2654 = vpack.c.b16 %v2094, %v2086
    %v2655 = vpack.c.b16 %v2095, %v2087
    %v2656 = vpack.c.b16 %v2104, %v2096
    %v2657 = vpack.c.b16 %v2105, %v2097
    %v2658 = vpack.c.b16 %v2106, %v2098
    %v2659 = vpack.c.b16 %v2107, %v2099
    %v2660 = vpack.c.b16 %v2108, %v2100
    %v2661 = vpack.c.b16 %v2109, %v2101
    %v2662 = vpack.c.b16 %v2110, %v2102
    %v2663 = vpack.c.b16 %v2111, %v2103
    %v2664 = vpack.c.b16 %v2120, %v2112
    %v2665 = vpack.c.b16 %v2121, %v2113
    %v2666 = vpack.c.b16 %v2122, %v2114
    %v2667 = vpack.c.b16 %v2123, %v2115
    %v2668 = vpack.c.b16 %v2124, %v2116
    %v2669 = vpack.c.b16 %v2125, %v2117
    %v2670 = vpack.c.b16 %v2126, %v2118
    %v2671 = vpack.c.b16 %v2127, %v2119
    %v2672 = vpack.c.b16 %v2136, %v2128
    %v2673 = vpack.c.b16 %v2137, %v2129
    %v2674 = vpack.c.b16 %v2138, %v2130
    %v2675 = vpack.c.b16 %v2139, %v2131
    %v2676 = vpack.c.b16 %v2140, %v2132
    %v2677 = vpack.c.b16 %v2141, %v2133
    %v2678 = vpack.c.b16 %v2142, %v2134
    %v2679 = vpack.c.b16 %v2143, %v2135
    %v2680 = vpack.c.b16 %v2152, %v2144
    %v2681 = vpack.c.b16 %v2153, %v2145
    %v2682 = vpack.c.b16 %v2154, %v2146
    %v2683 = vpack.c.b16 %v2155, %v2147
    %v2684 = vpack.c.b16 %v2156, %v2148
    %v2685 = vpack.c.b16 %v2157, %v2149
    %v2686 = vpack.c.b16 %v2158, %v2150
    %v2687 = vpack.c.b16 %v2159, %v2151
    %v2688 = vpack.c.b16 %v2168, %v2160
    %v2689 = vpack.c.b16 %v2169, %v2161
    %v2690 = vpack.c.b16 %v2170, %v2162
    %v2691 = vpack.c.b16 %v2171, %v2163
    %v2692 = vpack.c.b16 %v2172, %v2164
    %v2693 = vpack.c.b16 %v2173, %v2165
    %v2694 = vpack.c.b16 %v2174, %v2166
    %v2695 = vpack.c.b16 %v2175, %v2167
    %v2696 = vpack.c.b16 %v2184, %v2176
    %v2697 = vpack.c.b16 %v2185, %v2177
    %v2698 = vpack.c.b16 %v2186, %v2178
    %v2699 = vpack.c.b16 %v2187, %v2179
    %v2700 = vpack.c.b16 %v2188, %v2180
    %v2701 = vpack.c.b16 %v2189, %v2181
    %v2702 = vpack.c.b16 %v2190, %v2182
    %v2703 = vpack.c.b16 %v2191, %v2183
    %3216 = vmatpush.bf16.msra.mxu0 %v2248
    %3217 = vmatpush.bf16.msra.mxu0 %v2240
    %3218 = vmatpush.bf16.msra.mxu0 %v2232
    %3219 = vmatpush.bf16.msra.mxu0 %v2224
    %3220 = vmatpush.bf16.msra.mxu0 %v2216
    %3221 = vmatpush.bf16.msra.mxu0 %v2208
    %3222 = vmatpush.bf16.msra.mxu0 %v2200
    %3223 = vmatpush.bf16.msra.mxu0 %v2192
    %3224 = vmatmul.bf16.gmra.mxu0 %v640
    %v3225 = vpop.f32.mrf.mxu0
    %v3226 = vadd.f32 0.0, %v3225
    %v3227 = vpop.f32.mrf.mxu0
    %v3228 = vadd.f32 0.0, %v3227
    %3229 = vdwg.mxu0
    %3230 = vmatpush.bf16.msra.mxu0 %v2312
    %3231 = vmatpush.bf16.msra.mxu0 %v2304
    %3232 = vmatpush.bf16.msra.mxu0 %v2296
    %3233 = vmatpush.bf16.msra.mxu0 %v2288
    %3234 = vmatpush.bf16.msra.mxu0 %v2280
    %3235 = vmatpush.bf16.msra.mxu0 %v2272
    %3236 = vmatpush.bf16.msra.mxu0 %v2264
    %3237 = vmatpush.bf16.msra.mxu0 %v2256
    %3238 = vmatmul.bf16.gmra.mxu0 %v641
    %v3239 = vpop.f32.mrf.mxu0
    %v3240 = vadd.f32 %v3226, %v3239
    %v3241 = vpop.f32.mrf.mxu0
    %v3242 = vadd.f32 %v3228, %v3241
    %3243 = vdwg.mxu0
    %3244 = vmatpush.bf16.msra.mxu0 %v2376
    %3245 = vmatpush.bf16.msra.mxu0 %v2368
    %3246 = vmatpush.bf16.msra.mxu0 %v2360
    %3247 = vmatpush.bf16.msra.mxu0 %v2352
    %3248 = vmatpush.bf16.msra.mxu0 %v2344
    %3249 = vmatpush.bf16.msra.mxu0 %v2336
    %3250 = vmatpush.bf16.msra.mxu0 %v2328
    %3251 = vmatpush.bf16.msra.mxu0 %v2320
    %3252 = vmatmul.bf16.gmra.mxu0 %v642
    %v3253 = vpop.f32.mrf.mxu0
    %v3254 = vadd.f32 %v3240, %v3253
    %v3255 = vpop.f32.mrf.mxu0
    %v3256 = vadd.f32 %v3242, %v3255
    %3257 = vdwg.mxu0
    %3258 = vmatpush.bf16.msra.mxu0 %v2440
    %3259 = vmatpush.bf16.msra.mxu0 %v2432
    %3260 = vmatpush.bf16.msra.mxu0 %v2424
    %3261 = vmatpush.bf16.msra.mxu0 %v2416
    %3262 = vmatpush.bf16.msra.mxu0 %v2408
    %3263 = vmatpush.bf16.msra.mxu0 %v2400
    %3264 = vmatpush.bf16.msra.mxu0 %v2392
    %3265 = vmatpush.bf16.msra.mxu0 %v2384
    %3266 = vmatmul.bf16.gmra.mxu0 %v643
    %v3267 = vpop.f32.mrf.mxu0
    %v3268 = vadd.f32 %v3254, %v3267
    %v3269 = vpop.f32.mrf.mxu0
    %v3270 = vadd.f32 %v3256, %v3269
    %3271 = vdwg.mxu0
    %3272 = vmatpush.bf16.msra.mxu0 %v2504
    %3273 = vmatpush.bf16.msra.mxu0 %v2496
    %3274 = vmatpush.bf16.msra.mxu0 %v2488
    %3275 = vmatpush.bf16.msra.mxu0 %v2480
    %3276 = vmatpush.bf16.msra.mxu0 %v2472
    %3277 = vmatpush.bf16.msra.mxu0 %v2464
    %3278 = vmatpush.bf16.msra.mxu0 %v2456
    %3279 = vmatpush.bf16.msra.mxu0 %v2448
    %3280 = vmatmul.bf16.gmra.mxu0 %v644
    %v3281 = vpop.f32.mrf.mxu0
    %v3282 = vadd.f32 %v3268, %v3281
    %v3283 = vpop.f32.mrf.mxu0
    %v3284 = vadd.f32 %v3270, %v3283
    %3285 = vdwg.mxu0
    %3286 = vmatpush.bf16.msra.mxu0 %v2568
    %3287 = vmatpush.bf16.msra.mxu0 %v2560
    %3288 = vmatpush.bf16.msra.mxu0 %v2552
    %3289 = vmatpush.bf16.msra.mxu0 %v2544
    %3290 = vmatpush.bf16.msra.mxu0 %v2536
    %3291 = vmatpush.bf16.msra.mxu0 %v2528
    %3292 = vmatpush.bf16.msra.mxu0 %v2520
    %3293 = vmatpush.bf16.msra.mxu0 %v2512
    %3294 = vmatmul.bf16.gmra.mxu0 %v645
    %v3295 = vpop.f32.mrf.mxu0
    %v3296 = vadd.f32 %v3282, %v3295
    %v3297 = vpop.f32.mrf.mxu0
    %v3298 = vadd.f32 %v3284, %v3297
    %3299 = vdwg.mxu0
    %3300 = vmatpush.bf16.msra.mxu0 %v2632
    %3301 = vmatpush.bf16.msra.mxu0 %v2624
    %3302 = vmatpush.bf16.msra.mxu0 %v2616
    %3303 = vmatpush.bf16.msra.mxu0 %v2608
    %3304 = vmatpush.bf16.msra.mxu0 %v2600
    %3305 = vmatpush.bf16.msra.mxu0 %v2592
    %3306 = vmatpush.bf16.msra.mxu0 %v2584
    %3307 = vmatpush.bf16.msra.mxu0 %v2576
    %3308 = vmatmul.bf16.gmra.mxu0 %v646
    %v3309 = vpop.f32.mrf.mxu0
    %v3310 = vadd.f32 %v3296, %v3309
    %v3311 = vpop.f32.mrf.mxu0
    %v3312 = vadd.f32 %v3298, %v3311
    %3313 = vdwg.mxu0
    %3314 = vmatpush.bf16.msra.mxu0 %v2696
    %3315 = vmatpush.bf16.msra.mxu0 %v2688
    %3316 = vmatpush.bf16.msra.mxu0 %v2680
    %3317 = vmatpush.bf16.msra.mxu0 %v2672
    %3318 = vmatpush.bf16.msra.mxu0 %v2664
    %3319 = vmatpush.bf16.msra.mxu0 %v2656
    %3320 = vmatpush.bf16.msra.mxu0 %v2648
    %3321 = vmatpush.bf16.msra.mxu0 %v2640
    %3322 = vmatmul.bf16.gmra.mxu0 %v647
    %v3323 = vpop.f32.mrf.mxu0
    %v3324 = vadd.f32 %v3310, %v3323
    %v3325 = vpop.f32.mrf.mxu0
    %v3326 = vadd.f32 %v3312, %v3325
    %3327 = vdwg.mxu0
    %3328 = vmatpush.bf16.msra.mxu0 %v2249
    %3329 = vmatpush.bf16.msra.mxu0 %v2241
    %3330 = vmatpush.bf16.msra.mxu0 %v2233
    %3331 = vmatpush.bf16.msra.mxu0 %v2225
    %3332 = vmatpush.bf16.msra.mxu0 %v2217
    %3333 = vmatpush.bf16.msra.mxu0 %v2209
    %3334 = vmatpush.bf16.msra.mxu0 %v2201
    %3335 = vmatpush.bf16.msra.mxu0 %v2193
    %3336 = vmatmul.bf16.gmra.mxu0 %v640
    %v3337 = vpop.f32.mrf.mxu0
    %v3338 = vadd.f32 0.0, %v3337
    %v3339 = vpop.f32.mrf.mxu0
    %v3340 = vadd.f32 0.0, %v3339
    %3341 = vdwg.mxu0
    %3342 = vmatpush.bf16.msra.mxu0 %v2313
    %3343 = vmatpush.bf16.msra.mxu0 %v2305
    %3344 = vmatpush.bf16.msra.mxu0 %v2297
    %3345 = vmatpush.bf16.msra.mxu0 %v2289
    %3346 = vmatpush.bf16.msra.mxu0 %v2281
    %3347 = vmatpush.bf16.msra.mxu0 %v2273
    %3348 = vmatpush.bf16.msra.mxu0 %v2265
    %3349 = vmatpush.bf16.msra.mxu0 %v2257
    %3350 = vmatmul.bf16.gmra.mxu0 %v641
    %v3351 = vpop.f32.mrf.mxu0
    %v3352 = vadd.f32 %v3338, %v3351
    %v3353 = vpop.f32.mrf.mxu0
    %v3354 = vadd.f32 %v3340, %v3353
    %3355 = vdwg.mxu0
    %3356 = vmatpush.bf16.msra.mxu0 %v2377
    %3357 = vmatpush.bf16.msra.mxu0 %v2369
    %3358 = vmatpush.bf16.msra.mxu0 %v2361
    %3359 = vmatpush.bf16.msra.mxu0 %v2353
    %3360 = vmatpush.bf16.msra.mxu0 %v2345
    %3361 = vmatpush.bf16.msra.mxu0 %v2337
    %3362 = vmatpush.bf16.msra.mxu0 %v2329
    %3363 = vmatpush.bf16.msra.mxu0 %v2321
    %3364 = vmatmul.bf16.gmra.mxu0 %v642
    %v3365 = vpop.f32.mrf.mxu0
    %v3366 = vadd.f32 %v3352, %v3365
    %v3367 = vpop.f32.mrf.mxu0
    %v3368 = vadd.f32 %v3354, %v3367
    %3369 = vdwg.mxu0
    %3370 = vmatpush.bf16.msra.mxu0 %v2441
    %3371 = vmatpush.bf16.msra.mxu0 %v2433
    %3372 = vmatpush.bf16.msra.mxu0 %v2425
    %3373 = vmatpush.bf16.msra.mxu0 %v2417
    %3374 = vmatpush.bf16.msra.mxu0 %v2409
    %3375 = vmatpush.bf16.msra.mxu0 %v2401
    %3376 = vmatpush.bf16.msra.mxu0 %v2393
    %3377 = vmatpush.bf16.msra.mxu0 %v2385
    %3378 = vmatmul.bf16.gmra.mxu0 %v643
    %v3379 = vpop.f32.mrf.mxu0
    %v3380 = vadd.f32 %v3366, %v3379
    %v3381 = vpop.f32.mrf.mxu0
    %v3382 = vadd.f32 %v3368, %v3381
    %3383 = vdwg.mxu0
    %3384 = vmatpush.bf16.msra.mxu0 %v2505
    %3385 = vmatpush.bf16.msra.mxu0 %v2497
    %3386 = vmatpush.bf16.msra.mxu0 %v2489
    %3387 = vmatpush.bf16.msra.mxu0 %v2481
    %3388 = vmatpush.bf16.msra.mxu0 %v2473
    %3389 = vmatpush.bf16.msra.mxu0 %v2465
    %3390 = vmatpush.bf16.msra.mxu0 %v2457
    %3391 = vmatpush.bf16.msra.mxu0 %v2449
    %3392 = vmatmul.bf16.gmra.mxu0 %v644
    %v3393 = vpop.f32.mrf.mxu0
    %v3394 = vadd.f32 %v3380, %v3393
    %v3395 = vpop.f32.mrf.mxu0
    %v3396 = vadd.f32 %v3382, %v3395
    %3397 = vdwg.mxu0
    %3398 = vmatpush.bf16.msra.mxu0 %v2569
    %3399 = vmatpush.bf16.msra.mxu0 %v2561
    %3400 = vmatpush.bf16.msra.mxu0 %v2553
    %3401 = vmatpush.bf16.msra.mxu0 %v2545
    %3402 = vmatpush.bf16.msra.mxu0 %v2537
    %3403 = vmatpush.bf16.msra.mxu0 %v2529
    %3404 = vmatpush.bf16.msra.mxu0 %v2521
    %3405 = vmatpush.bf16.msra.mxu0 %v2513
    %3406 = vmatmul.bf16.gmra.mxu0 %v645
    %v3407 = vpop.f32.mrf.mxu0
    %v3408 = vadd.f32 %v3394, %v3407
    %v3409 = vpop.f32.mrf.mxu0
    %v3410 = vadd.f32 %v3396, %v3409
    %3411 = vdwg.mxu0
    %3412 = vmatpush.bf16.msra.mxu0 %v2633
    %3413 = vmatpush.bf16.msra.mxu0 %v2625
    %3414 = vmatpush.bf16.msra.mxu0 %v2617
    %3415 = vmatpush.bf16.msra.mxu0 %v2609
    %3416 = vmatpush.bf16.msra.mxu0 %v2601
    %3417 = vmatpush.bf16.msra.mxu0 %v2593
    %3418 = vmatpush.bf16.msra.mxu0 %v2585
    %3419 = vmatpush.bf16.msra.mxu0 %v2577
    %3420 = vmatmul.bf16.gmra.mxu0 %v646
    %v3421 = vpop.f32.mrf.mxu0
    %v3422 = vadd.f32 %v3408, %v3421
    %v3423 = vpop.f32.mrf.mxu0
    %v3424 = vadd.f32 %v3410, %v3423
    %3425 = vdwg.mxu0
    %3426 = vmatpush.bf16.msra.mxu0 %v2697
    %3427 = vmatpush.bf16.msra.mxu0 %v2689
    %3428 = vmatpush.bf16.msra.mxu0 %v2681
    %3429 = vmatpush.bf16.msra.mxu0 %v2673
    %3430 = vmatpush.bf16.msra.mxu0 %v2665
    %3431 = vmatpush.bf16.msra.mxu0 %v2657
    %3432 = vmatpush.bf16.msra.mxu0 %v2649
    %3433 = vmatpush.bf16.msra.mxu0 %v2641
    %3434 = vmatmul.bf16.gmra.mxu0 %v647
    %v3435 = vpop.f32.mrf.mxu0
    %v3436 = vadd.f32 %v3422, %v3435
    %v3437 = vpop.f32.mrf.mxu0
    %v3438 = vadd.f32 %v3424, %v3437
    %3439 = vdwg.mxu0
    %3440 = vmatpush.bf16.msra.mxu0 %v2250
    %3441 = vmatpush.bf16.msra.mxu0 %v2242
    %3442 = vmatpush.bf16.msra.mxu0 %v2234
    %3443 = vmatpush.bf16.msra.mxu0 %v2226
    %3444 = vmatpush.bf16.msra.mxu0 %v2218
    %3445 = vmatpush.bf16.msra.mxu0 %v2210
    %3446 = vmatpush.bf16.msra.mxu0 %v2202
    %3447 = vmatpush.bf16.msra.mxu0 %v2194
    %3448 = vmatmul.bf16.gmra.mxu0 %v640
    %v3449 = vpop.f32.mrf.mxu0
    %v3450 = vadd.f32 0.0, %v3449
    %v3451 = vpop.f32.mrf.mxu0
    %v3452 = vadd.f32 0.0, %v3451
    %3453 = vdwg.mxu0
    %3454 = vmatpush.bf16.msra.mxu0 %v2314
    %3455 = vmatpush.bf16.msra.mxu0 %v2306
    %3456 = vmatpush.bf16.msra.mxu0 %v2298
    %3457 = vmatpush.bf16.msra.mxu0 %v2290
    %3458 = vmatpush.bf16.msra.mxu0 %v2282
    %3459 = vmatpush.bf16.msra.mxu0 %v2274
    %3460 = vmatpush.bf16.msra.mxu0 %v2266
    %3461 = vmatpush.bf16.msra.mxu0 %v2258
    %3462 = vmatmul.bf16.gmra.mxu0 %v641
    %v3463 = vpop.f32.mrf.mxu0
    %v3464 = vadd.f32 %v3450, %v3463
    %v3465 = vpop.f32.mrf.mxu0
    %v3466 = vadd.f32 %v3452, %v3465
    %3467 = vdwg.mxu0
    %3468 = vmatpush.bf16.msra.mxu0 %v2378
    %3469 = vmatpush.bf16.msra.mxu0 %v2370
    %3470 = vmatpush.bf16.msra.mxu0 %v2362
    %3471 = vmatpush.bf16.msra.mxu0 %v2354
    %3472 = vmatpush.bf16.msra.mxu0 %v2346
    %3473 = vmatpush.bf16.msra.mxu0 %v2338
    %3474 = vmatpush.bf16.msra.mxu0 %v2330
    %3475 = vmatpush.bf16.msra.mxu0 %v2322
    %3476 = vmatmul.bf16.gmra.mxu0 %v642
    %v3477 = vpop.f32.mrf.mxu0
    %v3478 = vadd.f32 %v3464, %v3477
    %v3479 = vpop.f32.mrf.mxu0
    %v3480 = vadd.f32 %v3466, %v3479
    %3481 = vdwg.mxu0
    %3482 = vmatpush.bf16.msra.mxu0 %v2442
    %3483 = vmatpush.bf16.msra.mxu0 %v2434
    %3484 = vmatpush.bf16.msra.mxu0 %v2426
    %3485 = vmatpush.bf16.msra.mxu0 %v2418
    %3486 = vmatpush.bf16.msra.mxu0 %v2410
    %3487 = vmatpush.bf16.msra.mxu0 %v2402
    %3488 = vmatpush.bf16.msra.mxu0 %v2394
    %3489 = vmatpush.bf16.msra.mxu0 %v2386
    %3490 = vmatmul.bf16.gmra.mxu0 %v643
    %v3491 = vpop.f32.mrf.mxu0
    %v3492 = vadd.f32 %v3478, %v3491
    %v3493 = vpop.f32.mrf.mxu0
    %v3494 = vadd.f32 %v3480, %v3493
    %3495 = vdwg.mxu0
    %3496 = vmatpush.bf16.msra.mxu0 %v2506
    %3497 = vmatpush.bf16.msra.mxu0 %v2498
    %3498 = vmatpush.bf16.msra.mxu0 %v2490
    %3499 = vmatpush.bf16.msra.mxu0 %v2482
    %3500 = vmatpush.bf16.msra.mxu0 %v2474
    %3501 = vmatpush.bf16.msra.mxu0 %v2466
    %3502 = vmatpush.bf16.msra.mxu0 %v2458
    %3503 = vmatpush.bf16.msra.mxu0 %v2450
    %3504 = vmatmul.bf16.gmra.mxu0 %v644
    %v3505 = vpop.f32.mrf.mxu0
    %v3506 = vadd.f32 %v3492, %v3505
    %v3507 = vpop.f32.mrf.mxu0
    %v3508 = vadd.f32 %v3494, %v3507
    %3509 = vdwg.mxu0
    %3510 = vmatpush.bf16.msra.mxu0 %v2570
    %3511 = vmatpush.bf16.msra.mxu0 %v2562
    %3512 = vmatpush.bf16.msra.mxu0 %v2554
    %3513 = vmatpush.bf16.msra.mxu0 %v2546
    %3514 = vmatpush.bf16.msra.mxu0 %v2538
    %3515 = vmatpush.bf16.msra.mxu0 %v2530
    %3516 = vmatpush.bf16.msra.mxu0 %v2522
    %3517 = vmatpush.bf16.msra.mxu0 %v2514
    %3518 = vmatmul.bf16.gmra.mxu0 %v645
    %v3519 = vpop.f32.mrf.mxu0
    %v3520 = vadd.f32 %v3506, %v3519
    %v3521 = vpop.f32.mrf.mxu0
    %v3522 = vadd.f32 %v3508, %v3521
    %3523 = vdwg.mxu0
    %3524 = vmatpush.bf16.msra.mxu0 %v2634
    %3525 = vmatpush.bf16.msra.mxu0 %v2626
    %3526 = vmatpush.bf16.msra.mxu0 %v2618
    %3527 = vmatpush.bf16.msra.mxu0 %v2610
    %3528 = vmatpush.bf16.msra.mxu0 %v2602
    %3529 = vmatpush.bf16.msra.mxu0 %v2594
    %3530 = vmatpush.bf16.msra.mxu0 %v2586
    %3531 = vmatpush.bf16.msra.mxu0 %v2578
    %3532 = vmatmul.bf16.gmra.mxu0 %v646
    %v3533 = vpop.f32.mrf.mxu0
    %v3534 = vadd.f32 %v3520, %v3533
    %v3535 = vpop.f32.mrf.mxu0
    %v3536 = vadd.f32 %v3522, %v3535
    %3537 = vdwg.mxu0
    %3538 = vmatpush.bf16.msra.mxu0 %v2698
    %3539 = vmatpush.bf16.msra.mxu0 %v2690
    %3540 = vmatpush.bf16.msra.mxu0 %v2682
    %3541 = vmatpush.bf16.msra.mxu0 %v2674
    %3542 = vmatpush.bf16.msra.mxu0 %v2666
    %3543 = vmatpush.bf16.msra.mxu0 %v2658
    %3544 = vmatpush.bf16.msra.mxu0 %v2650
    %3545 = vmatpush.bf16.msra.mxu0 %v2642
    %3546 = vmatmul.bf16.gmra.mxu0 %v647
    %v3547 = vpop.f32.mrf.mxu0
    %v3548 = vadd.f32 %v3534, %v3547
    %v3549 = vpop.f32.mrf.mxu0
    %v3550 = vadd.f32 %v3536, %v3549
    %3551 = vdwg.mxu0
    %3552 = vmatpush.bf16.msra.mxu0 %v2251
    %3553 = vmatpush.bf16.msra.mxu0 %v2243
    %3554 = vmatpush.bf16.msra.mxu0 %v2235
    %3555 = vmatpush.bf16.msra.mxu0 %v2227
    %3556 = vmatpush.bf16.msra.mxu0 %v2219
    %3557 = vmatpush.bf16.msra.mxu0 %v2211
    %3558 = vmatpush.bf16.msra.mxu0 %v2203
    %3559 = vmatpush.bf16.msra.mxu0 %v2195
    %3560 = vmatmul.bf16.gmra.mxu0 %v640
    %v3561 = vpop.f32.mrf.mxu0
    %v3562 = vadd.f32 0.0, %v3561
    %v3563 = vpop.f32.mrf.mxu0
    %v3564 = vadd.f32 0.0, %v3563
    %3565 = vdwg.mxu0
    %3566 = vmatpush.bf16.msra.mxu0 %v2315
    %3567 = vmatpush.bf16.msra.mxu0 %v2307
    %3568 = vmatpush.bf16.msra.mxu0 %v2299
    %3569 = vmatpush.bf16.msra.mxu0 %v2291
    %3570 = vmatpush.bf16.msra.mxu0 %v2283
    %3571 = vmatpush.bf16.msra.mxu0 %v2275
    %3572 = vmatpush.bf16.msra.mxu0 %v2267
    %3573 = vmatpush.bf16.msra.mxu0 %v2259
    %3574 = vmatmul.bf16.gmra.mxu0 %v641
    %v3575 = vpop.f32.mrf.mxu0
    %v3576 = vadd.f32 %v3562, %v3575
    %v3577 = vpop.f32.mrf.mxu0
    %v3578 = vadd.f32 %v3564, %v3577
    %3579 = vdwg.mxu0
    %3580 = vmatpush.bf16.msra.mxu0 %v2379
    %3581 = vmatpush.bf16.msra.mxu0 %v2371
    %3582 = vmatpush.bf16.msra.mxu0 %v2363
    %3583 = vmatpush.bf16.msra.mxu0 %v2355
    %3584 = vmatpush.bf16.msra.mxu0 %v2347
    %3585 = vmatpush.bf16.msra.mxu0 %v2339
    %3586 = vmatpush.bf16.msra.mxu0 %v2331
    %3587 = vmatpush.bf16.msra.mxu0 %v2323
    %3588 = vmatmul.bf16.gmra.mxu0 %v642
    %v3589 = vpop.f32.mrf.mxu0
    %v3590 = vadd.f32 %v3576, %v3589
    %v3591 = vpop.f32.mrf.mxu0
    %v3592 = vadd.f32 %v3578, %v3591
    %3593 = vdwg.mxu0
    %3594 = vmatpush.bf16.msra.mxu0 %v2443
    %3595 = vmatpush.bf16.msra.mxu0 %v2435
    %3596 = vmatpush.bf16.msra.mxu0 %v2427
    %3597 = vmatpush.bf16.msra.mxu0 %v2419
    %3598 = vmatpush.bf16.msra.mxu0 %v2411
    %3599 = vmatpush.bf16.msra.mxu0 %v2403
    %3600 = vmatpush.bf16.msra.mxu0 %v2395
    %3601 = vmatpush.bf16.msra.mxu0 %v2387
    %3602 = vmatmul.bf16.gmra.mxu0 %v643
    %v3603 = vpop.f32.mrf.mxu0
    %v3604 = vadd.f32 %v3590, %v3603
    %v3605 = vpop.f32.mrf.mxu0
    %v3606 = vadd.f32 %v3592, %v3605
    %3607 = vdwg.mxu0
    %3608 = vmatpush.bf16.msra.mxu0 %v2507
    %3609 = vmatpush.bf16.msra.mxu0 %v2499
    %3610 = vmatpush.bf16.msra.mxu0 %v2491
    %3611 = vmatpush.bf16.msra.mxu0 %v2483
    %3612 = vmatpush.bf16.msra.mxu0 %v2475
    %3613 = vmatpush.bf16.msra.mxu0 %v2467
    %3614 = vmatpush.bf16.msra.mxu0 %v2459
    %3615 = vmatpush.bf16.msra.mxu0 %v2451
    %3616 = vmatmul.bf16.gmra.mxu0 %v644
    %v3617 = vpop.f32.mrf.mxu0
    %v3618 = vadd.f32 %v3604, %v3617
    %v3619 = vpop.f32.mrf.mxu0
    %v3620 = vadd.f32 %v3606, %v3619
    %3621 = vdwg.mxu0
    %3622 = vmatpush.bf16.msra.mxu0 %v2571
    %3623 = vmatpush.bf16.msra.mxu0 %v2563
    %3624 = vmatpush.bf16.msra.mxu0 %v2555
    %3625 = vmatpush.bf16.msra.mxu0 %v2547
    %3626 = vmatpush.bf16.msra.mxu0 %v2539
    %3627 = vmatpush.bf16.msra.mxu0 %v2531
    %3628 = vmatpush.bf16.msra.mxu0 %v2523
    %3629 = vmatpush.bf16.msra.mxu0 %v2515
    %3630 = vmatmul.bf16.gmra.mxu0 %v645
    %v3631 = vpop.f32.mrf.mxu0
    %v3632 = vadd.f32 %v3618, %v3631
    %v3633 = vpop.f32.mrf.mxu0
    %v3634 = vadd.f32 %v3620, %v3633
    %3635 = vdwg.mxu0
    %3636 = vmatpush.bf16.msra.mxu0 %v2635
    %3637 = vmatpush.bf16.msra.mxu0 %v2627
    %3638 = vmatpush.bf16.msra.mxu0 %v2619
    %3639 = vmatpush.bf16.msra.mxu0 %v2611
    %3640 = vmatpush.bf16.msra.mxu0 %v2603
    %3641 = vmatpush.bf16.msra.mxu0 %v2595
    %3642 = vmatpush.bf16.msra.mxu0 %v2587
    %3643 = vmatpush.bf16.msra.mxu0 %v2579
    %3644 = vmatmul.bf16.gmra.mxu0 %v646
    %v3645 = vpop.f32.mrf.mxu0
    %v3646 = vadd.f32 %v3632, %v3645
    %v3647 = vpop.f32.mrf.mxu0
    %v3648 = vadd.f32 %v3634, %v3647
    %3649 = vdwg.mxu0
    %3650 = vmatpush.bf16.msra.mxu0 %v2699
    %3651 = vmatpush.bf16.msra.mxu0 %v2691
    %3652 = vmatpush.bf16.msra.mxu0 %v2683
    %3653 = vmatpush.bf16.msra.mxu0 %v2675
    %3654 = vmatpush.bf16.msra.mxu0 %v2667
    %3655 = vmatpush.bf16.msra.mxu0 %v2659
    %3656 = vmatpush.bf16.msra.mxu0 %v2651
    %3657 = vmatpush.bf16.msra.mxu0 %v2643
    %3658 = vmatmul.bf16.gmra.mxu0 %v647
    %v3659 = vpop.f32.mrf.mxu0
    %v3660 = vadd.f32 %v3646, %v3659
    %v3661 = vpop.f32.mrf.mxu0
    %v3662 = vadd.f32 %v3648, %v3661
    %3663 = vdwg.mxu0
    %3664 = vmatpush.bf16.msra.mxu0 %v2252
    %3665 = vmatpush.bf16.msra.mxu0 %v2244
    %3666 = vmatpush.bf16.msra.mxu0 %v2236
    %3667 = vmatpush.bf16.msra.mxu0 %v2228
    %3668 = vmatpush.bf16.msra.mxu0 %v2220
    %3669 = vmatpush.bf16.msra.mxu0 %v2212
    %3670 = vmatpush.bf16.msra.mxu0 %v2204
    %3671 = vmatpush.bf16.msra.mxu0 %v2196
    %3672 = vmatmul.bf16.gmra.mxu0 %v640
    %v3673 = vpop.f32.mrf.mxu0
    %v3674 = vadd.f32 0.0, %v3673
    %v3675 = vpop.f32.mrf.mxu0
    %v3676 = vadd.f32 0.0, %v3675
    %3677 = vdwg.mxu0
    %3678 = vmatpush.bf16.msra.mxu0 %v2316
    %3679 = vmatpush.bf16.msra.mxu0 %v2308
    %3680 = vmatpush.bf16.msra.mxu0 %v2300
    %3681 = vmatpush.bf16.msra.mxu0 %v2292
    %3682 = vmatpush.bf16.msra.mxu0 %v2284
    %3683 = vmatpush.bf16.msra.mxu0 %v2276
    %3684 = vmatpush.bf16.msra.mxu0 %v2268
    %3685 = vmatpush.bf16.msra.mxu0 %v2260
    %3686 = vmatmul.bf16.gmra.mxu0 %v641
    %v3687 = vpop.f32.mrf.mxu0
    %v3688 = vadd.f32 %v3674, %v3687
    %v3689 = vpop.f32.mrf.mxu0
    %v3690 = vadd.f32 %v3676, %v3689
    %3691 = vdwg.mxu0
    %3692 = vmatpush.bf16.msra.mxu0 %v2380
    %3693 = vmatpush.bf16.msra.mxu0 %v2372
    %3694 = vmatpush.bf16.msra.mxu0 %v2364
    %3695 = vmatpush.bf16.msra.mxu0 %v2356
    %3696 = vmatpush.bf16.msra.mxu0 %v2348
    %3697 = vmatpush.bf16.msra.mxu0 %v2340
    %3698 = vmatpush.bf16.msra.mxu0 %v2332
    %3699 = vmatpush.bf16.msra.mxu0 %v2324
    %3700 = vmatmul.bf16.gmra.mxu0 %v642
    %v3701 = vpop.f32.mrf.mxu0
    %v3702 = vadd.f32 %v3688, %v3701
    %v3703 = vpop.f32.mrf.mxu0
    %v3704 = vadd.f32 %v3690, %v3703
    %3705 = vdwg.mxu0
    %3706 = vmatpush.bf16.msra.mxu0 %v2444
    %3707 = vmatpush.bf16.msra.mxu0 %v2436
    %3708 = vmatpush.bf16.msra.mxu0 %v2428
    %3709 = vmatpush.bf16.msra.mxu0 %v2420
    %3710 = vmatpush.bf16.msra.mxu0 %v2412
    %3711 = vmatpush.bf16.msra.mxu0 %v2404
    %3712 = vmatpush.bf16.msra.mxu0 %v2396
    %3713 = vmatpush.bf16.msra.mxu0 %v2388
    %3714 = vmatmul.bf16.gmra.mxu0 %v643
    %v3715 = vpop.f32.mrf.mxu0
    %v3716 = vadd.f32 %v3702, %v3715
    %v3717 = vpop.f32.mrf.mxu0
    %v3718 = vadd.f32 %v3704, %v3717
    %3719 = vdwg.mxu0
    %3720 = vmatpush.bf16.msra.mxu0 %v2508
    %3721 = vmatpush.bf16.msra.mxu0 %v2500
    %3722 = vmatpush.bf16.msra.mxu0 %v2492
    %3723 = vmatpush.bf16.msra.mxu0 %v2484
    %3724 = vmatpush.bf16.msra.mxu0 %v2476
    %3725 = vmatpush.bf16.msra.mxu0 %v2468
    %3726 = vmatpush.bf16.msra.mxu0 %v2460
    %3727 = vmatpush.bf16.msra.mxu0 %v2452
    %3728 = vmatmul.bf16.gmra.mxu0 %v644
    %v3729 = vpop.f32.mrf.mxu0
    %v3730 = vadd.f32 %v3716, %v3729
    %v3731 = vpop.f32.mrf.mxu0
    %v3732 = vadd.f32 %v3718, %v3731
    %3733 = vdwg.mxu0
    %3734 = vmatpush.bf16.msra.mxu0 %v2572
    %3735 = vmatpush.bf16.msra.mxu0 %v2564
    %3736 = vmatpush.bf16.msra.mxu0 %v2556
    %3737 = vmatpush.bf16.msra.mxu0 %v2548
    %3738 = vmatpush.bf16.msra.mxu0 %v2540
    %3739 = vmatpush.bf16.msra.mxu0 %v2532
    %3740 = vmatpush.bf16.msra.mxu0 %v2524
    %3741 = vmatpush.bf16.msra.mxu0 %v2516
    %3742 = vmatmul.bf16.gmra.mxu0 %v645
    %v3743 = vpop.f32.mrf.mxu0
    %v3744 = vadd.f32 %v3730, %v3743
    %v3745 = vpop.f32.mrf.mxu0
    %v3746 = vadd.f32 %v3732, %v3745
    %3747 = vdwg.mxu0
    %3748 = vmatpush.bf16.msra.mxu0 %v2636
    %3749 = vmatpush.bf16.msra.mxu0 %v2628
    %3750 = vmatpush.bf16.msra.mxu0 %v2620
    %3751 = vmatpush.bf16.msra.mxu0 %v2612
    %3752 = vmatpush.bf16.msra.mxu0 %v2604
    %3753 = vmatpush.bf16.msra.mxu0 %v2596
    %3754 = vmatpush.bf16.msra.mxu0 %v2588
    %3755 = vmatpush.bf16.msra.mxu0 %v2580
    %3756 = vmatmul.bf16.gmra.mxu0 %v646
    %v3757 = vpop.f32.mrf.mxu0
    %v3758 = vadd.f32 %v3744, %v3757
    %v3759 = vpop.f32.mrf.mxu0
    %v3760 = vadd.f32 %v3746, %v3759
    %3761 = vdwg.mxu0
    %3762 = vmatpush.bf16.msra.mxu0 %v2700
    %3763 = vmatpush.bf16.msra.mxu0 %v2692
    %3764 = vmatpush.bf16.msra.mxu0 %v2684
    %3765 = vmatpush.bf16.msra.mxu0 %v2676
    %3766 = vmatpush.bf16.msra.mxu0 %v2668
    %3767 = vmatpush.bf16.msra.mxu0 %v2660
    %3768 = vmatpush.bf16.msra.mxu0 %v2652
    %3769 = vmatpush.bf16.msra.mxu0 %v2644
    %3770 = vmatmul.bf16.gmra.mxu0 %v647
    %v3771 = vpop.f32.mrf.mxu0
    %v3772 = vadd.f32 %v3758, %v3771
    %v3773 = vpop.f32.mrf.mxu0
    %v3774 = vadd.f32 %v3760, %v3773
    %3775 = vdwg.mxu0
    %3776 = vmatpush.bf16.msra.mxu0 %v2253
    %3777 = vmatpush.bf16.msra.mxu0 %v2245
    %3778 = vmatpush.bf16.msra.mxu0 %v2237
    %3779 = vmatpush.bf16.msra.mxu0 %v2229
    %3780 = vmatpush.bf16.msra.mxu0 %v2221
    %3781 = vmatpush.bf16.msra.mxu0 %v2213
    %3782 = vmatpush.bf16.msra.mxu0 %v2205
    %3783 = vmatpush.bf16.msra.mxu0 %v2197
    %3784 = vmatmul.bf16.gmra.mxu0 %v640
    %v3785 = vpop.f32.mrf.mxu0
    %v3786 = vadd.f32 0.0, %v3785
    %v3787 = vpop.f32.mrf.mxu0
    %v3788 = vadd.f32 0.0, %v3787
    %3789 = vdwg.mxu0
    %3790 = vmatpush.bf16.msra.mxu0 %v2317
    %3791 = vmatpush.bf16.msra.mxu0 %v2309
    %3792 = vmatpush.bf16.msra.mxu0 %v2301
    %3793 = vmatpush.bf16.msra.mxu0 %v2293
    %3794 = vmatpush.bf16.msra.mxu0 %v2285
    %3795 = vmatpush.bf16.msra.mxu0 %v2277
    %3796 = vmatpush.bf16.msra.mxu0 %v2269
    %3797 = vmatpush.bf16.msra.mxu0 %v2261
    %3798 = vmatmul.bf16.gmra.mxu0 %v641
    %v3799 = vpop.f32.mrf.mxu0
    %v3800 = vadd.f32 %v3786, %v3799
    %v3801 = vpop.f32.mrf.mxu0
    %v3802 = vadd.f32 %v3788, %v3801
    %3803 = vdwg.mxu0
    %3804 = vmatpush.bf16.msra.mxu0 %v2381
    %3805 = vmatpush.bf16.msra.mxu0 %v2373
    %3806 = vmatpush.bf16.msra.mxu0 %v2365
    %3807 = vmatpush.bf16.msra.mxu0 %v2357
    %3808 = vmatpush.bf16.msra.mxu0 %v2349
    %3809 = vmatpush.bf16.msra.mxu0 %v2341
    %3810 = vmatpush.bf16.msra.mxu0 %v2333
    %3811 = vmatpush.bf16.msra.mxu0 %v2325
    %3812 = vmatmul.bf16.gmra.mxu0 %v642
    %v3813 = vpop.f32.mrf.mxu0
    %v3814 = vadd.f32 %v3800, %v3813
    %v3815 = vpop.f32.mrf.mxu0
    %v3816 = vadd.f32 %v3802, %v3815
    %3817 = vdwg.mxu0
    %3818 = vmatpush.bf16.msra.mxu0 %v2445
    %3819 = vmatpush.bf16.msra.mxu0 %v2437
    %3820 = vmatpush.bf16.msra.mxu0 %v2429
    %3821 = vmatpush.bf16.msra.mxu0 %v2421
    %3822 = vmatpush.bf16.msra.mxu0 %v2413
    %3823 = vmatpush.bf16.msra.mxu0 %v2405
    %3824 = vmatpush.bf16.msra.mxu0 %v2397
    %3825 = vmatpush.bf16.msra.mxu0 %v2389
    %3826 = vmatmul.bf16.gmra.mxu0 %v643
    %v3827 = vpop.f32.mrf.mxu0
    %v3828 = vadd.f32 %v3814, %v3827
    %v3829 = vpop.f32.mrf.mxu0
    %v3830 = vadd.f32 %v3816, %v3829
    %3831 = vdwg.mxu0
    %3832 = vmatpush.bf16.msra.mxu0 %v2509
    %3833 = vmatpush.bf16.msra.mxu0 %v2501
    %3834 = vmatpush.bf16.msra.mxu0 %v2493
    %3835 = vmatpush.bf16.msra.mxu0 %v2485
    %3836 = vmatpush.bf16.msra.mxu0 %v2477
    %3837 = vmatpush.bf16.msra.mxu0 %v2469
    %3838 = vmatpush.bf16.msra.mxu0 %v2461
    %3839 = vmatpush.bf16.msra.mxu0 %v2453
    %3840 = vmatmul.bf16.gmra.mxu0 %v644
    %v3841 = vpop.f32.mrf.mxu0
    %v3842 = vadd.f32 %v3828, %v3841
    %v3843 = vpop.f32.mrf.mxu0
    %v3844 = vadd.f32 %v3830, %v3843
    %3845 = vdwg.mxu0
    %3846 = vmatpush.bf16.msra.mxu0 %v2573
    %3847 = vmatpush.bf16.msra.mxu0 %v2565
    %3848 = vmatpush.bf16.msra.mxu0 %v2557
    %3849 = vmatpush.bf16.msra.mxu0 %v2549
    %3850 = vmatpush.bf16.msra.mxu0 %v2541
    %3851 = vmatpush.bf16.msra.mxu0 %v2533
    %3852 = vmatpush.bf16.msra.mxu0 %v2525
    %3853 = vmatpush.bf16.msra.mxu0 %v2517
    %3854 = vmatmul.bf16.gmra.mxu0 %v645
    %v3855 = vpop.f32.mrf.mxu0
    %v3856 = vadd.f32 %v3842, %v3855
    %v3857 = vpop.f32.mrf.mxu0
    %v3858 = vadd.f32 %v3844, %v3857
    %3859 = vdwg.mxu0
    %3860 = vmatpush.bf16.msra.mxu0 %v2637
    %3861 = vmatpush.bf16.msra.mxu0 %v2629
    %3862 = vmatpush.bf16.msra.mxu0 %v2621
    %3863 = vmatpush.bf16.msra.mxu0 %v2613
    %3864 = vmatpush.bf16.msra.mxu0 %v2605
    %3865 = vmatpush.bf16.msra.mxu0 %v2597
    %3866 = vmatpush.bf16.msra.mxu0 %v2589
    %3867 = vmatpush.bf16.msra.mxu0 %v2581
    %3868 = vmatmul.bf16.gmra.mxu0 %v646
    %v3869 = vpop.f32.mrf.mxu0
    %v3870 = vadd.f32 %v3856, %v3869
    %v3871 = vpop.f32.mrf.mxu0
    %v3872 = vadd.f32 %v3858, %v3871
    %3873 = vdwg.mxu0
    %3874 = vmatpush.bf16.msra.mxu0 %v2701
    %3875 = vmatpush.bf16.msra.mxu0 %v2693
    %3876 = vmatpush.bf16.msra.mxu0 %v2685
    %3877 = vmatpush.bf16.msra.mxu0 %v2677
    %3878 = vmatpush.bf16.msra.mxu0 %v2669
    %3879 = vmatpush.bf16.msra.mxu0 %v2661
    %3880 = vmatpush.bf16.msra.mxu0 %v2653
    %3881 = vmatpush.bf16.msra.mxu0 %v2645
    %3882 = vmatmul.bf16.gmra.mxu0 %v647
    %v3883 = vpop.f32.mrf.mxu0
    %v3884 = vadd.f32 %v3870, %v3883
    %v3885 = vpop.f32.mrf.mxu0
    %v3886 = vadd.f32 %v3872, %v3885
    %3887 = vdwg.mxu0
    %3888 = vmatpush.bf16.msra.mxu0 %v2254
    %3889 = vmatpush.bf16.msra.mxu0 %v2246
    %3890 = vmatpush.bf16.msra.mxu0 %v2238
    %3891 = vmatpush.bf16.msra.mxu0 %v2230
    %3892 = vmatpush.bf16.msra.mxu0 %v2222
    %3893 = vmatpush.bf16.msra.mxu0 %v2214
    %3894 = vmatpush.bf16.msra.mxu0 %v2206
    %3895 = vmatpush.bf16.msra.mxu0 %v2198
    %3896 = vmatmul.bf16.gmra.mxu0 %v640
    %v3897 = vpop.f32.mrf.mxu0
    %v3898 = vadd.f32 0.0, %v3897
    %v3899 = vpop.f32.mrf.mxu0
    %v3900 = vadd.f32 0.0, %v3899
    %3901 = vdwg.mxu0
    %3902 = vmatpush.bf16.msra.mxu0 %v2318
    %3903 = vmatpush.bf16.msra.mxu0 %v2310
    %3904 = vmatpush.bf16.msra.mxu0 %v2302
    %3905 = vmatpush.bf16.msra.mxu0 %v2294
    %3906 = vmatpush.bf16.msra.mxu0 %v2286
    %3907 = vmatpush.bf16.msra.mxu0 %v2278
    %3908 = vmatpush.bf16.msra.mxu0 %v2270
    %3909 = vmatpush.bf16.msra.mxu0 %v2262
    %3910 = vmatmul.bf16.gmra.mxu0 %v641
    %v3911 = vpop.f32.mrf.mxu0
    %v3912 = vadd.f32 %v3898, %v3911
    %v3913 = vpop.f32.mrf.mxu0
    %v3914 = vadd.f32 %v3900, %v3913
    %3915 = vdwg.mxu0
    %3916 = vmatpush.bf16.msra.mxu0 %v2382
    %3917 = vmatpush.bf16.msra.mxu0 %v2374
    %3918 = vmatpush.bf16.msra.mxu0 %v2366
    %3919 = vmatpush.bf16.msra.mxu0 %v2358
    %3920 = vmatpush.bf16.msra.mxu0 %v2350
    %3921 = vmatpush.bf16.msra.mxu0 %v2342
    %3922 = vmatpush.bf16.msra.mxu0 %v2334
    %3923 = vmatpush.bf16.msra.mxu0 %v2326
    %3924 = vmatmul.bf16.gmra.mxu0 %v642
    %v3925 = vpop.f32.mrf.mxu0
    %v3926 = vadd.f32 %v3912, %v3925
    %v3927 = vpop.f32.mrf.mxu0
    %v3928 = vadd.f32 %v3914, %v3927
    %3929 = vdwg.mxu0
    %3930 = vmatpush.bf16.msra.mxu0 %v2446
    %3931 = vmatpush.bf16.msra.mxu0 %v2438
    %3932 = vmatpush.bf16.msra.mxu0 %v2430
    %3933 = vmatpush.bf16.msra.mxu0 %v2422
    %3934 = vmatpush.bf16.msra.mxu0 %v2414
    %3935 = vmatpush.bf16.msra.mxu0 %v2406
    %3936 = vmatpush.bf16.msra.mxu0 %v2398
    %3937 = vmatpush.bf16.msra.mxu0 %v2390
    %3938 = vmatmul.bf16.gmra.mxu0 %v643
    %v3939 = vpop.f32.mrf.mxu0
    %v3940 = vadd.f32 %v3926, %v3939
    %v3941 = vpop.f32.mrf.mxu0
    %v3942 = vadd.f32 %v3928, %v3941
    %3943 = vdwg.mxu0
    %3944 = vmatpush.bf16.msra.mxu0 %v2510
    %3945 = vmatpush.bf16.msra.mxu0 %v2502
    %3946 = vmatpush.bf16.msra.mxu0 %v2494
    %3947 = vmatpush.bf16.msra.mxu0 %v2486
    %3948 = vmatpush.bf16.msra.mxu0 %v2478
    %3949 = vmatpush.bf16.msra.mxu0 %v2470
    %3950 = vmatpush.bf16.msra.mxu0 %v2462
    %3951 = vmatpush.bf16.msra.mxu0 %v2454
    %3952 = vmatmul.bf16.gmra.mxu0 %v644
    %v3953 = vpop.f32.mrf.mxu0
    %v3954 = vadd.f32 %v3940, %v3953
    %v3955 = vpop.f32.mrf.mxu0
    %v3956 = vadd.f32 %v3942, %v3955
    %3957 = vdwg.mxu0
    %3958 = vmatpush.bf16.msra.mxu0 %v2574
    %3959 = vmatpush.bf16.msra.mxu0 %v2566
    %3960 = vmatpush.bf16.msra.mxu0 %v2558
    %3961 = vmatpush.bf16.msra.mxu0 %v2550
    %3962 = vmatpush.bf16.msra.mxu0 %v2542
    %3963 = vmatpush.bf16.msra.mxu0 %v2534
    %3964 = vmatpush.bf16.msra.mxu0 %v2526
    %3965 = vmatpush.bf16.msra.mxu0 %v2518
    %3966 = vmatmul.bf16.gmra.mxu0 %v645
    %v3967 = vpop.f32.mrf.mxu0
    %v3968 = vadd.f32 %v3954, %v3967
    %v3969 = vpop.f32.mrf.mxu0
    %v3970 = vadd.f32 %v3956, %v3969
    %3971 = vdwg.mxu0
    %3972 = vmatpush.bf16.msra.mxu0 %v2638
    %3973 = vmatpush.bf16.msra.mxu0 %v2630
    %3974 = vmatpush.bf16.msra.mxu0 %v2622
    %3975 = vmatpush.bf16.msra.mxu0 %v2614
    %3976 = vmatpush.bf16.msra.mxu0 %v2606
    %3977 = vmatpush.bf16.msra.mxu0 %v2598
    %3978 = vmatpush.bf16.msra.mxu0 %v2590
    %3979 = vmatpush.bf16.msra.mxu0 %v2582
    %3980 = vmatmul.bf16.gmra.mxu0 %v646
    %v3981 = vpop.f32.mrf.mxu0
    %v3982 = vadd.f32 %v3968, %v3981
    %v3983 = vpop.f32.mrf.mxu0
    %v3984 = vadd.f32 %v3970, %v3983
    %3985 = vdwg.mxu0
    %3986 = vmatpush.bf16.msra.mxu0 %v2702
    %3987 = vmatpush.bf16.msra.mxu0 %v2694
    %3988 = vmatpush.bf16.msra.mxu0 %v2686
    %3989 = vmatpush.bf16.msra.mxu0 %v2678
    %3990 = vmatpush.bf16.msra.mxu0 %v2670
    %3991 = vmatpush.bf16.msra.mxu0 %v2662
    %3992 = vmatpush.bf16.msra.mxu0 %v2654
    %3993 = vmatpush.bf16.msra.mxu0 %v2646
    %3994 = vmatmul.bf16.gmra.mxu0 %v647
    %v3995 = vpop.f32.mrf.mxu0
    %v3996 = vadd.f32 %v3982, %v3995
    %v3997 = vpop.f32.mrf.mxu0
    %v3998 = vadd.f32 %v3984, %v3997
    %3999 = vdwg.mxu0
    %4000 = vmatpush.bf16.msra.mxu0 %v2255
    %4001 = vmatpush.bf16.msra.mxu0 %v2247
    %4002 = vmatpush.bf16.msra.mxu0 %v2239
    %4003 = vmatpush.bf16.msra.mxu0 %v2231
    %4004 = vmatpush.bf16.msra.mxu0 %v2223
    %4005 = vmatpush.bf16.msra.mxu0 %v2215
    %4006 = vmatpush.bf16.msra.mxu0 %v2207
    %4007 = vmatpush.bf16.msra.mxu0 %v2199
    %4008 = vmatmul.bf16.gmra.mxu0 %v640
    %v4009 = vpop.f32.mrf.mxu0
    %v4010 = vadd.f32 0.0, %v4009
    %v4011 = vpop.f32.mrf.mxu0
    %v4012 = vadd.f32 0.0, %v4011
    %4013 = vdwg.mxu0
    %4014 = vmatpush.bf16.msra.mxu0 %v2319
    %4015 = vmatpush.bf16.msra.mxu0 %v2311
    %4016 = vmatpush.bf16.msra.mxu0 %v2303
    %4017 = vmatpush.bf16.msra.mxu0 %v2295
    %4018 = vmatpush.bf16.msra.mxu0 %v2287
    %4019 = vmatpush.bf16.msra.mxu0 %v2279
    %4020 = vmatpush.bf16.msra.mxu0 %v2271
    %4021 = vmatpush.bf16.msra.mxu0 %v2263
    %4022 = vmatmul.bf16.gmra.mxu0 %v641
    %v4023 = vpop.f32.mrf.mxu0
    %v4024 = vadd.f32 %v4010, %v4023
    %v4025 = vpop.f32.mrf.mxu0
    %v4026 = vadd.f32 %v4012, %v4025
    %4027 = vdwg.mxu0
    %4028 = vmatpush.bf16.msra.mxu0 %v2383
    %4029 = vmatpush.bf16.msra.mxu0 %v2375
    %4030 = vmatpush.bf16.msra.mxu0 %v2367
    %4031 = vmatpush.bf16.msra.mxu0 %v2359
    %4032 = vmatpush.bf16.msra.mxu0 %v2351
    %4033 = vmatpush.bf16.msra.mxu0 %v2343
    %4034 = vmatpush.bf16.msra.mxu0 %v2335
    %4035 = vmatpush.bf16.msra.mxu0 %v2327
    %4036 = vmatmul.bf16.gmra.mxu0 %v642
    %v4037 = vpop.f32.mrf.mxu0
    %v4038 = vadd.f32 %v4024, %v4037
    %v4039 = vpop.f32.mrf.mxu0
    %v4040 = vadd.f32 %v4026, %v4039
    %4041 = vdwg.mxu0
    %4042 = vmatpush.bf16.msra.mxu0 %v2447
    %4043 = vmatpush.bf16.msra.mxu0 %v2439
    %4044 = vmatpush.bf16.msra.mxu0 %v2431
    %4045 = vmatpush.bf16.msra.mxu0 %v2423
    %4046 = vmatpush.bf16.msra.mxu0 %v2415
    %4047 = vmatpush.bf16.msra.mxu0 %v2407
    %4048 = vmatpush.bf16.msra.mxu0 %v2399
    %4049 = vmatpush.bf16.msra.mxu0 %v2391
    %4050 = vmatmul.bf16.gmra.mxu0 %v643
    %v4051 = vpop.f32.mrf.mxu0
    %v4052 = vadd.f32 %v4038, %v4051
    %v4053 = vpop.f32.mrf.mxu0
    %v4054 = vadd.f32 %v4040, %v4053
    %4055 = vdwg.mxu0
    %4056 = vmatpush.bf16.msra.mxu0 %v2511
    %4057 = vmatpush.bf16.msra.mxu0 %v2503
    %4058 = vmatpush.bf16.msra.mxu0 %v2495
    %4059 = vmatpush.bf16.msra.mxu0 %v2487
    %4060 = vmatpush.bf16.msra.mxu0 %v2479
    %4061 = vmatpush.bf16.msra.mxu0 %v2471
    %4062 = vmatpush.bf16.msra.mxu0 %v2463
    %4063 = vmatpush.bf16.msra.mxu0 %v2455
    %4064 = vmatmul.bf16.gmra.mxu0 %v644
    %v4065 = vpop.f32.mrf.mxu0
    %v4066 = vadd.f32 %v4052, %v4065
    %v4067 = vpop.f32.mrf.mxu0
    %v4068 = vadd.f32 %v4054, %v4067
    %4069 = vdwg.mxu0
    %4070 = vmatpush.bf16.msra.mxu0 %v2575
    %4071 = vmatpush.bf16.msra.mxu0 %v2567
    %4072 = vmatpush.bf16.msra.mxu0 %v2559
    %4073 = vmatpush.bf16.msra.mxu0 %v2551
    %4074 = vmatpush.bf16.msra.mxu0 %v2543
    %4075 = vmatpush.bf16.msra.mxu0 %v2535
    %4076 = vmatpush.bf16.msra.mxu0 %v2527
    %4077 = vmatpush.bf16.msra.mxu0 %v2519
    %4078 = vmatmul.bf16.gmra.mxu0 %v645
    %v4079 = vpop.f32.mrf.mxu0
    %v4080 = vadd.f32 %v4066, %v4079
    %v4081 = vpop.f32.mrf.mxu0
    %v4082 = vadd.f32 %v4068, %v4081
    %4083 = vdwg.mxu0
    %4084 = vmatpush.bf16.msra.mxu0 %v2639
    %4085 = vmatpush.bf16.msra.mxu0 %v2631
    %4086 = vmatpush.bf16.msra.mxu0 %v2623
    %4087 = vmatpush.bf16.msra.mxu0 %v2615
    %4088 = vmatpush.bf16.msra.mxu0 %v2607
    %4089 = vmatpush.bf16.msra.mxu0 %v2599
    %4090 = vmatpush.bf16.msra.mxu0 %v2591
    %4091 = vmatpush.bf16.msra.mxu0 %v2583
    %4092 = vmatmul.bf16.gmra.mxu0 %v646
    %v4093 = vpop.f32.mrf.mxu0
    %v4094 = vadd.f32 %v4080, %v4093
    %v4095 = vpop.f32.mrf.mxu0
    %v4096 = vadd.f32 %v4082, %v4095
    %4097 = vdwg.mxu0
    %4098 = vmatpush.bf16.msra.mxu0 %v2703
    %4099 = vmatpush.bf16.msra.mxu0 %v2695
    %4100 = vmatpush.bf16.msra.mxu0 %v2687
    %4101 = vmatpush.bf16.msra.mxu0 %v2679
    %4102 = vmatpush.bf16.msra.mxu0 %v2671
    %4103 = vmatpush.bf16.msra.mxu0 %v2663
    %4104 = vmatpush.bf16.msra.mxu0 %v2655
    %4105 = vmatpush.bf16.msra.mxu0 %v2647
    %4106 = vmatmul.bf16.gmra.mxu0 %v647
    %v4107 = vpop.f32.mrf.mxu0
    %v4108 = vadd.f32 %v4094, %v4107
    %v4109 = vpop.f32.mrf.mxu0
    %v4110 = vadd.f32 %v4096, %v4109
    %4111 = vdwg.mxu0
    %v4112 = vadd.f32 %v80, %v3324
    %v4113 = vadd.f32 %v81, %v3436
    %v4114 = vadd.f32 %v82, %v3548
    %v4115 = vadd.f32 %v83, %v3660
    %v4116 = vadd.f32 %v84, %v3772
    %v4117 = vadd.f32 %v85, %v3884
    %v4118 = vadd.f32 %v86, %v3996
    %v4119 = vadd.f32 %v87, %v4108
    %v4120 = vadd.f32 %v88, %v3326
    %v4121 = vadd.f32 %v89, %v3438
    %v4122 = vadd.f32 %v90, %v3550
    %v4123 = vadd.f32 %v91, %v3662
    %v4124 = vadd.f32 %v92, %v3774
    %v4125 = vadd.f32 %v93, %v3886
    %v4126 = vadd.f32 %v94, %v3998
    %v4127 = vadd.f32 %v95, %v4110
    %4128 = vst [vmem:[#allocation2] sm:$0xff] %v4112
    %4129 = vst [vmem:[#allocation2 + $0x8] sm:$0xff] %v4113
    %4130 = vst [vmem:[#allocation2 + $0x10] sm:$0xff] %v4114
    %4131 = vst [vmem:[#allocation2 + $0x18] sm:$0xff] %v4115
    %4132 = vst [vmem:[#allocation2 + $0x20] sm:$0xff] %v4116
    %4133 = vst [vmem:[#allocation2 + $0x28] sm:$0xff] %v4117
    %4134 = vst [vmem:[#allocation2 + $0x30] sm:$0xff] %v4118
    %4135 = vst [vmem:[#allocation2 + $0x38] sm:$0xff] %v4119
    %4136 = vst [vmem:[#allocation2 + $0x40] sm:$0xff] %v4120
    %4137 = vst [vmem:[#allocation2 + $0x48] sm:$0xff] %v4121
    %4138 = vst [vmem:[#allocation2 + $0x50] sm:$0xff] %v4122
    %4139 = vst [vmem:[#allocation2 + $0x58] sm:$0xff] %v4123
    %4140 = vst [vmem:[#allocation2 + $0x60] sm:$0xff] %v4124
    %4141 = vst [vmem:[#allocation2 + $0x68] sm:$0xff] %v4125
    %4142 = vst [vmem:[#allocation2 + $0x70] sm:$0xff] %v4126
    %4143 = vst [vmem:[#allocation2 + $0x78] sm:$0xff] %v4127
    // Predicated region
    $region30: #{tpu_custom_call.1} parent=1 // pred_check
      %p4144 = pneg %p60
    $region31: #{tpu_custom_call.1} parent=1 // pred_check_branch
      %4146 = sbr.rel (%p4144) target = $region33
    $region32: #{tpu_custom_call.1} parent=1 // pred_region
      %v4147 = vld [vmem:[#allocation2] sm:$0xff]
      %v4148 = vld [vmem:[#allocation2 + $0x8] sm:$0xff]
      %v4149 = vld [vmem:[#allocation2 + $0x10] sm:$0xff]
      %v4150 = vld [vmem:[#allocation2 + $0x18] sm:$0xff]
      %v4151 = vld [vmem:[#allocation2 + $0x20] sm:$0xff]
      %v4152 = vld [vmem:[#allocation2 + $0x28] sm:$0xff]
      %v4153 = vld [vmem:[#allocation2 + $0x30] sm:$0xff]
      %v4154 = vld [vmem:[#allocation2 + $0x38] sm:$0xff]
      %v4155 = vld [vmem:[#allocation2 + $0x40] sm:$0xff]
      %v4156 = vld [vmem:[#allocation2 + $0x48] sm:$0xff]
      %v4157 = vld [vmem:[#allocation2 + $0x50] sm:$0xff]
      %v4158 = vld [vmem:[#allocation2 + $0x58] sm:$0xff]
      %v4159 = vld [vmem:[#allocation2 + $0x60] sm:$0xff]
      %v4160 = vld [vmem:[#allocation2 + $0x68] sm:$0xff]
      %v4161 = vld [vmem:[#allocation2 + $0x70] sm:$0xff]
      %v4162 = vld [vmem:[#allocation2 + $0x78] sm:$0xff]
      %v4163 = vld [vmem:[#allocation8] sm:$0xff]
      %v4165 = vperm.slane %v4163, 0
      %v4166 = vperm.slane %v4163, 1
      %v4167 = vperm.slane %v4163, 2
      %v4168 = vperm.slane %v4163, 3
      %v4169 = vperm.slane %v4163, 4
      %v4170 = vperm.slane %v4163, 5
      %v4171 = vperm.slane %v4163, 6
      %v4172 = vperm.slane %v4163, 7
      %v4181 = vadd.f32 %v4147, %v4165
      %v4182 = vadd.f32 %v4148, %v4166
      %v4183 = vadd.f32 %v4149, %v4167
      %v4184 = vadd.f32 %v4150, %v4168
      %v4185 = vadd.f32 %v4151, %v4169
      %v4186 = vadd.f32 %v4152, %v4170
      %v4187 = vadd.f32 %v4153, %v4171
      %v4188 = vadd.f32 %v4154, %v4172
      %v4189 = vadd.f32 %v4155, %v4165
      %v4190 = vadd.f32 %v4156, %v4166
      %v4191 = vadd.f32 %v4157, %v4167
      %v4192 = vadd.f32 %v4158, %v4168
      %v4193 = vadd.f32 %v4159, %v4169
      %v4194 = vadd.f32 %v4160, %v4170
      %v4195 = vadd.f32 %v4161, %v4171
      %v4196 = vadd.f32 %v4162, %v4172
      %v4197 = vmax.f32 %v4181, 0.0
      %v4198 = vmax.f32 %v4182, 0.0
      %v4199 = vmax.f32 %v4183, 0.0
      %v4200 = vmax.f32 %v4184, 0.0
      %v4201 = vmax.f32 %v4185, 0.0
      %v4202 = vmax.f32 %v4186, 0.0
      %v4203 = vmax.f32 %v4187, 0.0
      %v4204 = vmax.f32 %v4188, 0.0
      %v4205 = vmax.f32 %v4189, 0.0
      %v4206 = vmax.f32 %v4190, 0.0
      %v4207 = vmax.f32 %v4191, 0.0
      %v4208 = vmax.f32 %v4192, 0.0
      %v4209 = vmax.f32 %v4193, 0.0
      %v4210 = vmax.f32 %v4194, 0.0
      %v4211 = vmax.f32 %v4195, 0.0
      %v4212 = vmax.f32 %v4196, 0.0
      %v4213 = vpack.c.bf16 %v4198, %v4197
      %v4214 = vpack.c.bf16 %v4200, %v4199
      %v4215 = vpack.c.bf16 %v4202, %v4201
      %v4216 = vpack.c.bf16 %v4204, %v4203
      %v4217 = vpack.c.bf16 %v4206, %v4205
      %v4218 = vpack.c.bf16 %v4208, %v4207
      %v4219 = vpack.c.bf16 %v4210, %v4209
      %v4220 = vpack.c.bf16 %v4212, %v4211
      %4221 = vst [vmem:[#allocation9] sm:$0xff] %v4213
      %4222 = vst [vmem:[#allocation9 + $0x8] sm:$0xff] %v4214
      %4223 = vst [vmem:[#allocation9 + $0x10] sm:$0xff] %v4215
      %4224 = vst [vmem:[#allocation9 + $0x18] sm:$0xff] %v4216
      %4225 = vst [vmem:[#allocation9 + $0x20] sm:$0xff] %v4217
      %4226 = vst [vmem:[#allocation9 + $0x28] sm:$0xff] %v4218
      %4227 = vst [vmem:[#allocation9 + $0x30] sm:$0xff] %v4219
      %4228 = vst [vmem:[#allocation9 + $0x38] sm:$0xff] %v4220
    $region33: #{tpu_custom_call.1} parent=1 // pred_fallthru
      _
    // Predicated region
    $region34: #{tpu_custom_call.1} parent=1 // pred_check
      _
    $region35: #{tpu_custom_call.1} parent=1 // pred_check_branch
      %4230 = sbr.rel (0) target = $region37
    $region36: #{tpu_custom_call.1} parent=1 // pred_region
      %4232 = vsyncadd [#allocation5], 0
      %s4233 = sshll.u32 [#allocation9], 4
      %s4234 = int_to_ptr.vmem [resolvable:$true] %s4233
      %s4235 = sshll.u32 %s3, 4
      %s4236 = int_to_ptr.hbm [resolvable:$true] %s4235
      %4241 = dma.vmem_to_hbm [thread:$0]  %s4234, 1024, %s4236, [#allocation5], 512, 512, 32
    $region37: #{tpu_custom_call.1} parent=1 // pred_fallthru
      _
    // Predicated region
    $region38: #{tpu_custom_call.1} parent=1 // pred_check
      _
    $region39: #{tpu_custom_call.1} parent=1 // pred_check_branch
      %4243 = sbr.rel (0) target = $region41
    $region40: #{tpu_custom_call.1} parent=1 // pred_region
      %4245 = dma.done [#allocation5], 1024
    $region41: #{tpu_custom_call.1} parent=1 // pred_fallthru
      _
    %4246 = vsyncpa [#allocation4], 1
    %4247 = vsyncpa [#allocation7], 1
    %4248 = vsyncpa [#allocation5], 1

</llo_original>
